<compile_context>
chip_gen: v7x
topology: tpu7x:2x2x1
jax: 0.10.0
libtpu: 0.0.40
codegen_flags: <defaults>
</compile_context>

<pallas_src>
import functools

import jax
import jax.numpy as jnp
from jax.experimental import pallas as pl
from jax.experimental.pallas import tpu as pltpu

LN_EPS = 1e-5


def _layernorm(x, g, b):
    mu = jnp.mean(x, axis=-1, keepdims=True)
    var = jnp.mean((x - mu) ** 2, axis=-1, keepdims=True)
    return (x - mu) * jax.lax.rsqrt(var + LN_EPS) * g + b


def fused_encoder_kernel(
    x_ref, xpe_ref,
    mlp_w1_ref, mlp_b1_ref, mlp_w2_ref, mlp_b2_ref,
    wqk_ref, bqk_ref, wv_ref, bv_ref, wo_ref, bo_ref,
    ln1_g_ref, ln1_b_ref,
    ffn_w1_ref, ffn_b1_ref, prelu_a_ref, ffn_w2_ref, ffn_b2_ref,
    ln2_g_ref, ln2_b_ref,
    out_ref,
    *, n_heads, batch, seq,
):
    layer = pl.program_id(0)

    # out_ref has a constant block index across the layer grid axis, so it is a
    # VMEM-resident state buffer; seed it with the input on the first layer.
    @pl.when(layer == 0)
    def _():
        out_ref[...] = x_ref[...]

    B, S = batch, seq
    D = out_ref.shape[-1]
    dh = D // n_heads
    scale = 1.0 / float(dh) ** 0.5

    x = out_ref[...].astype(jnp.float32)      # (B*S, D) resident activations
    xpe = xpe_ref[...].astype(jnp.float32)    # (B*S, D)
    x_bf = x.astype(jnp.bfloat16)

    # Shared encoder MLP modulating the positional embedding: pe = x_pe * mlp(x)
    h = jnp.dot(x_bf, mlp_w1_ref[...],
                preferred_element_type=jnp.float32) + mlp_b1_ref[...]
    h = jnp.maximum(h, 0.0).astype(jnp.bfloat16)
    pe = xpe * (jnp.dot(h, mlp_w2_ref[...],
                        preferred_element_type=jnp.float32) + mlp_b2_ref[...])

    # MultiheadAttentionV2 (mode='add'): fused Q|K projection from qc = x + pe,
    # V projection from x.  Batch is folded into M for all projections.
    qc = (x + pe).astype(jnp.bfloat16)
    qk = jnp.dot(qc, wqk_ref[0], preferred_element_type=jnp.float32) + bqk_ref[0]
    q = qk[:, :D]                                              # (B*S, D) f32
    k = qk[:, D:]                                              # (B*S, D) f32
    v = jnp.dot(x_bf, wv_ref[0],
                preferred_element_type=jnp.float32) + bv_ref[0]  # (B*S, D) f32
    wo = wo_ref[0]                                             # (D, D) f32

    # Attention: per (batch, head) score/softmax tiles.  The per-head slice of
    # the output projection is fused into the loop and accumulated into a
    # lane-dense (S, D) f32 buffer — no concat over heads.
    attn_rows = []
    for b in range(B):
        rs = slice(b * S, (b + 1) * S)
        acc = jnp.zeros((S, D), jnp.float32)
        for hh in range(n_heads):
            cs = slice(hh * dh, (hh + 1) * dh)
            qh = q[rs, cs].astype(jnp.bfloat16)
            kh = k[rs, cs].astype(jnp.bfloat16)
            vh = v[rs, cs].astype(jnp.bfloat16)
            s = jnp.einsum('qd,kd->qk', qh, kh,
                           preferred_element_type=jnp.float32) * scale
            s = s - jnp.max(s, axis=-1, keepdims=True)
            p = jnp.exp(s)
            p = p * pl.reciprocal(jnp.sum(p, axis=-1, keepdims=True), approx=True)
            o = jnp.dot(p.astype(jnp.bfloat16), vh,
                        preferred_element_type=jnp.float32)           # (S, dh)
            acc = acc + jnp.dot(o.astype(jnp.bfloat16),
                                wo[cs, :].astype(jnp.bfloat16),
                                preferred_element_type=jnp.float32)   # (S, D)
        attn_rows.append(acc)
    attn = jnp.concatenate(attn_rows, axis=0) + bo_ref[0]      # (B*S, D)

    # Residual + LayerNorm 1 (DropPath / dropout identity in eval mode)
    x1 = _layernorm(x + attn, ln1_g_ref[0], ln1_b_ref[0])

    # FFN with PReLU (shared scalar alpha read from SMEM)
    f = jnp.dot(x1.astype(jnp.bfloat16), ffn_w1_ref[0],
                preferred_element_type=jnp.float32) + ffn_b1_ref[0]
    alpha = prelu_a_ref[layer]
    f = jnp.where(f >= 0.0, f, alpha * f).astype(jnp.bfloat16)
    f = jnp.dot(f, ffn_w2_ref[0],
                preferred_element_type=jnp.float32) + ffn_b2_ref[0]

    # Residual + LayerNorm 2; write the new resident state
    out_ref[...] = _layernorm(x1 + f, ln2_g_ref[0],
                              ln2_b_ref[0]).astype(out_ref.dtype)


def _const_spec(shape):
    zeros = (0,) * len(shape)
    return pl.BlockSpec(tuple(shape), lambda l: zeros)


def _layer_spec(shape):
    trailing = (0,) * (len(shape) - 1)
    return pl.BlockSpec((1,) + tuple(shape[1:]), lambda l: (l,) + trailing)


def dab_detr_encoder(x, x_pe, params, *, n_heads):
    B, S, D = x.shape
    assert D % n_heads == 0
    L = params["wqk"].shape[0]
    BS = B * S

    x2 = x.reshape(BS, D)
    pe2 = x_pe.reshape(BS, D)

    shared = ("mlp_w1", "mlp_b1", "mlp_w2", "mlp_b2")
    per_layer_pre = ("wqk", "bqk", "wv", "bv", "wo", "bo",
                     "ln1_g", "ln1_b", "ffn_w1", "ffn_b1")
    per_layer_post = ("ffn_w2", "ffn_b2", "ln2_g", "ln2_b")

    args = [x2, pe2]
    in_specs = [_const_spec((BS, D)), _const_spec((BS, D))]
    for name in shared:
        a = params[name]
        args.append(a)
        in_specs.append(_const_spec(a.shape))
    for name in per_layer_pre:
        a = params[name]
        args.append(a)
        in_specs.append(_layer_spec(a.shape))
    # PReLU alpha: per-layer scalar kept in SMEM (read with program_id).
    args.append(params["prelu_a"])
    in_specs.append(pl.BlockSpec(memory_space=pltpu.MemorySpace.SMEM))
    for name in per_layer_post:
        a = params[name]
        args.append(a)
        in_specs.append(_layer_spec(a.shape))

    kernel = functools.partial(fused_encoder_kernel,
                               n_heads=n_heads, batch=B, seq=S)

    out2 = pl.pallas_call(
        kernel,
        out_shape=jax.ShapeDtypeStruct((BS, D), x.dtype),
        grid_spec=pltpu.PrefetchScalarGridSpec(
            num_scalar_prefetch=0,
            grid=(L,),
            in_specs=in_specs,
            out_specs=_const_spec((BS, D)),
        ),
        compiler_params=pltpu.CompilerParams(
            dimension_semantics=("arbitrary",)),   # layers carry state serially
    )(*args)
    return out2.reshape(B, S, D)


def init_params(key, n_layers, D, F):
    ks = jax.random.split(key, 8)

    def w(k, shape):
        return jax.random.normal(k, shape, jnp.float32) * 0.02

    wq = w(ks[2], (n_layers, D, D))
    wk = w(ks[3], (n_layers, D, D))
    params = dict(
        # shared encoder MLP (Linear-ReLU-Linear)
        mlp_w1=w(ks[0], (D, D)).astype(jnp.bfloat16),
        mlp_b1=jnp.zeros((1, D), jnp.float32),
        mlp_w2=w(ks[1], (D, D)).astype(jnp.bfloat16),
        mlp_b2=jnp.zeros((1, D), jnp.float32),
        # per-layer attention: fused Q|K weight (D, 2D), V, output projection
        wqk=jnp.concatenate([wq, wk], axis=-1).astype(jnp.bfloat16),
        bqk=jnp.zeros((n_layers, 1, 2 * D), jnp.float32),
        wv=w(ks[4], (n_layers, D, D)).astype(jnp.bfloat16),
        bv=jnp.zeros((n_layers, 1, D), jnp.float32),
        wo=w(ks[5], (n_layers, D, D)),            # f32: sliced per head in-kernel
        bo=jnp.zeros((n_layers, 1, D), jnp.float32),
        ln1_g=jnp.ones((n_layers, 1, D), jnp.float32),
        ln1_b=jnp.zeros((n_layers, 1, D), jnp.float32),
        # per-layer FFN with PReLU
        ffn_w1=w(ks[6], (n_layers, D, F)).astype(jnp.bfloat16),
        ffn_b1=jnp.zeros((n_layers, 1, F), jnp.float32),
        prelu_a=jnp.full((n_layers,), 0.25, jnp.float32),   # nn.PReLU default
        ffn_w2=w(ks[7], (n_layers, F, D)).astype(jnp.bfloat16),
        ffn_b2=jnp.zeros((n_layers, 1, D), jnp.float32),
        ln2_g=jnp.ones((n_layers, 1, D), jnp.float32),
        ln2_b=jnp.zeros((n_layers, 1, D), jnp.float32),
    )
    return params


if __name__ == "__main__":
    B, S, D = 2, 8, 32          # batch, sequence, embed_dim
    N_HEADS = 4
    N_LAYERS = 2
    FFN_HIDDEN = 4 * D          # standard transformer expansion for the FFN

    key = jax.random.PRNGKey(0)
    kx, kpe, kparams = jax.random.split(key, 3)
    x = jax.random.normal(kx, (B, S, D), jnp.float32)
    x_pe = jax.random.normal(kpe, (B, S, D), jnp.float32)

    params = init_params(kparams, N_LAYERS, D, FFN_HIDDEN)

    out = dab_detr_encoder(x, x_pe, params, n_heads=N_HEADS)
    out = jax.block_until_ready(out)
    assert out.shape == (B, S, D) and out.dtype == jnp.float32
    assert bool(jnp.all(jnp.isfinite(out)))
    print("KERNEL_OK")
</pallas_src>

<mosaic_0001>
module attributes {stable_mosaic.version = 11 : i64} {
  func.func @fused_encoder_kernel(%arg0: i32, %arg1: memref<16x32xf32, #tpu.memory_space<vmem>>, %arg2: memref<16x32xf32, #tpu.memory_space<vmem>>, %arg3: memref<32x32xbf16, #tpu.memory_space<vmem>>, %arg4: memref<1x32xf32, #tpu.memory_space<vmem>>, %arg5: memref<32x32xbf16, #tpu.memory_space<vmem>>, %arg6: memref<1x32xf32, #tpu.memory_space<vmem>>, %arg7: memref<1x32x64xbf16, #tpu.memory_space<vmem>>, %arg8: memref<1x1x64xf32, #tpu.memory_space<vmem>>, %arg9: memref<1x32x32xbf16, #tpu.memory_space<vmem>>, %arg10: memref<1x1x32xf32, #tpu.memory_space<vmem>>, %arg11: memref<1x32x32xf32, #tpu.memory_space<vmem>>, %arg12: memref<1x1x32xf32, #tpu.memory_space<vmem>>, %arg13: memref<1x1x32xf32, #tpu.memory_space<vmem>>, %arg14: memref<1x1x32xf32, #tpu.memory_space<vmem>>, %arg15: memref<1x32x128xbf16, #tpu.memory_space<vmem>>, %arg16: memref<1x1x128xf32, #tpu.memory_space<vmem>>, %arg17: memref<2xf32, #tpu.memory_space<smem>>, %arg18: memref<1x128x32xbf16, #tpu.memory_space<vmem>>, %arg19: memref<1x1x32xf32, #tpu.memory_space<vmem>>, %arg20: memref<1x1x32xf32, #tpu.memory_space<vmem>>, %arg21: memref<1x1x32xf32, #tpu.memory_space<vmem>>, %arg22: memref<16x32xf32, #tpu.memory_space<vmem>>) attributes {dimension_semantics = [#tpu.dimension_semantics<arbitrary>], iteration_bounds = array<i64: 2>, scalar_prefetch = 0 : i64, scratch_operands = 0 : i64, tpu.core_type = #tpu.core_type<tc>, window_params = [{pipeline_mode = #tpu.pipeline_mode<synchronous>, transform_indices = @transform_0, window_bounds = array<i64: 16, 32>}, {pipeline_mode = #tpu.pipeline_mode<synchronous>, transform_indices = @transform_1, window_bounds = array<i64: 16, 32>}, {pipeline_mode = #tpu.pipeline_mode<synchronous>, transform_indices = @transform_2, window_bounds = array<i64: 32, 32>}, {pipeline_mode = #tpu.pipeline_mode<synchronous>, transform_indices = @transform_3, window_bounds = array<i64: 1, 32>}, {pipeline_mode = #tpu.pipeline_mode<synchronous>, transform_indices = @transform_4, window_bounds = array<i64: 32, 32>}, {pipeline_mode = #tpu.pipeline_mode<synchronous>, transform_indices = @transform_5, window_bounds = array<i64: 1, 32>}, {transform_indices = @transform_6, window_bounds = array<i64: 1, 32, 64>}, {transform_indices = @transform_7, window_bounds = array<i64: 1, 1, 64>}, {transform_indices = @transform_8, window_bounds = array<i64: 1, 32, 32>}, {transform_indices = @transform_9, window_bounds = array<i64: 1, 1, 32>}, {transform_indices = @transform_10, window_bounds = array<i64: 1, 32, 32>}, {transform_indices = @transform_11, window_bounds = array<i64: 1, 1, 32>}, {transform_indices = @transform_12, window_bounds = array<i64: 1, 1, 32>}, {transform_indices = @transform_13, window_bounds = array<i64: 1, 1, 32>}, {transform_indices = @transform_14, window_bounds = array<i64: 1, 32, 128>}, {transform_indices = @transform_15, window_bounds = array<i64: 1, 1, 128>}, {transform_indices = @transform_16, window_bounds = array<i64: 2>}, {transform_indices = @transform_17, window_bounds = array<i64: 1, 128, 32>}, {transform_indices = @transform_18, window_bounds = array<i64: 1, 1, 32>}, {transform_indices = @transform_19, window_bounds = array<i64: 1, 1, 32>}, {transform_indices = @transform_20, window_bounds = array<i64: 1, 1, 32>}, {pipeline_mode = #tpu.pipeline_mode<synchronous>, transform_indices = @transform_21, window_bounds = array<i64: 16, 32>}]} {
    %c0_i32 = arith.constant 0 : i32
    %0 = arith.cmpi eq, %arg0, %c0_i32 : i32
    %1 = arith.extui %0 : i1 to i32
    %c0_i32_0 = arith.constant 0 : i32
    %2 = arith.cmpi ne, %1, %c0_i32_0 : i32
    scf.if %2 {
      %c0_123 = arith.constant 0 : index
      %c0_124 = arith.constant 0 : index
      %333 = vector.load %arg1[%c0_123, %c0_124] : memref<16x32xf32, #tpu.memory_space<vmem>>, vector<16x32xf32>
      %c0_125 = arith.constant 0 : index
      %c0_126 = arith.constant 0 : index
      %334 = vector.load %arg22[%c0_125, %c0_126] : memref<16x32xf32, #tpu.memory_space<vmem>>, vector<16x32xf32>
      tpu.vector_store %arg22[%c0_125, %c0_126], %333 {strides = array<i32>} : memref<16x32xf32, #tpu.memory_space<vmem>>, vector<16x32xf32>,
    } else {
    }
    %c0 = arith.constant 0 : index
    %c0_1 = arith.constant 0 : index
    %3 = vector.load %arg22[%c0, %c0_1] : memref<16x32xf32, #tpu.memory_space<vmem>>, vector<16x32xf32>
    %c0_2 = arith.constant 0 : index
    %c0_3 = arith.constant 0 : index
    %4 = vector.load %arg2[%c0_2, %c0_3] : memref<16x32xf32, #tpu.memory_space<vmem>>, vector<16x32xf32>
    %5 = arith.truncf %3 : vector<16x32xf32> to vector<16x32xbf16>
    %c0_4 = arith.constant 0 : index
    %c0_5 = arith.constant 0 : index
    %6 = vector.load %arg3[%c0_4, %c0_5] : memref<32x32xbf16, #tpu.memory_space<vmem>>, vector<32x32xbf16>
    %cst = arith.constant dense<0.000000e+00> : vector<16x32xf32>
    %7 = tpu.matmul %5, %6, %cst {dimension_numbers = #tpu.dot_dimension_numbers<[1], [0], [0], [1], [0, 0, 1, 1], [], []>} : vector<16x32xbf16>, vector<32x32xbf16>, vector<16x32xf32> -> vector<16x32xf32>
    %c0_6 = arith.constant 0 : index
    %c0_7 = arith.constant 0 : index
    %8 = vector.load %arg4[%c0_6, %c0_7] : memref<1x32xf32, #tpu.memory_space<vmem>>, vector<1x32xf32>
    %9 = vector.broadcast %8 : vector<1x32xf32> to vector<16x32xf32>
    %10 = arith.addf %7, %9 : vector<16x32xf32>
    %cst_8 = arith.constant 0.000000e+00 : f32
    %11 = vector.broadcast %cst_8 : f32 to vector<16x32xf32>
    %12 = arith.maximumf %10, %11 : vector<16x32xf32>
    %13 = arith.truncf %12 : vector<16x32xf32> to vector<16x32xbf16>
    %c0_9 = arith.constant 0 : index
    %c0_10 = arith.constant 0 : index
    %14 = vector.load %arg5[%c0_9, %c0_10] : memref<32x32xbf16, #tpu.memory_space<vmem>>, vector<32x32xbf16>
    %cst_11 = arith.constant dense<0.000000e+00> : vector<16x32xf32>
    %15 = tpu.matmul %13, %14, %cst_11 {dimension_numbers = #tpu.dot_dimension_numbers<[1], [0], [0], [1], [0, 0, 1, 1], [], []>} : vector<16x32xbf16>, vector<32x32xbf16>, vector<16x32xf32> -> vector<16x32xf32>
    %c0_12 = arith.constant 0 : index
    %c0_13 = arith.constant 0 : index
    %16 = vector.load %arg6[%c0_12, %c0_13] : memref<1x32xf32, #tpu.memory_space<vmem>>, vector<1x32xf32>
    %17 = vector.broadcast %16 : vector<1x32xf32> to vector<16x32xf32>
    %18 = arith.addf %15, %17 : vector<16x32xf32>
    %19 = arith.mulf %4, %18 : vector<16x32xf32>
    %20 = arith.addf %3, %19 : vector<16x32xf32>
    %21 = arith.truncf %20 : vector<16x32xf32> to vector<16x32xbf16>
    %c0_14 = arith.constant 0 : index
    %c0_15 = arith.constant 0 : index
    %c0_16 = arith.constant 0 : index
    %22 = vector.load %arg7[%c0_14, %c0_15, %c0_16] : memref<1x32x64xbf16, #tpu.memory_space<vmem>>, vector<1x32x64xbf16>
    %23 = vector.shape_cast %22 : vector<1x32x64xbf16> to vector<32x64xbf16>
    %cst_17 = arith.constant dense<0.000000e+00> : vector<16x64xf32>
    %24 = tpu.matmul %21, %23, %cst_17 {dimension_numbers = #tpu.dot_dimension_numbers<[1], [0], [0], [1], [0, 0, 1, 1], [], []>} : vector<16x32xbf16>, vector<32x64xbf16>, vector<16x64xf32> -> vector<16x64xf32>
    %c0_18 = arith.constant 0 : index
    %c0_19 = arith.constant 0 : index
    %c0_20 = arith.constant 0 : index
    %25 = vector.load %arg8[%c0_18, %c0_19, %c0_20] : memref<1x1x64xf32, #tpu.memory_space<vmem>>, vector<1x1x64xf32>
    %26 = vector.shape_cast %25 : vector<1x1x64xf32> to vector<1x64xf32>
    %27 = vector.broadcast %26 : vector<1x64xf32> to vector<16x64xf32>
    %28 = arith.addf %24, %27 : vector<16x64xf32>
    %29 = vector.extract_strided_slice %28 {offsets = [0, 0], sizes = [16, 32], strides = [1, 1]} : vector<16x64xf32> to vector<16x32xf32>
    %30 = vector.extract_strided_slice %28 {offsets = [0, 32], sizes = [16, 32], strides = [1, 1]} : vector<16x64xf32> to vector<16x32xf32>
    %c0_21 = arith.constant 0 : index
    %c0_22 = arith.constant 0 : index
    %c0_23 = arith.constant 0 : index
    %31 = vector.load %arg9[%c0_21, %c0_22, %c0_23] : memref<1x32x32xbf16, #tpu.memory_space<vmem>>, vector<1x32x32xbf16>
    %32 = vector.shape_cast %31 : vector<1x32x32xbf16> to vector<32x32xbf16>
    %cst_24 = arith.constant dense<0.000000e+00> : vector<16x32xf32>
    %33 = tpu.matmul %5, %32, %cst_24 {dimension_numbers = #tpu.dot_dimension_numbers<[1], [0], [0], [1], [0, 0, 1, 1], [], []>} : vector<16x32xbf16>, vector<32x32xbf16>, vector<16x32xf32> -> vector<16x32xf32>
    %c0_25 = arith.constant 0 : index
    %c0_26 = arith.constant 0 : index
    %c0_27 = arith.constant 0 : index
    %34 = vector.load %arg10[%c0_25, %c0_26, %c0_27] : memref<1x1x32xf32, #tpu.memory_space<vmem>>, vector<1x1x32xf32>
    %35 = vector.shape_cast %34 : vector<1x1x32xf32> to vector<1x32xf32>
    %36 = vector.broadcast %35 : vector<1x32xf32> to vector<16x32xf32>
    %37 = arith.addf %33, %36 : vector<16x32xf32>
    %c0_28 = arith.constant 0 : index
    %c0_29 = arith.constant 0 : index
    %c0_30 = arith.constant 0 : index
    %38 = vector.load %arg11[%c0_28, %c0_29, %c0_30] : memref<1x32x32xf32, #tpu.memory_space<vmem>>, vector<1x32x32xf32>
    %39 = vector.shape_cast %38 : vector<1x32x32xf32> to vector<32x32xf32>
    %cst_31 = arith.constant 0.000000e+00 : f32
    %40 = vector.broadcast %cst_31 : f32 to vector<8x32xf32>
    %41 = vector.extract_strided_slice %29 {offsets = [0, 0], sizes = [8, 8], strides = [1, 1]} : vector<16x32xf32> to vector<8x8xf32>
    %42 = arith.truncf %41 : vector<8x8xf32> to vector<8x8xbf16>
    %43 = vector.extract_strided_slice %30 {offsets = [0, 0], sizes = [8, 8], strides = [1, 1]} : vector<16x32xf32> to vector<8x8xf32>
    %44 = arith.truncf %43 : vector<8x8xf32> to vector<8x8xbf16>
    %45 = vector.extract_strided_slice %37 {offsets = [0, 0], sizes = [8, 8], strides = [1, 1]} : vector<16x32xf32> to vector<8x8xf32>
    %46 = arith.truncf %45 : vector<8x8xf32> to vector<8x8xbf16>
    "tpu.trace_start"() <{level = 10 : i32, message = "qd,kd->qk"}> : () -> ()
    %cst_32 = arith.constant dense<0.000000e+00> : vector<8x8xf32>
    %47 = tpu.matmul %42, %44, %cst_32 {dimension_numbers = #tpu.dot_dimension_numbers<[1], [1], [0], [0], [0, 0, 1, 0], [], []>} : vector<8x8xbf16>, vector<8x8xbf16>, vector<8x8xf32> -> vector<8x8xf32>
    "tpu.trace_stop"() : () -> ()
    %cst_33 = arith.constant 0.353553385 : f32
    %48 = vector.broadcast %cst_33 : f32 to vector<8x8xf32>
    %49 = arith.mulf %47, %48 : vector<8x8xf32>
    %cst_34 = arith.constant dense<0xFF800000> : vector<8xf32>
    %50 = vector.multi_reduction <maximumf>, %49, %cst_34 [1] : vector<8x8xf32> to vector<8xf32>
    %51 = vector.shape_cast %50 : vector<8xf32> to vector<8x1xf32>
    %52 = vector.broadcast %51 : vector<8x1xf32> to vector<8x8xf32>
    %53 = arith.subf %49, %52 : vector<8x8xf32>
    %54 = math.exp %53 : vector<8x8xf32>
    %cst_35 = arith.constant dense<0.000000e+00> : vector<8xf32>
    %55 = vector.multi_reduction <add>, %54, %cst_35 [1] : vector<8x8xf32> to vector<8xf32>
    %56 = vector.shape_cast %55 : vector<8xf32> to vector<8x1xf32>
    %57 = tpu.reciprocal %56 {approx = true} : vector<8x1xf32> -> vector<8x1xf32>
    %58 = vector.broadcast %57 : vector<8x1xf32> to vector<8x8xf32>
    %59 = arith.mulf %54, %58 : vector<8x8xf32>
    %60 = arith.truncf %59 : vector<8x8xf32> to vector<8x8xbf16>
    %cst_36 = arith.constant dense<0.000000e+00> : vector<8x8xf32>
    %61 = tpu.matmul %60, %46, %cst_36 {dimension_numbers = #tpu.dot_dimension_numbers<[1], [0], [0], [1], [0, 0, 1, 1], [], []>} : vector<8x8xbf16>, vector<8x8xbf16>, vector<8x8xf32> -> vector<8x8xf32>
    %62 = arith.truncf %61 : vector<8x8xf32> to vector<8x8xbf16>
    %63 = vector.extract_strided_slice %39 {offsets = [0, 0], sizes = [8, 32], strides = [1, 1]} : vector<32x32xf32> to vector<8x32xf32>
    %64 = arith.truncf %63 : vector<8x32xf32> to vector<8x32xbf16>
    %cst_37 = arith.constant dense<0.000000e+00> : vector<8x32xf32>
    %65 = tpu.matmul %62, %64, %cst_37 {dimension_numbers = #tpu.dot_dimension_numbers<[1], [0], [0], [1], [0, 0, 1, 1], [], []>} : vector<8x8xbf16>, vector<8x32xbf16>, vector<8x32xf32> -> vector<8x32xf32>
    %66 = arith.addf %40, %65 : vector<8x32xf32>
    %67 = vector.extract_strided_slice %29 {offsets = [0, 8], sizes = [8, 8], strides = [1, 1]} : vector<16x32xf32> to vector<8x8xf32>
    %68 = arith.truncf %67 : vector<8x8xf32> to vector<8x8xbf16>
    %69 = vector.extract_strided_slice %30 {offsets = [0, 8], sizes = [8, 8], strides = [1, 1]} : vector<16x32xf32> to vector<8x8xf32>
    %70 = arith.truncf %69 : vector<8x8xf32> to vector<8x8xbf16>
    %71 = vector.extract_strided_slice %37 {offsets = [0, 8], sizes = [8, 8], strides = [1, 1]} : vector<16x32xf32> to vector<8x8xf32>
    %72 = arith.truncf %71 : vector<8x8xf32> to vector<8x8xbf16>
    "tpu.trace_start"() <{level = 10 : i32, message = "qd,kd->qk"}> : () -> ()
    %cst_38 = arith.constant dense<0.000000e+00> : vector<8x8xf32>
    %73 = tpu.matmul %68, %70, %cst_38 {dimension_numbers = #tpu.dot_dimension_numbers<[1], [1], [0], [0], [0, 0, 1, 0], [], []>} : vector<8x8xbf16>, vector<8x8xbf16>, vector<8x8xf32> -> vector<8x8xf32>
    "tpu.trace_stop"() : () -> ()
    %cst_39 = arith.constant 0.353553385 : f32
    %74 = vector.broadcast %cst_39 : f32 to vector<8x8xf32>
    %75 = arith.mulf %73, %74 : vector<8x8xf32>
    %cst_40 = arith.constant dense<0xFF800000> : vector<8xf32>
    %76 = vector.multi_reduction <maximumf>, %75, %cst_40 [1] : vector<8x8xf32> to vector<8xf32>
    %77 = vector.shape_cast %76 : vector<8xf32> to vector<8x1xf32>
    %78 = vector.broadcast %77 : vector<8x1xf32> to vector<8x8xf32>
    %79 = arith.subf %75, %78 : vector<8x8xf32>
    %80 = math.exp %79 : vector<8x8xf32>
    %cst_41 = arith.constant dense<0.000000e+00> : vector<8xf32>
    %81 = vector.multi_reduction <add>, %80, %cst_41 [1] : vector<8x8xf32> to vector<8xf32>
    %82 = vector.shape_cast %81 : vector<8xf32> to vector<8x1xf32>
    %83 = tpu.reciprocal %82 {approx = true} : vector<8x1xf32> -> vector<8x1xf32>
    %84 = vector.broadcast %83 : vector<8x1xf32> to vector<8x8xf32>
    %85 = arith.mulf %80, %84 : vector<8x8xf32>
    %86 = arith.truncf %85 : vector<8x8xf32> to vector<8x8xbf16>
    %cst_42 = arith.constant dense<0.000000e+00> : vector<8x8xf32>
    %87 = tpu.matmul %86, %72, %cst_42 {dimension_numbers = #tpu.dot_dimension_numbers<[1], [0], [0], [1], [0, 0, 1, 1], [], []>} : vector<8x8xbf16>, vector<8x8xbf16>, vector<8x8xf32> -> vector<8x8xf32>
    %88 = arith.truncf %87 : vector<8x8xf32> to vector<8x8xbf16>
    %89 = vector.extract_strided_slice %39 {offsets = [8, 0], sizes = [8, 32], strides = [1, 1]} : vector<32x32xf32> to vector<8x32xf32>
    %90 = arith.truncf %89 : vector<8x32xf32> to vector<8x32xbf16>
    %cst_43 = arith.constant dense<0.000000e+00> : vector<8x32xf32>
    %91 = tpu.matmul %88, %90, %cst_43 {dimension_numbers = #tpu.dot_dimension_numbers<[1], [0], [0], [1], [0, 0, 1, 1], [], []>} : vector<8x8xbf16>, vector<8x32xbf16>, vector<8x32xf32> -> vector<8x32xf32>
    %92 = arith.addf %66, %91 : vector<8x32xf32>
    %93 = vector.extract_strided_slice %29 {offsets = [0, 16], sizes = [8, 8], strides = [1, 1]} : vector<16x32xf32> to vector<8x8xf32>
    %94 = arith.truncf %93 : vector<8x8xf32> to vector<8x8xbf16>
    %95 = vector.extract_strided_slice %30 {offsets = [0, 16], sizes = [8, 8], strides = [1, 1]} : vector<16x32xf32> to vector<8x8xf32>
    %96 = arith.truncf %95 : vector<8x8xf32> to vector<8x8xbf16>
    %97 = vector.extract_strided_slice %37 {offsets = [0, 16], sizes = [8, 8], strides = [1, 1]} : vector<16x32xf32> to vector<8x8xf32>
    %98 = arith.truncf %97 : vector<8x8xf32> to vector<8x8xbf16>
    "tpu.trace_start"() <{level = 10 : i32, message = "qd,kd->qk"}> : () -> ()
    %cst_44 = arith.constant dense<0.000000e+00> : vector<8x8xf32>
    %99 = tpu.matmul %94, %96, %cst_44 {dimension_numbers = #tpu.dot_dimension_numbers<[1], [1], [0], [0], [0, 0, 1, 0], [], []>} : vector<8x8xbf16>, vector<8x8xbf16>, vector<8x8xf32> -> vector<8x8xf32>
    "tpu.trace_stop"() : () -> ()
    %cst_45 = arith.constant 0.353553385 : f32
    %100 = vector.broadcast %cst_45 : f32 to vector<8x8xf32>
    %101 = arith.mulf %99, %100 : vector<8x8xf32>
    %cst_46 = arith.constant dense<0xFF800000> : vector<8xf32>
    %102 = vector.multi_reduction <maximumf>, %101, %cst_46 [1] : vector<8x8xf32> to vector<8xf32>
    %103 = vector.shape_cast %102 : vector<8xf32> to vector<8x1xf32>
    %104 = vector.broadcast %103 : vector<8x1xf32> to vector<8x8xf32>
    %105 = arith.subf %101, %104 : vector<8x8xf32>
    %106 = math.exp %105 : vector<8x8xf32>
    %cst_47 = arith.constant dense<0.000000e+00> : vector<8xf32>
    %107 = vector.multi_reduction <add>, %106, %cst_47 [1] : vector<8x8xf32> to vector<8xf32>
    %108 = vector.shape_cast %107 : vector<8xf32> to vector<8x1xf32>
    %109 = tpu.reciprocal %108 {approx = true} : vector<8x1xf32> -> vector<8x1xf32>
    %110 = vector.broadcast %109 : vector<8x1xf32> to vector<8x8xf32>
    %111 = arith.mulf %106, %110 : vector<8x8xf32>
    %112 = arith.truncf %111 : vector<8x8xf32> to vector<8x8xbf16>
    %cst_48 = arith.constant dense<0.000000e+00> : vector<8x8xf32>
    %113 = tpu.matmul %112, %98, %cst_48 {dimension_numbers = #tpu.dot_dimension_numbers<[1], [0], [0], [1], [0, 0, 1, 1], [], []>} : vector<8x8xbf16>, vector<8x8xbf16>, vector<8x8xf32> -> vector<8x8xf32>
    %114 = arith.truncf %113 : vector<8x8xf32> to vector<8x8xbf16>
    %115 = vector.extract_strided_slice %39 {offsets = [16, 0], sizes = [8, 32], strides = [1, 1]} : vector<32x32xf32> to vector<8x32xf32>
    %116 = arith.truncf %115 : vector<8x32xf32> to vector<8x32xbf16>
    %cst_49 = arith.constant dense<0.000000e+00> : vector<8x32xf32>
    %117 = tpu.matmul %114, %116, %cst_49 {dimension_numbers = #tpu.dot_dimension_numbers<[1], [0], [0], [1], [0, 0, 1, 1], [], []>} : vector<8x8xbf16>, vector<8x32xbf16>, vector<8x32xf32> -> vector<8x32xf32>
    %118 = arith.addf %92, %117 : vector<8x32xf32>
    %119 = vector.extract_strided_slice %29 {offsets = [0, 24], sizes = [8, 8], strides = [1, 1]} : vector<16x32xf32> to vector<8x8xf32>
    %120 = arith.truncf %119 : vector<8x8xf32> to vector<8x8xbf16>
    %121 = vector.extract_strided_slice %30 {offsets = [0, 24], sizes = [8, 8], strides = [1, 1]} : vector<16x32xf32> to vector<8x8xf32>
    %122 = arith.truncf %121 : vector<8x8xf32> to vector<8x8xbf16>
    %123 = vector.extract_strided_slice %37 {offsets = [0, 24], sizes = [8, 8], strides = [1, 1]} : vector<16x32xf32> to vector<8x8xf32>
    %124 = arith.truncf %123 : vector<8x8xf32> to vector<8x8xbf16>
    "tpu.trace_start"() <{level = 10 : i32, message = "qd,kd->qk"}> : () -> ()
    %cst_50 = arith.constant dense<0.000000e+00> : vector<8x8xf32>
    %125 = tpu.matmul %120, %122, %cst_50 {dimension_numbers = #tpu.dot_dimension_numbers<[1], [1], [0], [0], [0, 0, 1, 0], [], []>} : vector<8x8xbf16>, vector<8x8xbf16>, vector<8x8xf32> -> vector<8x8xf32>
    "tpu.trace_stop"() : () -> ()
    %cst_51 = arith.constant 0.353553385 : f32
    %126 = vector.broadcast %cst_51 : f32 to vector<8x8xf32>
    %127 = arith.mulf %125, %126 : vector<8x8xf32>
    %cst_52 = arith.constant dense<0xFF800000> : vector<8xf32>
    %128 = vector.multi_reduction <maximumf>, %127, %cst_52 [1] : vector<8x8xf32> to vector<8xf32>
    %129 = vector.shape_cast %128 : vector<8xf32> to vector<8x1xf32>
    %130 = vector.broadcast %129 : vector<8x1xf32> to vector<8x8xf32>
    %131 = arith.subf %127, %130 : vector<8x8xf32>
    %132 = math.exp %131 : vector<8x8xf32>
    %cst_53 = arith.constant dense<0.000000e+00> : vector<8xf32>
    %133 = vector.multi_reduction <add>, %132, %cst_53 [1] : vector<8x8xf32> to vector<8xf32>
    %134 = vector.shape_cast %133 : vector<8xf32> to vector<8x1xf32>
    %135 = tpu.reciprocal %134 {approx = true} : vector<8x1xf32> -> vector<8x1xf32>
    %136 = vector.broadcast %135 : vector<8x1xf32> to vector<8x8xf32>
    %137 = arith.mulf %132, %136 : vector<8x8xf32>
    %138 = arith.truncf %137 : vector<8x8xf32> to vector<8x8xbf16>
    %cst_54 = arith.constant dense<0.000000e+00> : vector<8x8xf32>
    %139 = tpu.matmul %138, %124, %cst_54 {dimension_numbers = #tpu.dot_dimension_numbers<[1], [0], [0], [1], [0, 0, 1, 1], [], []>} : vector<8x8xbf16>, vector<8x8xbf16>, vector<8x8xf32> -> vector<8x8xf32>
    %140 = arith.truncf %139 : vector<8x8xf32> to vector<8x8xbf16>
    %141 = vector.extract_strided_slice %39 {offsets = [24, 0], sizes = [8, 32], strides = [1, 1]} : vector<32x32xf32> to vector<8x32xf32>
    %142 = arith.truncf %141 : vector<8x32xf32> to vector<8x32xbf16>
    %cst_55 = arith.constant dense<0.000000e+00> : vector<8x32xf32>
    %143 = tpu.matmul %140, %142, %cst_55 {dimension_numbers = #tpu.dot_dimension_numbers<[1], [0], [0], [1], [0, 0, 1, 1], [], []>} : vector<8x8xbf16>, vector<8x32xbf16>, vector<8x32xf32> -> vector<8x32xf32>
    %144 = arith.addf %118, %143 : vector<8x32xf32>
    %cst_56 = arith.constant 0.000000e+00 : f32
    %145 = vector.broadcast %cst_56 : f32 to vector<8x32xf32>
    %146 = vector.extract_strided_slice %29 {offsets = [8, 0], sizes = [8, 8], strides = [1, 1]} : vector<16x32xf32> to vector<8x8xf32>
    %147 = arith.truncf %146 : vector<8x8xf32> to vector<8x8xbf16>
    %148 = vector.extract_strided_slice %30 {offsets = [8, 0], sizes = [8, 8], strides = [1, 1]} : vector<16x32xf32> to vector<8x8xf32>
    %149 = arith.truncf %148 : vector<8x8xf32> to vector<8x8xbf16>
    %150 = vector.extract_strided_slice %37 {offsets = [8, 0], sizes = [8, 8], strides = [1, 1]} : vector<16x32xf32> to vector<8x8xf32>
    %151 = arith.truncf %150 : vector<8x8xf32> to vector<8x8xbf16>
    "tpu.trace_start"() <{level = 10 : i32, message = "qd,kd->qk"}> : () -> ()
    %cst_57 = arith.constant dense<0.000000e+00> : vector<8x8xf32>
    %152 = tpu.matmul %147, %149, %cst_57 {dimension_numbers = #tpu.dot_dimension_numbers<[1], [1], [0], [0], [0, 0, 1, 0], [], []>} : vector<8x8xbf16>, vector<8x8xbf16>, vector<8x8xf32> -> vector<8x8xf32>
    "tpu.trace_stop"() : () -> ()
    %cst_58 = arith.constant 0.353553385 : f32
    %153 = vector.broadcast %cst_58 : f32 to vector<8x8xf32>
    %154 = arith.mulf %152, %153 : vector<8x8xf32>
    %cst_59 = arith.constant dense<0xFF800000> : vector<8xf32>
    %155 = vector.multi_reduction <maximumf>, %154, %cst_59 [1] : vector<8x8xf32> to vector<8xf32>
    %156 = vector.shape_cast %155 : vector<8xf32> to vector<8x1xf32>
    %157 = vector.broadcast %156 : vector<8x1xf32> to vector<8x8xf32>
    %158 = arith.subf %154, %157 : vector<8x8xf32>
    %159 = math.exp %158 : vector<8x8xf32>
    %cst_60 = arith.constant dense<0.000000e+00> : vector<8xf32>
    %160 = vector.multi_reduction <add>, %159, %cst_60 [1] : vector<8x8xf32> to vector<8xf32>
    %161 = vector.shape_cast %160 : vector<8xf32> to vector<8x1xf32>
    %162 = tpu.reciprocal %161 {approx = true} : vector<8x1xf32> -> vector<8x1xf32>
    %163 = vector.broadcast %162 : vector<8x1xf32> to vector<8x8xf32>
    %164 = arith.mulf %159, %163 : vector<8x8xf32>
    %165 = arith.truncf %164 : vector<8x8xf32> to vector<8x8xbf16>
    %cst_61 = arith.constant dense<0.000000e+00> : vector<8x8xf32>
    %166 = tpu.matmul %165, %151, %cst_61 {dimension_numbers = #tpu.dot_dimension_numbers<[1], [0], [0], [1], [0, 0, 1, 1], [], []>} : vector<8x8xbf16>, vector<8x8xbf16>, vector<8x8xf32> -> vector<8x8xf32>
    %167 = arith.truncf %166 : vector<8x8xf32> to vector<8x8xbf16>
    %168 = vector.extract_strided_slice %39 {offsets = [0, 0], sizes = [8, 32], strides = [1, 1]} : vector<32x32xf32> to vector<8x32xf32>
    %169 = arith.truncf %168 : vector<8x32xf32> to vector<8x32xbf16>
    %cst_62 = arith.constant dense<0.000000e+00> : vector<8x32xf32>
    %170 = tpu.matmul %167, %169, %cst_62 {dimension_numbers = #tpu.dot_dimension_numbers<[1], [0], [0], [1], [0, 0, 1, 1], [], []>} : vector<8x8xbf16>, vector<8x32xbf16>, vector<8x32xf32> -> vector<8x32xf32>
    %171 = arith.addf %145, %170 : vector<8x32xf32>
    %172 = vector.extract_strided_slice %29 {offsets = [8, 8], sizes = [8, 8], strides = [1, 1]} : vector<16x32xf32> to vector<8x8xf32>
    %173 = arith.truncf %172 : vector<8x8xf32> to vector<8x8xbf16>
    %174 = vector.extract_strided_slice %30 {offsets = [8, 8], sizes = [8, 8], strides = [1, 1]} : vector<16x32xf32> to vector<8x8xf32>
    %175 = arith.truncf %174 : vector<8x8xf32> to vector<8x8xbf16>
    %176 = vector.extract_strided_slice %37 {offsets = [8, 8], sizes = [8, 8], strides = [1, 1]} : vector<16x32xf32> to vector<8x8xf32>
    %177 = arith.truncf %176 : vector<8x8xf32> to vector<8x8xbf16>
    "tpu.trace_start"() <{level = 10 : i32, message = "qd,kd->qk"}> : () -> ()
    %cst_63 = arith.constant dense<0.000000e+00> : vector<8x8xf32>
    %178 = tpu.matmul %173, %175, %cst_63 {dimension_numbers = #tpu.dot_dimension_numbers<[1], [1], [0], [0], [0, 0, 1, 0], [], []>} : vector<8x8xbf16>, vector<8x8xbf16>, vector<8x8xf32> -> vector<8x8xf32>
    "tpu.trace_stop"() : () -> ()
    %cst_64 = arith.constant 0.353553385 : f32
    %179 = vector.broadcast %cst_64 : f32 to vector<8x8xf32>
    %180 = arith.mulf %178, %179 : vector<8x8xf32>
    %cst_65 = arith.constant dense<0xFF800000> : vector<8xf32>
    %181 = vector.multi_reduction <maximumf>, %180, %cst_65 [1] : vector<8x8xf32> to vector<8xf32>
    %182 = vector.shape_cast %181 : vector<8xf32> to vector<8x1xf32>
    %183 = vector.broadcast %182 : vector<8x1xf32> to vector<8x8xf32>
    %184 = arith.subf %180, %183 : vector<8x8xf32>
    %185 = math.exp %184 : vector<8x8xf32>
    %cst_66 = arith.constant dense<0.000000e+00> : vector<8xf32>
    %186 = vector.multi_reduction <add>, %185, %cst_66 [1] : vector<8x8xf32> to vector<8xf32>
    %187 = vector.shape_cast %186 : vector<8xf32> to vector<8x1xf32>
    %188 = tpu.reciprocal %187 {approx = true} : vector<8x1xf32> -> vector<8x1xf32>
    %189 = vector.broadcast %188 : vector<8x1xf32> to vector<8x8xf32>
    %190 = arith.mulf %185, %189 : vector<8x8xf32>
    %191 = arith.truncf %190 : vector<8x8xf32> to vector<8x8xbf16>
    %cst_67 = arith.constant dense<0.000000e+00> : vector<8x8xf32>
    %192 = tpu.matmul %191, %177, %cst_67 {dimension_numbers = #tpu.dot_dimension_numbers<[1], [0], [0], [1], [0, 0, 1, 1], [], []>} : vector<8x8xbf16>, vector<8x8xbf16>, vector<8x8xf32> -> vector<8x8xf32>
    %193 = arith.truncf %192 : vector<8x8xf32> to vector<8x8xbf16>
    %194 = vector.extract_strided_slice %39 {offsets = [8, 0], sizes = [8, 32], strides = [1, 1]} : vector<32x32xf32> to vector<8x32xf32>
    %195 = arith.truncf %194 : vector<8x32xf32> to vector<8x32xbf16>
    %cst_68 = arith.constant dense<0.000000e+00> : vector<8x32xf32>
    %196 = tpu.matmul %193, %195, %cst_68 {dimension_numbers = #tpu.dot_dimension_numbers<[1], [0], [0], [1], [0, 0, 1, 1], [], []>} : vector<8x8xbf16>, vector<8x32xbf16>, vector<8x32xf32> -> vector<8x32xf32>
    %197 = arith.addf %171, %196 : vector<8x32xf32>
    %198 = vector.extract_strided_slice %29 {offsets = [8, 16], sizes = [8, 8], strides = [1, 1]} : vector<16x32xf32> to vector<8x8xf32>
    %199 = arith.truncf %198 : vector<8x8xf32> to vector<8x8xbf16>
    %200 = vector.extract_strided_slice %30 {offsets = [8, 16], sizes = [8, 8], strides = [1, 1]} : vector<16x32xf32> to vector<8x8xf32>
    %201 = arith.truncf %200 : vector<8x8xf32> to vector<8x8xbf16>
    %202 = vector.extract_strided_slice %37 {offsets = [8, 16], sizes = [8, 8], strides = [1, 1]} : vector<16x32xf32> to vector<8x8xf32>
    %203 = arith.truncf %202 : vector<8x8xf32> to vector<8x8xbf16>
    "tpu.trace_start"() <{level = 10 : i32, message = "qd,kd->qk"}> : () -> ()
    %cst_69 = arith.constant dense<0.000000e+00> : vector<8x8xf32>
    %204 = tpu.matmul %199, %201, %cst_69 {dimension_numbers = #tpu.dot_dimension_numbers<[1], [1], [0], [0], [0, 0, 1, 0], [], []>} : vector<8x8xbf16>, vector<8x8xbf16>, vector<8x8xf32> -> vector<8x8xf32>
    "tpu.trace_stop"() : () -> ()
    %cst_70 = arith.constant 0.353553385 : f32
    %205 = vector.broadcast %cst_70 : f32 to vector<8x8xf32>
    %206 = arith.mulf %204, %205 : vector<8x8xf32>
    %cst_71 = arith.constant dense<0xFF800000> : vector<8xf32>
    %207 = vector.multi_reduction <maximumf>, %206, %cst_71 [1] : vector<8x8xf32> to vector<8xf32>
    %208 = vector.shape_cast %207 : vector<8xf32> to vector<8x1xf32>
    %209 = vector.broadcast %208 : vector<8x1xf32> to vector<8x8xf32>
    %210 = arith.subf %206, %209 : vector<8x8xf32>
    %211 = math.exp %210 : vector<8x8xf32>
    %cst_72 = arith.constant dense<0.000000e+00> : vector<8xf32>
    %212 = vector.multi_reduction <add>, %211, %cst_72 [1] : vector<8x8xf32> to vector<8xf32>
    %213 = vector.shape_cast %212 : vector<8xf32> to vector<8x1xf32>
    %214 = tpu.reciprocal %213 {approx = true} : vector<8x1xf32> -> vector<8x1xf32>
    %215 = vector.broadcast %214 : vector<8x1xf32> to vector<8x8xf32>
    %216 = arith.mulf %211, %215 : vector<8x8xf32>
    %217 = arith.truncf %216 : vector<8x8xf32> to vector<8x8xbf16>
    %cst_73 = arith.constant dense<0.000000e+00> : vector<8x8xf32>
    %218 = tpu.matmul %217, %203, %cst_73 {dimension_numbers = #tpu.dot_dimension_numbers<[1], [0], [0], [1], [0, 0, 1, 1], [], []>} : vector<8x8xbf16>, vector<8x8xbf16>, vector<8x8xf32> -> vector<8x8xf32>
    %219 = arith.truncf %218 : vector<8x8xf32> to vector<8x8xbf16>
    %220 = vector.extract_strided_slice %39 {offsets = [16, 0], sizes = [8, 32], strides = [1, 1]} : vector<32x32xf32> to vector<8x32xf32>
    %221 = arith.truncf %220 : vector<8x32xf32> to vector<8x32xbf16>
    %cst_74 = arith.constant dense<0.000000e+00> : vector<8x32xf32>
    %222 = tpu.matmul %219, %221, %cst_74 {dimension_numbers = #tpu.dot_dimension_numbers<[1], [0], [0], [1], [0, 0, 1, 1], [], []>} : vector<8x8xbf16>, vector<8x32xbf16>, vector<8x32xf32> -> vector<8x32xf32>
    %223 = arith.addf %197, %222 : vector<8x32xf32>
    %224 = vector.extract_strided_slice %29 {offsets = [8, 24], sizes = [8, 8], strides = [1, 1]} : vector<16x32xf32> to vector<8x8xf32>
    %225 = arith.truncf %224 : vector<8x8xf32> to vector<8x8xbf16>
    %226 = vector.extract_strided_slice %30 {offsets = [8, 24], sizes = [8, 8], strides = [1, 1]} : vector<16x32xf32> to vector<8x8xf32>
    %227 = arith.truncf %226 : vector<8x8xf32> to vector<8x8xbf16>
    %228 = vector.extract_strided_slice %37 {offsets = [8, 24], sizes = [8, 8], strides = [1, 1]} : vector<16x32xf32> to vector<8x8xf32>
    %229 = arith.truncf %228 : vector<8x8xf32> to vector<8x8xbf16>
    "tpu.trace_start"() <{level = 10 : i32, message = "qd,kd->qk"}> : () -> ()
    %cst_75 = arith.constant dense<0.000000e+00> : vector<8x8xf32>
    %230 = tpu.matmul %225, %227, %cst_75 {dimension_numbers = #tpu.dot_dimension_numbers<[1], [1], [0], [0], [0, 0, 1, 0], [], []>} : vector<8x8xbf16>, vector<8x8xbf16>, vector<8x8xf32> -> vector<8x8xf32>
    "tpu.trace_stop"() : () -> ()
    %cst_76 = arith.constant 0.353553385 : f32
    %231 = vector.broadcast %cst_76 : f32 to vector<8x8xf32>
    %232 = arith.mulf %230, %231 : vector<8x8xf32>
    %cst_77 = arith.constant dense<0xFF800000> : vector<8xf32>
    %233 = vector.multi_reduction <maximumf>, %232, %cst_77 [1] : vector<8x8xf32> to vector<8xf32>
    %234 = vector.shape_cast %233 : vector<8xf32> to vector<8x1xf32>
    %235 = vector.broadcast %234 : vector<8x1xf32> to vector<8x8xf32>
    %236 = arith.subf %232, %235 : vector<8x8xf32>
    %237 = math.exp %236 : vector<8x8xf32>
    %cst_78 = arith.constant dense<0.000000e+00> : vector<8xf32>
    %238 = vector.multi_reduction <add>, %237, %cst_78 [1] : vector<8x8xf32> to vector<8xf32>
    %239 = vector.shape_cast %238 : vector<8xf32> to vector<8x1xf32>
    %240 = tpu.reciprocal %239 {approx = true} : vector<8x1xf32> -> vector<8x1xf32>
    %241 = vector.broadcast %240 : vector<8x1xf32> to vector<8x8xf32>
    %242 = arith.mulf %237, %241 : vector<8x8xf32>
    %243 = arith.truncf %242 : vector<8x8xf32> to vector<8x8xbf16>
    %cst_79 = arith.constant dense<0.000000e+00> : vector<8x8xf32>
    %244 = tpu.matmul %243, %229, %cst_79 {dimension_numbers = #tpu.dot_dimension_numbers<[1], [0], [0], [1], [0, 0, 1, 1], [], []>} : vector<8x8xbf16>, vector<8x8xbf16>, vector<8x8xf32> -> vector<8x8xf32>
    %245 = arith.truncf %244 : vector<8x8xf32> to vector<8x8xbf16>
    %246 = vector.extract_strided_slice %39 {offsets = [24, 0], sizes = [8, 32], strides = [1, 1]} : vector<32x32xf32> to vector<8x32xf32>
    %247 = arith.truncf %246 : vector<8x32xf32> to vector<8x32xbf16>
    %cst_80 = arith.constant dense<0.000000e+00> : vector<8x32xf32>
    %248 = tpu.matmul %245, %247, %cst_80 {dimension_numbers = #tpu.dot_dimension_numbers<[1], [0], [0], [1], [0, 0, 1, 1], [], []>} : vector<8x8xbf16>, vector<8x32xbf16>, vector<8x32xf32> -> vector<8x32xf32>
    %249 = arith.addf %223, %248 : vector<8x32xf32>
    %250 = tpu.concatenate %144, %249 in 0 : vector<8x32xf32>, vector<8x32xf32> -> vector<16x32xf32>
    %c0_81 = arith.constant 0 : index
    %c0_82 = arith.constant 0 : index
    %c0_83 = arith.constant 0 : index
    %251 = vector.load %arg12[%c0_81, %c0_82, %c0_83] : memref<1x1x32xf32, #tpu.memory_space<vmem>>, vector<1x1x32xf32>
    %252 = vector.shape_cast %251 : vector<1x1x32xf32> to vector<1x32xf32>
    %253 = vector.broadcast %252 : vector<1x32xf32> to vector<16x32xf32>
    %254 = arith.addf %250, %253 : vector<16x32xf32>
    %255 = arith.addf %3, %254 : vector<16x32xf32>
    %c0_84 = arith.constant 0 : index
    %c0_85 = arith.constant 0 : index
    %c0_86 = arith.constant 0 : index
    %256 = vector.load %arg13[%c0_84, %c0_85, %c0_86] : memref<1x1x32xf32, #tpu.memory_space<vmem>>, vector<1x1x32xf32>
    %257 = vector.shape_cast %256 : vector<1x1x32xf32> to vector<1x32xf32>
    %c0_87 = arith.constant 0 : index
    %c0_88 = arith.constant 0 : index
    %c0_89 = arith.constant 0 : index
    %258 = vector.load %arg14[%c0_87, %c0_88, %c0_89] : memref<1x1x32xf32, #tpu.memory_space<vmem>>, vector<1x1x32xf32>
    %259 = vector.shape_cast %258 : vector<1x1x32xf32> to vector<1x32xf32>
    %cst_90 = arith.constant dense<0.000000e+00> : vector<16xf32>
    %260 = vector.multi_reduction <add>, %255, %cst_90 [1] : vector<16x32xf32> to vector<16xf32>
    %261 = vector.shape_cast %260 : vector<16xf32> to vector<16x1xf32>
    %cst_91 = arith.constant 3.200000e+01 : f32
    %262 = vector.broadcast %cst_91 : f32 to vector<16x1xf32>
    %263 = arith.divf %261, %262 : vector<16x1xf32>
    %264 = vector.broadcast %263 : vector<16x1xf32> to vector<16x32xf32>
    %265 = arith.subf %255, %264 : vector<16x32xf32>
    %266 = arith.mulf %265, %265 : vector<16x32xf32>
    %cst_92 = arith.constant dense<0.000000e+00> : vector<16xf32>
    %267 = vector.multi_reduction <add>, %266, %cst_92 [1] : vector<16x32xf32> to vector<16xf32>
    %268 = vector.shape_cast %267 : vector<16xf32> to vector<16x1xf32>
    %cst_93 = arith.constant 3.200000e+01 : f32
    %269 = vector.broadcast %cst_93 : f32 to vector<16x1xf32>
    %270 = arith.divf %268, %269 : vector<16x1xf32>
    %271 = vector.broadcast %263 : vector<16x1xf32> to vector<16x32xf32>
    %272 = arith.subf %255, %271 : vector<16x32xf32>
    %cst_94 = arith.constant 9.99999974E-6 : f32
    %273 = vector.broadcast %cst_94 : f32 to vector<16x1xf32>
    %274 = arith.addf %270, %273 : vector<16x1xf32>
    %275 = math.rsqrt %274 : vector<16x1xf32>
    %276 = vector.broadcast %275 : vector<16x1xf32> to vector<16x32xf32>
    %277 = arith.mulf %272, %276 : vector<16x32xf32>
    %278 = vector.broadcast %257 : vector<1x32xf32> to vector<16x32xf32>
    %279 = arith.mulf %277, %278 : vector<16x32xf32>
    %280 = vector.broadcast %259 : vector<1x32xf32> to vector<16x32xf32>
    %281 = arith.addf %279, %280 : vector<16x32xf32>
    %282 = arith.truncf %281 : vector<16x32xf32> to vector<16x32xbf16>
    %c0_95 = arith.constant 0 : index
    %c0_96 = arith.constant 0 : index
    %c0_97 = arith.constant 0 : index
    %283 = vector.load %arg15[%c0_95, %c0_96, %c0_97] : memref<1x32x128xbf16, #tpu.memory_space<vmem>>, vector<1x32x128xbf16>
    %284 = vector.shape_cast %283 : vector<1x32x128xbf16> to vector<32x128xbf16>
    %cst_98 = arith.constant dense<0.000000e+00> : vector<16x128xf32>
    %285 = tpu.matmul %282, %284, %cst_98 {dimension_numbers = #tpu.dot_dimension_numbers<[1], [0], [0], [1], [0, 0, 1, 1], [], []>} : vector<16x32xbf16>, vector<32x128xbf16>, vector<16x128xf32> -> vector<16x128xf32>
    %c0_99 = arith.constant 0 : index
    %c0_100 = arith.constant 0 : index
    %c0_101 = arith.constant 0 : index
    %286 = vector.load %arg16[%c0_99, %c0_100, %c0_101] : memref<1x1x128xf32, #tpu.memory_space<vmem>>, vector<1x1x128xf32>
    %287 = vector.shape_cast %286 : vector<1x1x128xf32> to vector<1x128xf32>
    %288 = vector.broadcast %287 : vector<1x128xf32> to vector<16x128xf32>
    %289 = arith.addf %285, %288 : vector<16x128xf32>
    %290 = arith.index_cast %arg0 : i32 to index
    %291 = memref.load %arg17[%290] : memref<2xf32, #tpu.memory_space<smem>>
    %cst_102 = arith.constant 0.000000e+00 : f32
    %292 = vector.broadcast %cst_102 : f32 to vector<16x128xf32>
    %293 = arith.cmpf oge, %289, %292 : vector<16x128xf32>
    %294 = vector.broadcast %291 : f32 to vector<16x128xf32>
    %295 = arith.mulf %294, %289 : vector<16x128xf32>
    %296 = arith.select %293, %289, %295 : vector<16x128xi1>, vector<16x128xf32>
    %297 = arith.truncf %296 : vector<16x128xf32> to vector<16x128xbf16>
    %c0_103 = arith.constant 0 : index
    %c0_104 = arith.constant 0 : index
    %c0_105 = arith.constant 0 : index
    %298 = vector.load %arg18[%c0_103, %c0_104, %c0_105] : memref<1x128x32xbf16, #tpu.memory_space<vmem>>, vector<1x128x32xbf16>
    %299 = vector.shape_cast %298 : vector<1x128x32xbf16> to vector<128x32xbf16>
    %cst_106 = arith.constant dense<0.000000e+00> : vector<16x32xf32>
    %300 = tpu.matmul %297, %299, %cst_106 {dimension_numbers = #tpu.dot_dimension_numbers<[1], [0], [0], [1], [0, 0, 1, 1], [], []>} : vector<16x128xbf16>, vector<128x32xbf16>, vector<16x32xf32> -> vector<16x32xf32>
    %c0_107 = arith.constant 0 : index
    %c0_108 = arith.constant 0 : index
    %c0_109 = arith.constant 0 : index
    %301 = vector.load %arg19[%c0_107, %c0_108, %c0_109] : memref<1x1x32xf32, #tpu.memory_space<vmem>>, vector<1x1x32xf32>
    %302 = vector.shape_cast %301 : vector<1x1x32xf32> to vector<1x32xf32>
    %303 = vector.broadcast %302 : vector<1x32xf32> to vector<16x32xf32>
    %304 = arith.addf %300, %303 : vector<16x32xf32>
    %305 = arith.addf %281, %304 : vector<16x32xf32>
    %c0_110 = arith.constant 0 : index
    %c0_111 = arith.constant 0 : index
    %c0_112 = arith.constant 0 : index
    %306 = vector.load %arg20[%c0_110, %c0_111, %c0_112] : memref<1x1x32xf32, #tpu.memory_space<vmem>>, vector<1x1x32xf32>
    %307 = vector.shape_cast %306 : vector<1x1x32xf32> to vector<1x32xf32>
    %c0_113 = arith.constant 0 : index
    %c0_114 = arith.constant 0 : index
    %c0_115 = arith.constant 0 : index
    %308 = vector.load %arg21[%c0_113, %c0_114, %c0_115] : memref<1x1x32xf32, #tpu.memory_space<vmem>>, vector<1x1x32xf32>
    %309 = vector.shape_cast %308 : vector<1x1x32xf32> to vector<1x32xf32>
    %cst_116 = arith.constant dense<0.000000e+00> : vector<16xf32>
    %310 = vector.multi_reduction <add>, %305, %cst_116 [1] : vector<16x32xf32> to vector<16xf32>
    %311 = vector.shape_cast %310 : vector<16xf32> to vector<16x1xf32>
    %cst_117 = arith.constant 3.200000e+01 : f32
    %312 = vector.broadcast %cst_117 : f32 to vector<16x1xf32>
    %313 = arith.divf %311, %312 : vector<16x1xf32>
    %314 = vector.broadcast %313 : vector<16x1xf32> to vector<16x32xf32>
    %315 = arith.subf %305, %314 : vector<16x32xf32>
    %316 = arith.mulf %315, %315 : vector<16x32xf32>
    %cst_118 = arith.constant dense<0.000000e+00> : vector<16xf32>
    %317 = vector.multi_reduction <add>, %316, %cst_118 [1] : vector<16x32xf32> to vector<16xf32>
    %318 = vector.shape_cast %317 : vector<16xf32> to vector<16x1xf32>
    %cst_119 = arith.constant 3.200000e+01 : f32
    %319 = vector.broadcast %cst_119 : f32 to vector<16x1xf32>
    %320 = arith.divf %318, %319 : vector<16x1xf32>
    %321 = vector.broadcast %313 : vector<16x1xf32> to vector<16x32xf32>
    %322 = arith.subf %305, %321 : vector<16x32xf32>
    %cst_120 = arith.constant 9.99999974E-6 : f32
    %323 = vector.broadcast %cst_120 : f32 to vector<16x1xf32>
    %324 = arith.addf %320, %323 : vector<16x1xf32>
    %325 = math.rsqrt %324 : vector<16x1xf32>
    %326 = vector.broadcast %325 : vector<16x1xf32> to vector<16x32xf32>
    %327 = arith.mulf %322, %326 : vector<16x32xf32>
    %328 = vector.broadcast %307 : vector<1x32xf32> to vector<16x32xf32>
    %329 = arith.mulf %327, %328 : vector<16x32xf32>
    %330 = vector.broadcast %309 : vector<1x32xf32> to vector<16x32xf32>
    %331 = arith.addf %329, %330 : vector<16x32xf32>
    %c0_121 = arith.constant 0 : index
    %c0_122 = arith.constant 0 : index
    %332 = vector.load %arg22[%c0_121, %c0_122] : memref<16x32xf32, #tpu.memory_space<vmem>>, vector<16x32xf32>
    tpu.vector_store %arg22[%c0_121, %c0_122], %331 {strides = array<i32>} : memref<16x32xf32, #tpu.memory_space<vmem>>, vector<16x32xf32>,
    return
  }
  func.func @transform_0(%arg0: i32) -> (i32, i32) {
    %c0_i32 = arith.constant 0 : i32
    %c0_i32_0 = arith.constant 0 : i32
    %c0_i32_1 = arith.constant 0 : i32
    return %c0_i32, %c0_i32_0 : i32, i32
  }
  func.func @transform_1(%arg0: i32) -> (i32, i32) {
    %c0_i32 = arith.constant 0 : i32
    %c0_i32_0 = arith.constant 0 : i32
    %c0_i32_1 = arith.constant 0 : i32
    return %c0_i32, %c0_i32_0 : i32, i32
  }
  func.func @transform_2(%arg0: i32) -> (i32, i32) {
    %c0_i32 = arith.constant 0 : i32
    %c0_i32_0 = arith.constant 0 : i32
    %c0_i32_1 = arith.constant 0 : i32
    return %c0_i32, %c0_i32_0 : i32, i32
  }
  func.func @transform_3(%arg0: i32) -> (i32, i32) {
    %c0_i32 = arith.constant 0 : i32
    %c0_i32_0 = arith.constant 0 : i32
    %c0_i32_1 = arith.constant 0 : i32
    return %c0_i32, %c0_i32_0 : i32, i32
  }
  func.func @transform_4(%arg0: i32) -> (i32, i32) {
    %c0_i32 = arith.constant 0 : i32
    %c0_i32_0 = arith.constant 0 : i32
    %c0_i32_1 = arith.constant 0 : i32
    return %c0_i32, %c0_i32_0 : i32, i32
  }
  func.func @transform_5(%arg0: i32) -> (i32, i32) {
    %c0_i32 = arith.constant 0 : i32
    %c0_i32_0 = arith.constant 0 : i32
    %c0_i32_1 = arith.constant 0 : i32
    return %c0_i32, %c0_i32_0 : i32, i32
  }
  func.func @transform_6(%arg0: i32) -> (i32, i32, i32) {
    %c0_i32 = arith.constant 0 : i32
    %c0_i32_0 = arith.constant 0 : i32
    %c0_i32_1 = arith.constant 0 : i32
    return %arg0, %c0_i32, %c0_i32_0 : i32, i32, i32
  }
  func.func @transform_7(%arg0: i32) -> (i32, i32, i32) {
    %c0_i32 = arith.constant 0 : i32
    %c0_i32_0 = arith.constant 0 : i32
    %c0_i32_1 = arith.constant 0 : i32
    return %arg0, %c0_i32, %c0_i32_0 : i32, i32, i32
  }
  func.func @transform_8(%arg0: i32) -> (i32, i32, i32) {
    %c0_i32 = arith.constant 0 : i32
    %c0_i32_0 = arith.constant 0 : i32
    %c0_i32_1 = arith.constant 0 : i32
    return %arg0, %c0_i32, %c0_i32_0 : i32, i32, i32
  }
  func.func @transform_9(%arg0: i32) -> (i32, i32, i32) {
    %c0_i32 = arith.constant 0 : i32
    %c0_i32_0 = arith.constant 0 : i32
    %c0_i32_1 = arith.constant 0 : i32
    return %arg0, %c0_i32, %c0_i32_0 : i32, i32, i32
  }
  func.func @transform_10(%arg0: i32) -> (i32, i32, i32) {
    %c0_i32 = arith.constant 0 : i32
    %c0_i32_0 = arith.constant 0 : i32
    %c0_i32_1 = arith.constant 0 : i32
    return %arg0, %c0_i32, %c0_i32_0 : i32, i32, i32
  }
  func.func @transform_11(%arg0: i32) -> (i32, i32, i32) {
    %c0_i32 = arith.constant 0 : i32
    %c0_i32_0 = arith.constant 0 : i32
    %c0_i32_1 = arith.constant 0 : i32
    return %arg0, %c0_i32, %c0_i32_0 : i32, i32, i32
  }
  func.func @transform_12(%arg0: i32) -> (i32, i32, i32) {
    %c0_i32 = arith.constant 0 : i32
    %c0_i32_0 = arith.constant 0 : i32
    %c0_i32_1 = arith.constant 0 : i32
    return %arg0, %c0_i32, %c0_i32_0 : i32, i32, i32
  }
  func.func @transform_13(%arg0: i32) -> (i32, i32, i32) {
    %c0_i32 = arith.constant 0 : i32
    %c0_i32_0 = arith.constant 0 : i32
    %c0_i32_1 = arith.constant 0 : i32
    return %arg0, %c0_i32, %c0_i32_0 : i32, i32, i32
  }
  func.func @transform_14(%arg0: i32) -> (i32, i32, i32) {
    %c0_i32 = arith.constant 0 : i32
    %c0_i32_0 = arith.constant 0 : i32
    %c0_i32_1 = arith.constant 0 : i32
    return %arg0, %c0_i32, %c0_i32_0 : i32, i32, i32
  }
  func.func @transform_15(%arg0: i32) -> (i32, i32, i32) {
    %c0_i32 = arith.constant 0 : i32
    %c0_i32_0 = arith.constant 0 : i32
    %c0_i32_1 = arith.constant 0 : i32
    return %arg0, %c0_i32, %c0_i32_0 : i32, i32, i32
  }
  func.func @transform_16(%arg0: i32) -> i32 {
    %c0_i32 = arith.constant 0 : i32
    %c0_i32_0 = arith.constant 0 : i32
    return %c0_i32 : i32
  }
  func.func @transform_17(%arg0: i32) -> (i32, i32, i32) {
    %c0_i32 = arith.constant 0 : i32
    %c0_i32_0 = arith.constant 0 : i32
    %c0_i32_1 = arith.constant 0 : i32
    return %arg0, %c0_i32, %c0_i32_0 : i32, i32, i32
  }
  func.func @transform_18(%arg0: i32) -> (i32, i32, i32) {
    %c0_i32 = arith.constant 0 : i32
    %c0_i32_0 = arith.constant 0 : i32
    %c0_i32_1 = arith.constant 0 : i32
    return %arg0, %c0_i32, %c0_i32_0 : i32, i32, i32
  }
  func.func @transform_19(%arg0: i32) -> (i32, i32, i32) {
    %c0_i32 = arith.constant 0 : i32
    %c0_i32_0 = arith.constant 0 : i32
    %c0_i32_1 = arith.constant 0 : i32
    return %arg0, %c0_i32, %c0_i32_0 : i32, i32, i32
  }
  func.func @transform_20(%arg0: i32) -> (i32, i32, i32) {
    %c0_i32 = arith.constant 0 : i32
    %c0_i32_0 = arith.constant 0 : i32
    %c0_i32_1 = arith.constant 0 : i32
    return %arg0, %c0_i32, %c0_i32_0 : i32, i32, i32
  }
  func.func @transform_21(%arg0: i32) -> (i32, i32) {
    %c0_i32 = arith.constant 0 : i32
    %c0_i32_0 = arith.constant 0 : i32
    %c0_i32_1 = arith.constant 0 : i32
    return %c0_i32, %c0_i32_0 : i32, i32
  }
}

</mosaic_0001>

<llo_original>
// kernel: tpu_custom_call.1
$region0: #{tpu_custom_call.1}
  #allocation0 [shape = 'u32[]', space=smem, size = 0x4, offset = 0x4, fixed_abs, tag = 'smem constant byte address 0x4 - core index']
  #allocation1 [shape = 'u32[144,128]{1,0:T(1,128)}', space=vmem, size = 0x12000, scoped, tag = 'internal scratch']
  %s0 = inlined_call_operand.hbm [shape: f32[16,32], index: 0, kind: input, shape index: {}]
  %s1 = inlined_call_operand.hbm [shape: f32[16,32], index: 1, kind: input, shape index: {}]
  %s2 = inlined_call_operand.hbm [shape: bf16[32,32], index: 2, kind: input, shape index: {}]
  %s3 = inlined_call_operand.hbm [shape: f32[1,32], index: 3, kind: input, shape index: {}]
  %s4 = inlined_call_operand.hbm [shape: bf16[32,32], index: 4, kind: input, shape index: {}]
  %s5 = inlined_call_operand.hbm [shape: f32[1,32], index: 5, kind: input, shape index: {}]
  %s6 = inlined_call_operand.vmem [shape: bf16[2,32,64], index: 6, kind: input, shape index: {}]
  %s7 = inlined_call_operand.vmem [shape: f32[2,1,64], index: 7, kind: input, shape index: {}]
  %s8 = inlined_call_operand.vmem [shape: bf16[2,32,32], index: 8, kind: input, shape index: {}]
  %s9 = inlined_call_operand.vmem [shape: f32[2,1,32], index: 9, kind: input, shape index: {}]
  %s10 = inlined_call_operand.vmem [shape: f32[2,32,32], index: 10, kind: input, shape index: {}]
  %s11 = inlined_call_operand.vmem [shape: f32[2,1,32], index: 11, kind: input, shape index: {}]
  %s12 = inlined_call_operand.vmem [shape: f32[2,1,32], index: 12, kind: input, shape index: {}]
  %s13 = inlined_call_operand.vmem [shape: f32[2,1,32], index: 13, kind: input, shape index: {}]
  %s14 = inlined_call_operand.vmem [shape: bf16[2,32,128], index: 14, kind: input, shape index: {}]
  %s15 = inlined_call_operand.vmem [shape: f32[2,1,128], index: 15, kind: input, shape index: {}]
  %s16 = inlined_call_operand.vmem [shape: f32[2], index: 16, kind: input, shape index: {}]
  %s17 = inlined_call_operand.vmem [shape: bf16[2,128,32], index: 17, kind: input, shape index: {}]
  %s18 = inlined_call_operand.vmem [shape: f32[2,1,32], index: 18, kind: input, shape index: {}]
  %s19 = inlined_call_operand.vmem [shape: f32[2,1,32], index: 19, kind: input, shape index: {}]
  %s20 = inlined_call_operand.vmem [shape: f32[2,1,32], index: 20, kind: input, shape index: {}]
  %s21 = inlined_call_operand.hbm [shape: f32[16,32], index: 21, kind: output, shape index: {}]
  %s22 = sld [smem:[#allocation0]]
  $region149: #{tpu_custom_call.1} parent=0
    _
  %s24 = ssub.s32 1, %s22
  %s25 = scalar_select 0, %s24, %s22
  $region1: #{tpu_custom_call.1} parent=0
    #allocation2 [shape = 'u8[8192]{0}', space=vmem, size = 0x2000, scoped, tag = 'input window, operand 0, single buffered']
    #allocation3 [shape = 's32[2]{0}', space=sflag, size = 0x8, scoped, tag = 'scoped memory for tpu_custom_call.1']
    #allocation4 [shape = 's32[2]{0}', space=sflag, size = 0x8, scoped, tag = 'scoped memory for tpu_custom_call.1']
    #allocation5 [shape = 's32[2]{0}', space=sflag, size = 0x8, scoped, tag = 'scoped memory for tpu_custom_call.1']
    #allocation6 [shape = 'u8[8192]{0}', space=vmem, size = 0x2000, scoped, tag = 'input window, operand 1, single buffered']
    #allocation7 [shape = 's32[1]{0}', space=sflag, size = 0x4, scoped, tag = 'scoped memory for tpu_custom_call.1']
    #allocation8 [shape = 'u8[8192]{0}', space=vmem, size = 0x2000, scoped, tag = 'input window, operand 2, single buffered']
    #allocation9 [shape = 'u8[512]{0}', space=vmem, size = 0x400, scoped, tag = 'input window, operand 3, single buffered']
    #allocation10 [shape = 's32[1]{0}', space=sflag, size = 0x4, scoped, tag = 'scoped memory for tpu_custom_call.1']
    #allocation11 [shape = 'u8[8192]{0}', space=vmem, size = 0x2000, scoped, tag = 'input window, operand 4, single buffered']
    #allocation12 [shape = 'u8[512]{0}', space=vmem, size = 0x400, scoped, tag = 'input window, operand 5, single buffered']
    #allocation13 [shape = 's32[1]{0}', space=sflag, size = 0x4, scoped, tag = 'scoped memory for tpu_custom_call.1']
    #allocation14 [shape = 'u8[512]{0}', space=smem, size = 0x200, scoped, tag = 'input window, operand 16, single buffered']
    #allocation15 [shape = 'u8[8192]{0}', space=vmem, size = 0x2000, scoped, tag = 'output window, operand 0, single buffered']
    %26 = vsyncpa [#allocation3], 0
    %27 = vsyncpa [#allocation7], 0
    %28 = vsyncpa [#allocation10], 0
    %29 = vsyncpa [#allocation13], 0
    %30 = vsyncpa [#allocation5], 0
    %31 = vsyncpa [#allocation4], 0
    loop: start=0, step=1, limit=4
    $region2: #{tpu_custom_call.1} parent=1 // loop_pre_header
      _
    $region3: #{tpu_custom_call.1} parent=1 // loop_header
      %s33 = sphi 0, %s37
      %p34 = scmp.ge.s32.totalorder %s33, 4
      %s41 = sphi 0, %s41
      %s43 = sphi 0, %s41
      %s44 = sphi 0, %s43
      %s58 = sphi 0, %s44
      %s62 = sphi 0, %s62
      %s64 = sphi 0, %s62
      %s65 = sphi 0, %s64
      %s79 = sphi 0, %s65
      %s83 = sphi 0, %s83
      %s85 = sphi 0, %s83
      %s86 = sphi 0, %s85
      %s100 = sphi 0, %s86
      %s104 = sphi 0, %s104
      %s106 = sphi 0, %s104
      %s107 = sphi 0, %s106
      %s121 = sphi 0, %s107
      %s125 = sphi 0, %s125
      %s127 = sphi 0, %s125
      %s128 = sphi 0, %s127
      %s142 = sphi 0, %s128
      %s146 = sphi 0, %s146
      %s148 = sphi 0, %s146
      %s149 = sphi 0, %s148
      %s163 = sphi 0, %s149
      %s169 = sphi 0, %s171
      %s172 = sphi 0, %s169
      %s173 = sphi 0, %s172
      %s189 = sphi 0, %s173
      %s195 = sphi 0, %s197
      %s198 = sphi 0, %s195
      %s199 = sphi 0, %s198
      %s215 = sphi 0, %s199
      %s221 = sphi 0, %s223
      %s224 = sphi 0, %s221
      %s225 = sphi 0, %s224
      %s241 = sphi 0, %s225
      %s247 = sphi 0, %s249
      %s250 = sphi 0, %s247
      %s251 = sphi 0, %s250
      %s267 = sphi 0, %s251
      %s273 = sphi 0, %s275
      %s276 = sphi 0, %s273
      %s277 = sphi 0, %s276
      %s293 = sphi 0, %s277
      %s299 = sphi 0, %s301
      %s302 = sphi 0, %s299
      %s303 = sphi 0, %s302
      %s319 = sphi 0, %s303
      %s325 = sphi 0, %s327
      %s328 = sphi 0, %s325
      %s329 = sphi 0, %s328
      %s345 = sphi 0, %s329
      %s351 = sphi 0, %s353
      %s354 = sphi 0, %s351
      %s355 = sphi 0, %s354
      %s371 = sphi 0, %s355
      %s377 = sphi 0, %s379
      %s380 = sphi 0, %s377
      %s381 = sphi 0, %s380
      %s397 = sphi 0, %s381
      %s403 = sphi 0, %s405
      %s406 = sphi 0, %s403
      %s407 = sphi 0, %s406
      %s423 = sphi 0, %s407
      %s427 = sphi 0, %s427
      %s429 = sphi 0, %s427
      %s430 = sphi 0, %s429
      %s444 = sphi 0, %s430
      %s450 = sphi 0, %s452
      %s453 = sphi 0, %s450
      %s454 = sphi 0, %s453
      %s470 = sphi 0, %s454
      %s476 = sphi 0, %s478
      %s479 = sphi 0, %s476
      %s480 = sphi 0, %s479
      %s496 = sphi 0, %s480
      %s502 = sphi 0, %s504
      %s505 = sphi 0, %s502
      %s506 = sphi 0, %s505
      %s522 = sphi 0, %s506
      %s528 = sphi 0, %s530
      %s531 = sphi 0, %s528
      %s532 = sphi 0, %s531
      %s548 = sphi 0, %s532
      %s552 = sphi 0, %s552
      %s554 = sphi 0, %s552
      %s555 = sphi 0, %s554
      %s569 = sphi 0, %s555
    $region4: #{tpu_custom_call.1} parent=1 // loop_header_branch
      %36 = sbr.rel (%p34) target = $region8
    $region5: #{tpu_custom_call.1} parent=1 // loop_body
      %s38 = ssub.s32 %s33, 1
      %s39 = ssub.s32 %s33, 2
      %s40 = sadd.s32 %s33, 1
      %s42 = sadd.s32 %s41, 1
      %p45 = scmp.eq.s32.totalorder %s33, 1
      %p46 = scmp.ne.s32.totalorder %s41, %s43
      %p47 = scmp.eq.s32.totalorder %s33, 0
      %p48 = por %p46, %p47
      %p49 = scmp.ne.s32.totalorder %s41, %s43
      %p50 = scmp.eq.s32.totalorder %s38, 1
      %p51 = por %p49, %p50
      %p52 = scmp.ne.s32.totalorder %s43, %s44
      %p53 = scmp.eq.s32.totalorder %s38, 0
      %p54 = por %p52, %p53
      %p55 = scmp.ne.s32.totalorder %s43, %s44
      %p56 = scmp.eq.s32.totalorder %s39, 1
      %p57 = por %p55, %p56
      %p59 = scmp.ne.s32.totalorder %s44, %s58
      %p60 = scmp.eq.s32.totalorder %s39, 0
      %p61 = por %p59, %p60
      %s63 = sadd.s32 %s62, 1
      %p66 = scmp.eq.s32.totalorder %s33, 1
      %p67 = scmp.ne.s32.totalorder %s62, %s64
      %p68 = scmp.eq.s32.totalorder %s33, 0
      %p69 = por %p67, %p68
      %p70 = scmp.ne.s32.totalorder %s62, %s64
      %p71 = scmp.eq.s32.totalorder %s38, 1
      %p72 = por %p70, %p71
      %p73 = scmp.ne.s32.totalorder %s64, %s65
      %p74 = scmp.eq.s32.totalorder %s38, 0
      %p75 = por %p73, %p74
      %p76 = scmp.ne.s32.totalorder %s64, %s65
      %p77 = scmp.eq.s32.totalorder %s39, 1
      %p78 = por %p76, %p77
      %p80 = scmp.ne.s32.totalorder %s65, %s79
      %p81 = scmp.eq.s32.totalorder %s39, 0
      %p82 = por %p80, %p81
      %s84 = sadd.s32 %s83, 1
      %p87 = scmp.eq.s32.totalorder %s33, 1
      %p88 = scmp.ne.s32.totalorder %s83, %s85
      %p89 = scmp.eq.s32.totalorder %s33, 0
      %p90 = por %p88, %p89
      %p91 = scmp.ne.s32.totalorder %s83, %s85
      %p92 = scmp.eq.s32.totalorder %s38, 1
      %p93 = por %p91, %p92
      %p94 = scmp.ne.s32.totalorder %s85, %s86
      %p95 = scmp.eq.s32.totalorder %s38, 0
      %p96 = por %p94, %p95
      %p97 = scmp.ne.s32.totalorder %s85, %s86
      %p98 = scmp.eq.s32.totalorder %s39, 1
      %p99 = por %p97, %p98
      %p101 = scmp.ne.s32.totalorder %s86, %s100
      %p102 = scmp.eq.s32.totalorder %s39, 0
      %p103 = por %p101, %p102
      %s105 = sadd.s32 %s104, 1
      %p108 = scmp.eq.s32.totalorder %s33, 1
      %p109 = scmp.ne.s32.totalorder %s104, %s106
      %p110 = scmp.eq.s32.totalorder %s33, 0
      %p111 = por %p109, %p110
      %p112 = scmp.ne.s32.totalorder %s104, %s106
      %p113 = scmp.eq.s32.totalorder %s38, 1
      %p114 = por %p112, %p113
      %p115 = scmp.ne.s32.totalorder %s106, %s107
      %p116 = scmp.eq.s32.totalorder %s38, 0
      %p117 = por %p115, %p116
      %p118 = scmp.ne.s32.totalorder %s106, %s107
      %p119 = scmp.eq.s32.totalorder %s39, 1
      %p120 = por %p118, %p119
      %p122 = scmp.ne.s32.totalorder %s107, %s121
      %p123 = scmp.eq.s32.totalorder %s39, 0
      %p124 = por %p122, %p123
      %s126 = sadd.s32 %s125, 1
      %p129 = scmp.eq.s32.totalorder %s33, 1
      %p130 = scmp.ne.s32.totalorder %s125, %s127
      %p131 = scmp.eq.s32.totalorder %s33, 0
      %p132 = por %p130, %p131
      %p133 = scmp.ne.s32.totalorder %s125, %s127
      %p134 = scmp.eq.s32.totalorder %s38, 1
      %p135 = por %p133, %p134
      %p136 = scmp.ne.s32.totalorder %s127, %s128
      %p137 = scmp.eq.s32.totalorder %s38, 0
      %p138 = por %p136, %p137
      %p139 = scmp.ne.s32.totalorder %s127, %s128
      %p140 = scmp.eq.s32.totalorder %s39, 1
      %p141 = por %p139, %p140
      %p143 = scmp.ne.s32.totalorder %s128, %s142
      %p144 = scmp.eq.s32.totalorder %s39, 0
      %p145 = por %p143, %p144
      %s147 = sadd.s32 %s146, 1
      %p150 = scmp.eq.s32.totalorder %s33, 1
      %p151 = scmp.ne.s32.totalorder %s146, %s148
      %p152 = scmp.eq.s32.totalorder %s33, 0
      %p153 = por %p151, %p152
      %p154 = scmp.ne.s32.totalorder %s146, %s148
      %p155 = scmp.eq.s32.totalorder %s38, 1
      %p156 = por %p154, %p155
      %p157 = scmp.ne.s32.totalorder %s148, %s149
      %p158 = scmp.eq.s32.totalorder %s38, 0
      %p159 = por %p157, %p158
      %p160 = scmp.ne.s32.totalorder %s148, %s149
      %p161 = scmp.eq.s32.totalorder %s39, 1
      %p162 = por %p160, %p161
      %p164 = scmp.ne.s32.totalorder %s149, %s163
      %p165 = scmp.eq.s32.totalorder %s39, 0
      %p166 = por %p164, %p165
      %s167 = ssub.s32 %s33, %s40
      %p168 = scmp.eq.s32.totalorder %s167, 0
      %s170 = sadd.s32 %s169, 1
      %s171 = scalar_select %p168, %s169, %s170
      %p174 = pneg %p168
      %p175 = scmp.eq.s32.totalorder %s33, 1
      %p176 = por %p174, %p175
      %p177 = scmp.ne.s32.totalorder %s169, %s172
      %p178 = scmp.eq.s32.totalorder %s33, 0
      %p179 = por %p177, %p178
      %p180 = scmp.ne.s32.totalorder %s169, %s172
      %p181 = scmp.eq.s32.totalorder %s38, 1
      %p182 = por %p180, %p181
      %p183 = scmp.ne.s32.totalorder %s172, %s173
      %p184 = scmp.eq.s32.totalorder %s38, 0
      %p185 = por %p183, %p184
      %p186 = scmp.ne.s32.totalorder %s172, %s173
      %p187 = scmp.eq.s32.totalorder %s39, 1
      %p188 = por %p186, %p187
      %p190 = scmp.ne.s32.totalorder %s173, %s189
      %p191 = scmp.eq.s32.totalorder %s39, 0
      %p192 = por %p190, %p191
      %s193 = ssub.s32 %s33, %s40
      %p194 = scmp.eq.s32.totalorder %s193, 0
      %s196 = sadd.s32 %s195, 1
      %s197 = scalar_select %p194, %s195, %s196
      %p200 = pneg %p194
      %p201 = scmp.eq.s32.totalorder %s33, 1
      %p202 = por %p200, %p201
      %p203 = scmp.ne.s32.totalorder %s195, %s198
      %p204 = scmp.eq.s32.totalorder %s33, 0
      %p205 = por %p203, %p204
      %p206 = scmp.ne.s32.totalorder %s195, %s198
      %p207 = scmp.eq.s32.totalorder %s38, 1
      %p208 = por %p206, %p207
      %p209 = scmp.ne.s32.totalorder %s198, %s199
      %p210 = scmp.eq.s32.totalorder %s38, 0
      %p211 = por %p209, %p210
      %p212 = scmp.ne.s32.totalorder %s198, %s199
      %p213 = scmp.eq.s32.totalorder %s39, 1
      %p214 = por %p212, %p213
      %p216 = scmp.ne.s32.totalorder %s199, %s215
      %p217 = scmp.eq.s32.totalorder %s39, 0
      %p218 = por %p216, %p217
      %s219 = ssub.s32 %s33, %s40
      %p220 = scmp.eq.s32.totalorder %s219, 0
      %s222 = sadd.s32 %s221, 1
      %s223 = scalar_select %p220, %s221, %s222
      %p226 = pneg %p220
      %p227 = scmp.eq.s32.totalorder %s33, 1
      %p228 = por %p226, %p227
      %p229 = scmp.ne.s32.totalorder %s221, %s224
      %p230 = scmp.eq.s32.totalorder %s33, 0
      %p231 = por %p229, %p230
      %p232 = scmp.ne.s32.totalorder %s221, %s224
      %p233 = scmp.eq.s32.totalorder %s38, 1
      %p234 = por %p232, %p233
      %p235 = scmp.ne.s32.totalorder %s224, %s225
      %p236 = scmp.eq.s32.totalorder %s38, 0
      %p237 = por %p235, %p236
      %p238 = scmp.ne.s32.totalorder %s224, %s225
      %p239 = scmp.eq.s32.totalorder %s39, 1
      %p240 = por %p238, %p239
      %p242 = scmp.ne.s32.totalorder %s225, %s241
      %p243 = scmp.eq.s32.totalorder %s39, 0
      %p244 = por %p242, %p243
      %s245 = ssub.s32 %s33, %s40
      %p246 = scmp.eq.s32.totalorder %s245, 0
      %s248 = sadd.s32 %s247, 1
      %s249 = scalar_select %p246, %s247, %s248
      %p252 = pneg %p246
      %p253 = scmp.eq.s32.totalorder %s33, 1
      %p254 = por %p252, %p253
      %p255 = scmp.ne.s32.totalorder %s247, %s250
      %p256 = scmp.eq.s32.totalorder %s33, 0
      %p257 = por %p255, %p256
      %p258 = scmp.ne.s32.totalorder %s247, %s250
      %p259 = scmp.eq.s32.totalorder %s38, 1
      %p260 = por %p258, %p259
      %p261 = scmp.ne.s32.totalorder %s250, %s251
      %p262 = scmp.eq.s32.totalorder %s38, 0
      %p263 = por %p261, %p262
      %p264 = scmp.ne.s32.totalorder %s250, %s251
      %p265 = scmp.eq.s32.totalorder %s39, 1
      %p266 = por %p264, %p265
      %p268 = scmp.ne.s32.totalorder %s251, %s267
      %p269 = scmp.eq.s32.totalorder %s39, 0
      %p270 = por %p268, %p269
      %s271 = ssub.s32 %s33, %s40
      %p272 = scmp.eq.s32.totalorder %s271, 0
      %s274 = sadd.s32 %s273, 1
      %s275 = scalar_select %p272, %s273, %s274
      %p278 = pneg %p272
      %p279 = scmp.eq.s32.totalorder %s33, 1
      %p280 = por %p278, %p279
      %p281 = scmp.ne.s32.totalorder %s273, %s276
      %p282 = scmp.eq.s32.totalorder %s33, 0
      %p283 = por %p281, %p282
      %p284 = scmp.ne.s32.totalorder %s273, %s276
      %p285 = scmp.eq.s32.totalorder %s38, 1
      %p286 = por %p284, %p285
      %p287 = scmp.ne.s32.totalorder %s276, %s277
      %p288 = scmp.eq.s32.totalorder %s38, 0
      %p289 = por %p287, %p288
      %p290 = scmp.ne.s32.totalorder %s276, %s277
      %p291 = scmp.eq.s32.totalorder %s39, 1
      %p292 = por %p290, %p291
      %p294 = scmp.ne.s32.totalorder %s277, %s293
      %p295 = scmp.eq.s32.totalorder %s39, 0
      %p296 = por %p294, %p295
      %s297 = ssub.s32 %s33, %s40
      %p298 = scmp.eq.s32.totalorder %s297, 0
      %s300 = sadd.s32 %s299, 1
      %s301 = scalar_select %p298, %s299, %s300
      %p304 = pneg %p298
      %p305 = scmp.eq.s32.totalorder %s33, 1
      %p306 = por %p304, %p305
      %p307 = scmp.ne.s32.totalorder %s299, %s302
      %p308 = scmp.eq.s32.totalorder %s33, 0
      %p309 = por %p307, %p308
      %p310 = scmp.ne.s32.totalorder %s299, %s302
      %p311 = scmp.eq.s32.totalorder %s38, 1
      %p312 = por %p310, %p311
      %p313 = scmp.ne.s32.totalorder %s302, %s303
      %p314 = scmp.eq.s32.totalorder %s38, 0
      %p315 = por %p313, %p314
      %p316 = scmp.ne.s32.totalorder %s302, %s303
      %p317 = scmp.eq.s32.totalorder %s39, 1
      %p318 = por %p316, %p317
      %p320 = scmp.ne.s32.totalorder %s303, %s319
      %p321 = scmp.eq.s32.totalorder %s39, 0
      %p322 = por %p320, %p321
      %s323 = ssub.s32 %s33, %s40
      %p324 = scmp.eq.s32.totalorder %s323, 0
      %s326 = sadd.s32 %s325, 1
      %s327 = scalar_select %p324, %s325, %s326
      %p330 = pneg %p324
      %p331 = scmp.eq.s32.totalorder %s33, 1
      %p332 = por %p330, %p331
      %p333 = scmp.ne.s32.totalorder %s325, %s328
      %p334 = scmp.eq.s32.totalorder %s33, 0
      %p335 = por %p333, %p334
      %p336 = scmp.ne.s32.totalorder %s325, %s328
      %p337 = scmp.eq.s32.totalorder %s38, 1
      %p338 = por %p336, %p337
      %p339 = scmp.ne.s32.totalorder %s328, %s329
      %p340 = scmp.eq.s32.totalorder %s38, 0
      %p341 = por %p339, %p340
      %p342 = scmp.ne.s32.totalorder %s328, %s329
      %p343 = scmp.eq.s32.totalorder %s39, 1
      %p344 = por %p342, %p343
      %p346 = scmp.ne.s32.totalorder %s329, %s345
      %p347 = scmp.eq.s32.totalorder %s39, 0
      %p348 = por %p346, %p347
      %s349 = ssub.s32 %s33, %s40
      %p350 = scmp.eq.s32.totalorder %s349, 0
      %s352 = sadd.s32 %s351, 1
      %s353 = scalar_select %p350, %s351, %s352
      %p356 = pneg %p350
      %p357 = scmp.eq.s32.totalorder %s33, 1
      %p358 = por %p356, %p357
      %p359 = scmp.ne.s32.totalorder %s351, %s354
      %p360 = scmp.eq.s32.totalorder %s33, 0
      %p361 = por %p359, %p360
      %p362 = scmp.ne.s32.totalorder %s351, %s354
      %p363 = scmp.eq.s32.totalorder %s38, 1
      %p364 = por %p362, %p363
      %p365 = scmp.ne.s32.totalorder %s354, %s355
      %p366 = scmp.eq.s32.totalorder %s38, 0
      %p367 = por %p365, %p366
      %p368 = scmp.ne.s32.totalorder %s354, %s355
      %p369 = scmp.eq.s32.totalorder %s39, 1
      %p370 = por %p368, %p369
      %p372 = scmp.ne.s32.totalorder %s355, %s371
      %p373 = scmp.eq.s32.totalorder %s39, 0
      %p374 = por %p372, %p373
      %s375 = ssub.s32 %s33, %s40
      %p376 = scmp.eq.s32.totalorder %s375, 0
      %s378 = sadd.s32 %s377, 1
      %s379 = scalar_select %p376, %s377, %s378
      %p382 = pneg %p376
      %p383 = scmp.eq.s32.totalorder %s33, 1
      %p384 = por %p382, %p383
      %p385 = scmp.ne.s32.totalorder %s377, %s380
      %p386 = scmp.eq.s32.totalorder %s33, 0
      %p387 = por %p385, %p386
      %p388 = scmp.ne.s32.totalorder %s377, %s380
      %p389 = scmp.eq.s32.totalorder %s38, 1
      %p390 = por %p388, %p389
      %p391 = scmp.ne.s32.totalorder %s380, %s381
      %p392 = scmp.eq.s32.totalorder %s38, 0
      %p393 = por %p391, %p392
      %p394 = scmp.ne.s32.totalorder %s380, %s381
      %p395 = scmp.eq.s32.totalorder %s39, 1
      %p396 = por %p394, %p395
      %p398 = scmp.ne.s32.totalorder %s381, %s397
      %p399 = scmp.eq.s32.totalorder %s39, 0
      %p400 = por %p398, %p399
      %s401 = ssub.s32 %s33, %s40
      %p402 = scmp.eq.s32.totalorder %s401, 0
      %s404 = sadd.s32 %s403, 1
      %s405 = scalar_select %p402, %s403, %s404
      %p408 = pneg %p402
      %p409 = scmp.eq.s32.totalorder %s33, 1
      %p410 = por %p408, %p409
      %p411 = scmp.ne.s32.totalorder %s403, %s406
      %p412 = scmp.eq.s32.totalorder %s33, 0
      %p413 = por %p411, %p412
      %p414 = scmp.ne.s32.totalorder %s403, %s406
      %p415 = scmp.eq.s32.totalorder %s38, 1
      %p416 = por %p414, %p415
      %p417 = scmp.ne.s32.totalorder %s406, %s407
      %p418 = scmp.eq.s32.totalorder %s38, 0
      %p419 = por %p417, %p418
      %p420 = scmp.ne.s32.totalorder %s406, %s407
      %p421 = scmp.eq.s32.totalorder %s39, 1
      %p422 = por %p420, %p421
      %p424 = scmp.ne.s32.totalorder %s407, %s423
      %p425 = scmp.eq.s32.totalorder %s39, 0
      %p426 = por %p424, %p425
      %s428 = sadd.s32 %s427, 1
      %p431 = scmp.eq.s32.totalorder %s33, 1
      %p432 = scmp.ne.s32.totalorder %s427, %s429
      %p433 = scmp.eq.s32.totalorder %s33, 0
      %p434 = por %p432, %p433
      %p435 = scmp.ne.s32.totalorder %s427, %s429
      %p436 = scmp.eq.s32.totalorder %s38, 1
      %p437 = por %p435, %p436
      %p438 = scmp.ne.s32.totalorder %s429, %s430
      %p439 = scmp.eq.s32.totalorder %s38, 0
      %p440 = por %p438, %p439
      %p441 = scmp.ne.s32.totalorder %s429, %s430
      %p442 = scmp.eq.s32.totalorder %s39, 1
      %p443 = por %p441, %p442
      %p445 = scmp.ne.s32.totalorder %s430, %s444
      %p446 = scmp.eq.s32.totalorder %s39, 0
      %p447 = por %p445, %p446
      %s448 = ssub.s32 %s33, %s40
      %p449 = scmp.eq.s32.totalorder %s448, 0
      %s451 = sadd.s32 %s450, 1
      %s452 = scalar_select %p449, %s450, %s451
      %p455 = pneg %p449
      %p456 = scmp.eq.s32.totalorder %s33, 1
      %p457 = por %p455, %p456
      %p458 = scmp.ne.s32.totalorder %s450, %s453
      %p459 = scmp.eq.s32.totalorder %s33, 0
      %p460 = por %p458, %p459
      %p461 = scmp.ne.s32.totalorder %s450, %s453
      %p462 = scmp.eq.s32.totalorder %s38, 1
      %p463 = por %p461, %p462
      %p464 = scmp.ne.s32.totalorder %s453, %s454
      %p465 = scmp.eq.s32.totalorder %s38, 0
      %p466 = por %p464, %p465
      %p467 = scmp.ne.s32.totalorder %s453, %s454
      %p468 = scmp.eq.s32.totalorder %s39, 1
      %p469 = por %p467, %p468
      %p471 = scmp.ne.s32.totalorder %s454, %s470
      %p472 = scmp.eq.s32.totalorder %s39, 0
      %p473 = por %p471, %p472
      %s474 = ssub.s32 %s33, %s40
      %p475 = scmp.eq.s32.totalorder %s474, 0
      %s477 = sadd.s32 %s476, 1
      %s478 = scalar_select %p475, %s476, %s477
      %p481 = pneg %p475
      %p482 = scmp.eq.s32.totalorder %s33, 1
      %p483 = por %p481, %p482
      %p484 = scmp.ne.s32.totalorder %s476, %s479
      %p485 = scmp.eq.s32.totalorder %s33, 0
      %p486 = por %p484, %p485
      %p487 = scmp.ne.s32.totalorder %s476, %s479
      %p488 = scmp.eq.s32.totalorder %s38, 1
      %p489 = por %p487, %p488
      %p490 = scmp.ne.s32.totalorder %s479, %s480
      %p491 = scmp.eq.s32.totalorder %s38, 0
      %p492 = por %p490, %p491
      %p493 = scmp.ne.s32.totalorder %s479, %s480
      %p494 = scmp.eq.s32.totalorder %s39, 1
      %p495 = por %p493, %p494
      %p497 = scmp.ne.s32.totalorder %s480, %s496
      %p498 = scmp.eq.s32.totalorder %s39, 0
      %p499 = por %p497, %p498
      %s500 = ssub.s32 %s33, %s40
      %p501 = scmp.eq.s32.totalorder %s500, 0
      %s503 = sadd.s32 %s502, 1
      %s504 = scalar_select %p501, %s502, %s503
      %p507 = pneg %p501
      %p508 = scmp.eq.s32.totalorder %s33, 1
      %p509 = por %p507, %p508
      %p510 = scmp.ne.s32.totalorder %s502, %s505
      %p511 = scmp.eq.s32.totalorder %s33, 0
      %p512 = por %p510, %p511
      %p513 = scmp.ne.s32.totalorder %s502, %s505
      %p514 = scmp.eq.s32.totalorder %s38, 1
      %p515 = por %p513, %p514
      %p516 = scmp.ne.s32.totalorder %s505, %s506
      %p517 = scmp.eq.s32.totalorder %s38, 0
      %p518 = por %p516, %p517
      %p519 = scmp.ne.s32.totalorder %s505, %s506
      %p520 = scmp.eq.s32.totalorder %s39, 1
      %p521 = por %p519, %p520
      %p523 = scmp.ne.s32.totalorder %s506, %s522
      %p524 = scmp.eq.s32.totalorder %s39, 0
      %p525 = por %p523, %p524
      %s526 = ssub.s32 %s33, %s40
      %p527 = scmp.eq.s32.totalorder %s526, 0
      %s529 = sadd.s32 %s528, 1
      %s530 = scalar_select %p527, %s528, %s529
      %p533 = pneg %p527
      %p534 = scmp.eq.s32.totalorder %s33, 1
      %p535 = por %p533, %p534
      %p536 = scmp.ne.s32.totalorder %s528, %s531
      %p537 = scmp.eq.s32.totalorder %s33, 0
      %p538 = por %p536, %p537
      %p539 = scmp.ne.s32.totalorder %s528, %s531
      %p540 = scmp.eq.s32.totalorder %s38, 1
      %p541 = por %p539, %p540
      %p542 = scmp.ne.s32.totalorder %s531, %s532
      %p543 = scmp.eq.s32.totalorder %s38, 0
      %p544 = por %p542, %p543
      %p545 = scmp.ne.s32.totalorder %s531, %s532
      %p546 = scmp.eq.s32.totalorder %s39, 1
      %p547 = por %p545, %p546
      %p549 = scmp.ne.s32.totalorder %s532, %s548
      %p550 = scmp.eq.s32.totalorder %s39, 0
      %p551 = por %p549, %p550
      %s553 = sadd.s32 %s552, 1
      %p556 = scmp.eq.s32.totalorder %s33, 1
      %p557 = scmp.ne.s32.totalorder %s552, %s554
      %p558 = scmp.eq.s32.totalorder %s33, 0
      %p559 = por %p557, %p558
      %p560 = scmp.ne.s32.totalorder %s552, %s554
      %p561 = scmp.eq.s32.totalorder %s38, 1
      %p562 = por %p560, %p561
      %p563 = scmp.ne.s32.totalorder %s554, %s555
      %p564 = scmp.eq.s32.totalorder %s38, 0
      %p565 = por %p563, %p564
      %p566 = scmp.ne.s32.totalorder %s554, %s555
      %p567 = scmp.eq.s32.totalorder %s39, 1
      %p568 = por %p566, %p567
      %p570 = scmp.ne.s32.totalorder %s555, %s569
      %p571 = scmp.eq.s32.totalorder %s39, 0
      %p572 = por %p570, %p571
      %p573 = scmp.le.s32.totalorder 1, %s33
      %p574 = scmp.lt.s32.totalorder %s33, 3
      %p575 = pnand %p573, %p574
      %p576 = pneg %p575
      // Predicated region
      $region9: #{tpu_custom_call.1} parent=5 // pred_check
        _
      $region10: #{tpu_custom_call.1} parent=5 // pred_check_branch
        %578 = sbr.rel (%p575) target = $region12
      $region11: #{tpu_custom_call.1} parent=5 // pred_region
        %s579 = ssub.s32 %s33, 1
        // Predicated region
        $region13: #{tpu_custom_call.1} parent=11 // pred_check
          %p580 = pneg %p54
        $region14: #{tpu_custom_call.1} parent=11 // pred_check_branch
          %582 = sbr.rel (%p580) target = $region16
        $region15: #{tpu_custom_call.1} parent=11 // pred_region
          %s584 = ssub.s32 256, 256
          %585 = vsyncadd [#allocation3], %s584
          %s586 = sshll.u32 [#allocation2], 4
          %s587 = int_to_ptr.vmem [resolvable:$true] %s586
          %592 = dma.hbm_to_vmem [thread:$0]  %s0, 256, %s587, [#allocation3], 128, 128, 8
        $region16: #{tpu_custom_call.1} parent=11 // pred_fallthru
          _
        // Predicated region
        $region17: #{tpu_custom_call.1} parent=11 // pred_check
          %p593 = pneg %p75
        $region18: #{tpu_custom_call.1} parent=11 // pred_check_branch
          %595 = sbr.rel (%p593) target = $region20
        $region19: #{tpu_custom_call.1} parent=11 // pred_region
          %s597 = ssub.s32 256, 256
          %598 = vsyncadd [#allocation7], %s597
          %s599 = sshll.u32 [#allocation6], 4
          %s600 = int_to_ptr.vmem [resolvable:$true] %s599
          %605 = dma.hbm_to_vmem [thread:$0]  %s1, 256, %s600, [#allocation7], 128, 128, 8
        $region20: #{tpu_custom_call.1} parent=11 // pred_fallthru
          _
        // Predicated region
        $region21: #{tpu_custom_call.1} parent=11 // pred_check
          %p606 = pneg %p96
        $region22: #{tpu_custom_call.1} parent=11 // pred_check_branch
          %608 = sbr.rel (%p606) target = $region24
        $region23: #{tpu_custom_call.1} parent=11 // pred_region
          %s610 = ssub.s32 256, 256
          %611 = vsyncadd [#allocation7], %s610
          %s612 = sshll.u32 [#allocation8], 4
          %s613 = int_to_ptr.vmem [resolvable:$true] %s612
          %618 = dma.hbm_to_vmem [thread:$0]  %s2, 256, %s613, [#allocation7], 64, 64, 4
        $region24: #{tpu_custom_call.1} parent=11 // pred_fallthru
          _
        // Predicated region
        $region25: #{tpu_custom_call.1} parent=11 // pred_check
          %p619 = pneg %p117
        $region26: #{tpu_custom_call.1} parent=11 // pred_check_branch
          %621 = sbr.rel (%p619) target = $region28
        $region27: #{tpu_custom_call.1} parent=11 // pred_region
          %s623 = ssub.s32 16, 16
          %624 = vsyncadd [#allocation10], %s623
          %s626 = sshll.u32 [#allocation9], 4
          %s627 = int_to_ptr.vmem [resolvable:$true] %s626
          %629 = dma.hbm_to_vmem [thread:$0]  %s3, 16, %s627, [#allocation10]
        $region28: #{tpu_custom_call.1} parent=11 // pred_fallthru
          _
        // Predicated region
        $region29: #{tpu_custom_call.1} parent=11 // pred_check
          %p630 = pneg %p138
        $region30: #{tpu_custom_call.1} parent=11 // pred_check_branch
          %632 = sbr.rel (%p630) target = $region32
        $region31: #{tpu_custom_call.1} parent=11 // pred_region
          %s634 = ssub.s32 256, 256
          %635 = vsyncadd [#allocation10], %s634
          %s636 = sshll.u32 [#allocation11], 4
          %s637 = int_to_ptr.vmem [resolvable:$true] %s636
          %642 = dma.hbm_to_vmem [thread:$0]  %s4, 256, %s637, [#allocation10], 64, 64, 4
        $region32: #{tpu_custom_call.1} parent=11 // pred_fallthru
          _
        // Predicated region
        $region33: #{tpu_custom_call.1} parent=11 // pred_check
          %p643 = pneg %p159
        $region34: #{tpu_custom_call.1} parent=11 // pred_check_branch
          %645 = sbr.rel (%p643) target = $region36
        $region35: #{tpu_custom_call.1} parent=11 // pred_region
          %s647 = ssub.s32 16, 16
          %648 = vsyncadd [#allocation13], %s647
          %s650 = sshll.u32 [#allocation12], 4
          %s651 = int_to_ptr.vmem [resolvable:$true] %s650
          %653 = dma.hbm_to_vmem [thread:$0]  %s5, 16, %s651, [#allocation13]
        $region36: #{tpu_custom_call.1} parent=11 // pred_fallthru
          _
        // Predicated region
        $region37: #{tpu_custom_call.1} parent=11 // pred_check
          %p654 = pneg %p440
        $region38: #{tpu_custom_call.1} parent=11 // pred_check_branch
          %656 = sbr.rel (%p654) target = $region40
        $region39: #{tpu_custom_call.1} parent=11 // pred_region
          %s658 = ssub.s32 16, 16
          %659 = vsyncadd [#allocation5], %s658
          %s661 = sshll.u32 %s16, 4
          %s662 = int_to_ptr.vmem [resolvable:$true] %s661
          %664 = dma.vmem_to_smem %s662, 16, [#allocation14], [#allocation5]
        $region40: #{tpu_custom_call.1} parent=11 // pred_fallthru
          _
      $region12: #{tpu_custom_call.1} parent=5 // pred_fallthru
        _
      %p665 = scmp.lt.s32.totalorder %s33, 2
      // Predicated region
      $region41: #{tpu_custom_call.1} parent=5 // pred_check
        %p666 = pneg %p665
      $region42: #{tpu_custom_call.1} parent=5 // pred_check_branch
        %668 = sbr.rel (%p666) target = $region44
      $region43: #{tpu_custom_call.1} parent=5 // pred_region
        // Predicated region
        $region45: #{tpu_custom_call.1} parent=43 // pred_check
          %p669 = pneg %p179
        $region46: #{tpu_custom_call.1} parent=43 // pred_check_branch
          %671 = sbr.rel (%p669) target = $region48
        $region47: #{tpu_custom_call.1} parent=43 // pred_region
          %p672 = scmp.lt.s32.totalorder %s33, 1
          %s673 = scalar_select %p672, %s33, 1
          %s674 = smul.addr %s673, 4
          %s675 = smul.addr %s674, 4
          %s676 = scalar_lea.vmem %s6, %s675
        $region48: #{tpu_custom_call.1} parent=43 // pred_fallthru
          _
        // Predicated region
        $region49: #{tpu_custom_call.1} parent=43 // pred_check
          %p677 = pneg %p205
        $region50: #{tpu_custom_call.1} parent=43 // pred_check_branch
          %679 = sbr.rel (%p677) target = $region52
        $region51: #{tpu_custom_call.1} parent=43 // pred_region
          %p680 = scmp.lt.s32.totalorder %s33, 1
          %s681 = scalar_select %p680, %s33, 1
          %s682 = scalar_lea.vmem %s7, %s681
        $region52: #{tpu_custom_call.1} parent=43 // pred_fallthru
          _
        // Predicated region
        $region53: #{tpu_custom_call.1} parent=43 // pred_check
          %p683 = pneg %p231
        $region54: #{tpu_custom_call.1} parent=43 // pred_check_branch
          %685 = sbr.rel (%p683) target = $region56
        $region55: #{tpu_custom_call.1} parent=43 // pred_region
          %p686 = scmp.lt.s32.totalorder %s33, 1
          %s687 = scalar_select %p686, %s33, 1
          %s688 = smul.addr %s687, 4
          %s689 = smul.addr %s688, 4
          %s690 = scalar_lea.vmem %s8, %s689
        $region56: #{tpu_custom_call.1} parent=43 // pred_fallthru
          _
        // Predicated region
        $region57: #{tpu_custom_call.1} parent=43 // pred_check
          %p691 = pneg %p257
        $region58: #{tpu_custom_call.1} parent=43 // pred_check_branch
          %693 = sbr.rel (%p691) target = $region60
        $region59: #{tpu_custom_call.1} parent=43 // pred_region
          %p694 = scmp.lt.s32.totalorder %s33, 1
          %s695 = scalar_select %p694, %s33, 1
          %s696 = scalar_lea.vmem %s9, %s695
        $region60: #{tpu_custom_call.1} parent=43 // pred_fallthru
          _
        // Predicated region
        $region61: #{tpu_custom_call.1} parent=43 // pred_check
          %p697 = pneg %p283
        $region62: #{tpu_custom_call.1} parent=43 // pred_check_branch
          %699 = sbr.rel (%p697) target = $region64
        $region63: #{tpu_custom_call.1} parent=43 // pred_region
          %p700 = scmp.lt.s32.totalorder %s33, 1
          %s701 = scalar_select %p700, %s33, 1
          %s702 = smul.addr %s701, 4
          %s703 = smul.addr %s702, 8
          %s704 = scalar_lea.vmem %s10, %s703
        $region64: #{tpu_custom_call.1} parent=43 // pred_fallthru
          _
        // Predicated region
        $region65: #{tpu_custom_call.1} parent=43 // pred_check
          %p705 = pneg %p309
        $region66: #{tpu_custom_call.1} parent=43 // pred_check_branch
          %707 = sbr.rel (%p705) target = $region68
        $region67: #{tpu_custom_call.1} parent=43 // pred_region
          %p708 = scmp.lt.s32.totalorder %s33, 1
          %s709 = scalar_select %p708, %s33, 1
          %s710 = scalar_lea.vmem %s11, %s709
        $region68: #{tpu_custom_call.1} parent=43 // pred_fallthru
          _
        // Predicated region
        $region69: #{tpu_custom_call.1} parent=43 // pred_check
          %p711 = pneg %p335
        $region70: #{tpu_custom_call.1} parent=43 // pred_check_branch
          %713 = sbr.rel (%p711) target = $region72
        $region71: #{tpu_custom_call.1} parent=43 // pred_region
          %p714 = scmp.lt.s32.totalorder %s33, 1
          %s715 = scalar_select %p714, %s33, 1
          %s716 = scalar_lea.vmem %s12, %s715
        $region72: #{tpu_custom_call.1} parent=43 // pred_fallthru
          _
        // Predicated region
        $region73: #{tpu_custom_call.1} parent=43 // pred_check
          %p717 = pneg %p361
        $region74: #{tpu_custom_call.1} parent=43 // pred_check_branch
          %719 = sbr.rel (%p717) target = $region76
        $region75: #{tpu_custom_call.1} parent=43 // pred_region
          %p720 = scmp.lt.s32.totalorder %s33, 1
          %s721 = scalar_select %p720, %s33, 1
          %s722 = scalar_lea.vmem %s13, %s721
        $region76: #{tpu_custom_call.1} parent=43 // pred_fallthru
          _
        // Predicated region
        $region77: #{tpu_custom_call.1} parent=43 // pred_check
          %p723 = pneg %p387
        $region78: #{tpu_custom_call.1} parent=43 // pred_check_branch
          %725 = sbr.rel (%p723) target = $region80
        $region79: #{tpu_custom_call.1} parent=43 // pred_region
          %p726 = scmp.lt.s32.totalorder %s33, 1
          %s727 = scalar_select %p726, %s33, 1
          %s728 = smul.addr %s727, 4
          %s729 = smul.addr %s728, 4
          %s730 = scalar_lea.vmem %s14, %s729
        $region80: #{tpu_custom_call.1} parent=43 // pred_fallthru
          _
        // Predicated region
        $region81: #{tpu_custom_call.1} parent=43 // pred_check
          %p731 = pneg %p413
        $region82: #{tpu_custom_call.1} parent=43 // pred_check_branch
          %733 = sbr.rel (%p731) target = $region84
        $region83: #{tpu_custom_call.1} parent=43 // pred_region
          %p734 = scmp.lt.s32.totalorder %s33, 1
          %s735 = scalar_select %p734, %s33, 1
          %s736 = scalar_lea.vmem %s15, %s735
        $region84: #{tpu_custom_call.1} parent=43 // pred_fallthru
          _
        // Predicated region
        $region85: #{tpu_custom_call.1} parent=43 // pred_check
          %p737 = pneg %p460
        $region86: #{tpu_custom_call.1} parent=43 // pred_check_branch
          %739 = sbr.rel (%p737) target = $region88
        $region87: #{tpu_custom_call.1} parent=43 // pred_region
          %p740 = scmp.lt.s32.totalorder %s33, 1
          %s741 = scalar_select %p740, %s33, 1
          %s742 = smul.addr %s741, 16
          %s743 = smul.addr %s742, 4
          %s744 = scalar_lea.vmem %s17, %s743
        $region88: #{tpu_custom_call.1} parent=43 // pred_fallthru
          _
        // Predicated region
        $region89: #{tpu_custom_call.1} parent=43 // pred_check
          %p745 = pneg %p486
        $region90: #{tpu_custom_call.1} parent=43 // pred_check_branch
          %747 = sbr.rel (%p745) target = $region92
        $region91: #{tpu_custom_call.1} parent=43 // pred_region
          %p748 = scmp.lt.s32.totalorder %s33, 1
          %s749 = scalar_select %p748, %s33, 1
          %s750 = scalar_lea.vmem %s18, %s749
        $region92: #{tpu_custom_call.1} parent=43 // pred_fallthru
          _
        // Predicated region
        $region93: #{tpu_custom_call.1} parent=43 // pred_check
          %p751 = pneg %p512
        $region94: #{tpu_custom_call.1} parent=43 // pred_check_branch
          %753 = sbr.rel (%p751) target = $region96
        $region95: #{tpu_custom_call.1} parent=43 // pred_region
          %p754 = scmp.lt.s32.totalorder %s33, 1
          %s755 = scalar_select %p754, %s33, 1
          %s756 = scalar_lea.vmem %s19, %s755
        $region96: #{tpu_custom_call.1} parent=43 // pred_fallthru
          _
        // Predicated region
        $region97: #{tpu_custom_call.1} parent=43 // pred_check
          %p757 = pneg %p538
        $region98: #{tpu_custom_call.1} parent=43 // pred_check_branch
          %759 = sbr.rel (%p757) target = $region100
        $region99: #{tpu_custom_call.1} parent=43 // pred_region
          %p760 = scmp.lt.s32.totalorder %s33, 1
          %s761 = scalar_select %p760, %s33, 1
          %s762 = scalar_lea.vmem %s20, %s761
        $region100: #{tpu_custom_call.1} parent=43 // pred_fallthru
          _
      $region44: #{tpu_custom_call.1} parent=5 // pred_fallthru
        _
      %p763 = scmp.le.s32.totalorder 1, %s33
      %p764 = scmp.lt.s32.totalorder %s33, 3
      %p765 = pnand %p763, %p764
      %p766 = pneg %p765
      // Predicated region
      $region101: #{tpu_custom_call.1} parent=5 // pred_check
        _
      $region102: #{tpu_custom_call.1} parent=5 // pred_check_branch
        %768 = sbr.rel (%p765) target = $region104
      $region103: #{tpu_custom_call.1} parent=5 // pred_region
        %s769 = ssub.s32 %s33, 1
        // Predicated region
        $region105: #{tpu_custom_call.1} parent=103 // pred_check
          %p770 = pneg %p54
        $region106: #{tpu_custom_call.1} parent=103 // pred_check_branch
          %772 = sbr.rel (%p770) target = $region108
        $region107: #{tpu_custom_call.1} parent=103 // pred_region
          %773 = dma.done [#allocation3], 256
        $region108: #{tpu_custom_call.1} parent=103 // pred_fallthru
          _
        // Predicated region
        $region109: #{tpu_custom_call.1} parent=103 // pred_check
          %p774 = pneg %p75
        $region110: #{tpu_custom_call.1} parent=103 // pred_check_branch
          %776 = sbr.rel (%p774) target = $region112
        $region111: #{tpu_custom_call.1} parent=103 // pred_region
          %777 = dma.done [#allocation7], 256
        $region112: #{tpu_custom_call.1} parent=103 // pred_fallthru
          _
        // Predicated region
        $region113: #{tpu_custom_call.1} parent=103 // pred_check
          %p778 = pneg %p96
        $region114: #{tpu_custom_call.1} parent=103 // pred_check_branch
          %780 = sbr.rel (%p778) target = $region116
        $region115: #{tpu_custom_call.1} parent=103 // pred_region
          %781 = dma.done [#allocation7], 256
        $region116: #{tpu_custom_call.1} parent=103 // pred_fallthru
          _
        // Predicated region
        $region117: #{tpu_custom_call.1} parent=103 // pred_check
          %p782 = pneg %p117
        $region118: #{tpu_custom_call.1} parent=103 // pred_check_branch
          %784 = sbr.rel (%p782) target = $region120
        $region119: #{tpu_custom_call.1} parent=103 // pred_region
          %785 = dma.done [#allocation10], 16
        $region120: #{tpu_custom_call.1} parent=103 // pred_fallthru
          _
        // Predicated region
        $region121: #{tpu_custom_call.1} parent=103 // pred_check
          %p786 = pneg %p138
        $region122: #{tpu_custom_call.1} parent=103 // pred_check_branch
          %788 = sbr.rel (%p786) target = $region124
        $region123: #{tpu_custom_call.1} parent=103 // pred_region
          %789 = dma.done [#allocation10], 256
        $region124: #{tpu_custom_call.1} parent=103 // pred_fallthru
          _
        // Predicated region
        $region125: #{tpu_custom_call.1} parent=103 // pred_check
          %p790 = pneg %p159
        $region126: #{tpu_custom_call.1} parent=103 // pred_check_branch
          %792 = sbr.rel (%p790) target = $region128
        $region127: #{tpu_custom_call.1} parent=103 // pred_region
          %793 = dma.done [#allocation13], 16
        $region128: #{tpu_custom_call.1} parent=103 // pred_fallthru
          _
        // Predicated region
        $region129: #{tpu_custom_call.1} parent=103 // pred_check
          %p794 = pneg %p440
        $region130: #{tpu_custom_call.1} parent=103 // pred_check_branch
          %796 = sbr.rel (%p794) target = $region132
        $region131: #{tpu_custom_call.1} parent=103 // pred_region
          %797 = dma.done [#allocation5], 16
        $region132: #{tpu_custom_call.1} parent=103 // pred_fallthru
          _
        %798 = sfence
        %p799 = pneg %p54
        %p800 = pneg %p51
        %p801 = pneg %p75
        %p802 = pneg %p72
        %p803 = pneg %p96
        %p804 = pneg %p93
        %p805 = pneg %p117
        %p806 = pneg %p114
        %p807 = pneg %p138
        %p808 = pneg %p135
        %p809 = pneg %p159
        %p810 = pneg %p156
        %p811 = scmp.lt.s32.totalorder %s38, 1
        %s812 = scalar_select %p811, %s38, 1
        %s813 = smul.addr %s812, 4
        %s814 = smul.addr %s813, 4
        %s815 = scalar_lea.vmem %s6, %s814
        %p816 = pneg %p185
        %p817 = pneg %p182
        %p818 = scmp.lt.s32.totalorder %s38, 1
        %s819 = scalar_select %p818, %s38, 1
        %s820 = scalar_lea.vmem %s7, %s819
        %p821 = pneg %p211
        %p822 = pneg %p208
        %p823 = scmp.lt.s32.totalorder %s38, 1
        %s824 = scalar_select %p823, %s38, 1
        %s825 = smul.addr %s824, 4
        %s826 = smul.addr %s825, 4
        %s827 = scalar_lea.vmem %s8, %s826
        %p828 = pneg %p237
        %p829 = pneg %p234
        %p830 = scmp.lt.s32.totalorder %s38, 1
        %s831 = scalar_select %p830, %s38, 1
        %s832 = scalar_lea.vmem %s9, %s831
        %p833 = pneg %p263
        %p834 = pneg %p260
        %p835 = scmp.lt.s32.totalorder %s38, 1
        %s836 = scalar_select %p835, %s38, 1
        %s837 = smul.addr %s836, 4
        %s838 = smul.addr %s837, 8
        %s839 = scalar_lea.vmem %s10, %s838
        %p840 = pneg %p289
        %p841 = pneg %p286
        %p842 = scmp.lt.s32.totalorder %s38, 1
        %s843 = scalar_select %p842, %s38, 1
        %s844 = scalar_lea.vmem %s11, %s843
        %p845 = pneg %p315
        %p846 = pneg %p312
        %p847 = scmp.lt.s32.totalorder %s38, 1
        %s848 = scalar_select %p847, %s38, 1
        %s849 = scalar_lea.vmem %s12, %s848
        %p850 = pneg %p341
        %p851 = pneg %p338
        %p852 = scmp.lt.s32.totalorder %s38, 1
        %s853 = scalar_select %p852, %s38, 1
        %s854 = scalar_lea.vmem %s13, %s853
        %p855 = pneg %p367
        %p856 = pneg %p364
        %p857 = scmp.lt.s32.totalorder %s38, 1
        %s858 = scalar_select %p857, %s38, 1
        %s859 = smul.addr %s858, 4
        %s860 = smul.addr %s859, 4
        %s861 = scalar_lea.vmem %s14, %s860
        %p862 = pneg %p393
        %p863 = pneg %p390
        %p864 = scmp.lt.s32.totalorder %s38, 1
        %s865 = scalar_select %p864, %s38, 1
        %s866 = scalar_lea.vmem %s15, %s865
        %p867 = pneg %p419
        %p868 = pneg %p416
        %p869 = pneg %p440
        %p870 = pneg %p437
        %p871 = scmp.lt.s32.totalorder %s38, 1
        %s872 = scalar_select %p871, %s38, 1
        %s873 = smul.addr %s872, 16
        %s874 = smul.addr %s873, 4
        %s875 = scalar_lea.vmem %s17, %s874
        %p876 = pneg %p466
        %p877 = pneg %p463
        %p878 = scmp.lt.s32.totalorder %s38, 1
        %s879 = scalar_select %p878, %s38, 1
        %s880 = scalar_lea.vmem %s18, %s879
        %p881 = pneg %p492
        %p882 = pneg %p489
        %p883 = scmp.lt.s32.totalorder %s38, 1
        %s884 = scalar_select %p883, %s38, 1
        %s885 = scalar_lea.vmem %s19, %s884
        %p886 = pneg %p518
        %p887 = pneg %p515
        %p888 = scmp.lt.s32.totalorder %s38, 1
        %s889 = scalar_select %p888, %s38, 1
        %s890 = scalar_lea.vmem %s20, %s889
        %p891 = pneg %p544
        %p892 = pneg %p541
        %p893 = pneg %p565
        %p894 = pneg %p562
        %p895 = scmp.lt.s32.totalorder %s38, 1
        %s896 = scalar_select %p895, %s38, 1
        %s897 = smul.addr %s896, 4
        %s898 = smul.addr %s897, 4
        %s899 = scalar_lea.vmem %s6, %s898
        %p900 = scmp.lt.s32.totalorder %s38, 1
        %s901 = scalar_select %p900, %s38, 1
        %s902 = scalar_lea.vmem %s7, %s901
        %p903 = scmp.lt.s32.totalorder %s38, 1
        %s904 = scalar_select %p903, %s38, 1
        %s905 = smul.addr %s904, 4
        %s906 = smul.addr %s905, 4
        %s907 = scalar_lea.vmem %s8, %s906
        %p908 = scmp.lt.s32.totalorder %s38, 1
        %s909 = scalar_select %p908, %s38, 1
        %s910 = scalar_lea.vmem %s9, %s909
        %p911 = scmp.lt.s32.totalorder %s38, 1
        %s912 = scalar_select %p911, %s38, 1
        %s913 = smul.addr %s912, 4
        %s914 = smul.addr %s913, 8
        %s915 = scalar_lea.vmem %s10, %s914
        %p916 = scmp.lt.s32.totalorder %s38, 1
        %s917 = scalar_select %p916, %s38, 1
        %s918 = scalar_lea.vmem %s11, %s917
        %p919 = scmp.lt.s32.totalorder %s38, 1
        %s920 = scalar_select %p919, %s38, 1
        %s921 = scalar_lea.vmem %s12, %s920
        %p922 = scmp.lt.s32.totalorder %s38, 1
        %s923 = scalar_select %p922, %s38, 1
        %s924 = scalar_lea.vmem %s13, %s923
        %p925 = scmp.lt.s32.totalorder %s38, 1
        %s926 = scalar_select %p925, %s38, 1
        %s927 = smul.addr %s926, 4
        %s928 = smul.addr %s927, 4
        %s929 = scalar_lea.vmem %s14, %s928
        %p930 = scmp.lt.s32.totalorder %s38, 1
        %s931 = scalar_select %p930, %s38, 1
        %s932 = scalar_lea.vmem %s15, %s931
        %p933 = scmp.lt.s32.totalorder %s38, 1
        %s934 = scalar_select %p933, %s38, 1
        %s935 = smul.addr %s934, 16
        %s936 = smul.addr %s935, 4
        %s937 = scalar_lea.vmem %s17, %s936
        %p938 = scmp.lt.s32.totalorder %s38, 1
        %s939 = scalar_select %p938, %s38, 1
        %s940 = scalar_lea.vmem %s18, %s939
        %p941 = scmp.lt.s32.totalorder %s38, 1
        %s942 = scalar_select %p941, %s38, 1
        %s943 = scalar_lea.vmem %s19, %s942
        %p944 = scmp.lt.s32.totalorder %s38, 1
        %s945 = scalar_select %p944, %s38, 1
        %s946 = scalar_lea.vmem %s20, %s945
        %p948 = scmp.eq.s32.totalorder %s38, 0
        // Predicated region
        $region133: #{tpu_custom_call.1} parent=103 // pred_check
          %p949 = pneg %p948
        $region134: #{tpu_custom_call.1} parent=103 // pred_check_branch
          %951 = sbr.rel (%p949) target = $region136
        $region135: #{tpu_custom_call.1} parent=103 // pred_region
          %v952 = vld [vmem:[#allocation2] sm:$0xff]
          %v953 = vld [vmem:[#allocation2 + $0x8] sm:$0xff]
          %vm954 = vcmask 261120
          %955 = vst.msk [vmem:[#allocation15] sm:$0xff] %vm954, %v952
          %956 = vst.msk [vmem:[#allocation15 + $0x8] sm:$0xff] %vm954, %v953
        $region136: #{tpu_custom_call.1} parent=103 // pred_fallthru
          _
        %v957 = vld [vmem:[#allocation15] sm:$0xff]
        %v958 = vld [vmem:[#allocation15 + $0x8] sm:$0xff]
        %v959 = vld [vmem:[#allocation6] sm:$0xff]
        %v960 = vld [vmem:[#allocation6 + $0x8] sm:$0xff]
        %v961 = vpack.c.bf16 %v958, %v957
        %v962 = vld [vmem:[#allocation8] sm:$0xf]
        %v963 = vld [vmem:[#allocation8 + $0x4] sm:$0xf]
        %v964 = vld [vmem:[#allocation8 + $0x8] sm:$0xf]
        %v965 = vld [vmem:[#allocation8 + $0xc] sm:$0xf]
        %v966 = vld [vmem:[#allocation9] sm:$0x1]
        %v968 = vlaneseq
        %v969 = vshrl.u32 %v968, 7
        %v970 = vsub.s32 0, %v969
        %v971 = vrot.slane %v966, %v970
        %v977 = vunpack.c.l.b16 %v962
        %v978 = vunpack.c.l.b16 %v963
        %v979 = vunpack.c.l.b16 %v964
        %v980 = vunpack.c.l.b16 %v965
        %v981 = vpack.c.b16 %v978, %v977
        %v982 = vpack.c.b16 %v980, %v979
        %vm985 = vcmask 261120
        %v987 = vsel %vm985, %v961, 0
        %989 = vmatprep.subr.bf16.mxu0 0
        %990 = vmatpush1.bf16.msra.mxu0 %v981
        %991 = vmatprep.subr.bf16.mxu0 0
        %992 = vmatpush1.bf16.msra.mxu0 %v982
        %993 = vmatprep.subr.bf16.mxu0 0
        %994 = vmatpush1.bf16.msra.mxu0 0
        %995 = vmatprep.subr.bf16.mxu0 0
        %996 = vmatpush1.bf16.msra.mxu0 0
        %997 = vmatprep.subr.bf16.mxu0 0
        %998 = vmatpush1.bf16.msra.mxu0 0
        %999 = vmatprep.subr.bf16.mxu0 0
        %1000 = vmatpush1.bf16.msra.mxu0 0
        %1001 = vmatprep.subr.bf16.mxu0 0
        %1002 = vmatpush1.bf16.msra.mxu0 0
        %1003 = vmatprep.subr.bf16.mxu0 0
        %1004 = vmatpush1.bf16.msra.mxu0 0
        %1005 = vmatprep.subr.bf16.mxu0 0
        %1006 = vmatpush1.bf16.msra.mxu0 0
        %1007 = vmatprep.subr.bf16.mxu0 0
        %1008 = vmatpush1.bf16.msra.mxu0 0
        %1009 = vmatprep.subr.bf16.mxu0 0
        %1010 = vmatpush1.bf16.msra.mxu0 0
        %1011 = vmatprep.subr.bf16.mxu0 0
        %1012 = vmatpush1.bf16.msra.mxu0 0
        %1013 = vmatprep.subr.bf16.mxu0 0
        %1014 = vmatpush1.bf16.msra.mxu0 0
        %1015 = vmatprep.subr.bf16.mxu0 0
        %1016 = vmatpush1.bf16.msra.mxu0 0
        %1017 = vmatprep.subr.bf16.mxu0 0
        %1018 = vmatpush1.bf16.msra.mxu0 0
        %1019 = vmatprep.subr.bf16.mxu0 0
        %1020 = vmatpush1.bf16.msra.mxu0 0
        %1021 = vmatprep.mubr.bf16.mxu0 0
        %1022 = vmatmul.mubr.bf16.gmra.mrb[0].mxu0 %v987
        %v1023 = vpop.f32.mrb[0].mxu0
        %v1024 = vadd.f32 %v971, %v1023
        %v1025 = vpop.f32.mrb[0].mxu0
        %v1026 = vpop.f32.mrb[0].mxu0
        %v1027 = vadd.f32 %v971, %v1026
        %v1028 = vpop.f32.mrb[0].mxu0
        %1029 = vdwg.mxu0
        %v1030 = vmax.f32 %v1024, 0.0
        %v1031 = vmax.f32 %v1027, 0.0
        %v1032 = vpack.c.bf16 %v1031, %v1030
        %v1033 = vld [vmem:[#allocation11] sm:$0xf]
        %v1034 = vld [vmem:[#allocation11 + $0x4] sm:$0xf]
        %v1035 = vld [vmem:[#allocation11 + $0x8] sm:$0xf]
        %v1036 = vld [vmem:[#allocation11 + $0xc] sm:$0xf]
        %v1037 = vld [vmem:[#allocation12] sm:$0x1]
        %v1039 = vlaneseq
        %v1040 = vshrl.u32 %v1039, 7
        %v1041 = vsub.s32 0, %v1040
        %v1042 = vrot.slane %v1037, %v1041
        %v1048 = vunpack.c.l.b16 %v1033
        %v1049 = vunpack.c.l.b16 %v1034
        %v1050 = vunpack.c.l.b16 %v1035
        %v1051 = vunpack.c.l.b16 %v1036
        %v1052 = vpack.c.b16 %v1049, %v1048
        %v1053 = vpack.c.b16 %v1051, %v1050
        %v1057 = vsel %vm985, %v1032, 0
        %1059 = vmatprep.subr.bf16.mxu0 0
        %1060 = vmatpush1.bf16.msra.mxu0 %v1052
        %1061 = vmatprep.subr.bf16.mxu0 0
        %1062 = vmatpush1.bf16.msra.mxu0 %v1053
        %1063 = vmatprep.subr.bf16.mxu0 0
        %1064 = vmatpush1.bf16.msra.mxu0 0
        %1065 = vmatprep.subr.bf16.mxu0 0
        %1066 = vmatpush1.bf16.msra.mxu0 0
        %1067 = vmatprep.subr.bf16.mxu0 0
        %1068 = vmatpush1.bf16.msra.mxu0 0
        %1069 = vmatprep.subr.bf16.mxu0 0
        %1070 = vmatpush1.bf16.msra.mxu0 0
        %1071 = vmatprep.subr.bf16.mxu0 0
        %1072 = vmatpush1.bf16.msra.mxu0 0
        %1073 = vmatprep.subr.bf16.mxu0 0
        %1074 = vmatpush1.bf16.msra.mxu0 0
        %1075 = vmatprep.subr.bf16.mxu0 0
        %1076 = vmatpush1.bf16.msra.mxu0 0
        %1077 = vmatprep.subr.bf16.mxu0 0
        %1078 = vmatpush1.bf16.msra.mxu0 0
        %1079 = vmatprep.subr.bf16.mxu0 0
        %1080 = vmatpush1.bf16.msra.mxu0 0
        %1081 = vmatprep.subr.bf16.mxu0 0
        %1082 = vmatpush1.bf16.msra.mxu0 0
        %1083 = vmatprep.subr.bf16.mxu0 0
        %1084 = vmatpush1.bf16.msra.mxu0 0
        %1085 = vmatprep.subr.bf16.mxu0 0
        %1086 = vmatpush1.bf16.msra.mxu0 0
        %1087 = vmatprep.subr.bf16.mxu0 0
        %1088 = vmatpush1.bf16.msra.mxu0 0
        %1089 = vmatprep.subr.bf16.mxu0 0
        %1090 = vmatpush1.bf16.msra.mxu0 0
        %1091 = vmatprep.mubr.bf16.mxu0 0
        %1092 = vmatmul.mubr.bf16.gmra.mrb[0].mxu0 %v1057
        %v1093 = vpop.f32.mrb[0].mxu0
        %v1094 = vadd.f32 %v1042, %v1093
        %v1095 = vpop.f32.mrb[0].mxu0
        %v1096 = vpop.f32.mrb[0].mxu0
        %v1097 = vadd.f32 %v1042, %v1096
        %v1098 = vpop.f32.mrb[0].mxu0
        %1099 = vdwg.mxu0
        %v1100 = vmul.f32 %v959, %v1094
        %v1101 = vmul.f32 %v960, %v1097
        %v1102 = vadd.f32 %v957, %v1100
        %v1103 = vadd.f32 %v958, %v1101
        %v1104 = vpack.c.bf16 %v1103, %v1102
        %v1105 = vld [vmem:[%s899] sm:$0xf]
        %v1106 = vld [vmem:[%s899 + $0x4] sm:$0xf]
        %v1107 = vld [vmem:[%s899 + $0x8] sm:$0xf]
        %v1108 = vld [vmem:[%s899 + $0xc] sm:$0xf]
        %v1109 = vld [vmem:[%s902] sm:$0x1]
        %v1111 = vlaneseq
        %v1112 = vshrl.u32 %v1111, 7
        %v1113 = vsub.s32 0, %v1112
        %v1114 = vrot.slane %v1109, %v1113
        %v1120 = vunpack.c.l.b16 %v1105
        %v1121 = vunpack.c.l.b16 %v1106
        %v1122 = vunpack.c.l.b16 %v1107
        %v1123 = vunpack.c.l.b16 %v1108
        %v1124 = vpack.c.b16 %v1121, %v1120
        %v1125 = vpack.c.b16 %v1123, %v1122
        %v1129 = vsel %vm985, %v1104, 0
        %1131 = vmatprep.subr.bf16.mxu0 0
        %1132 = vmatpush1.bf16.msra.mxu0 %v1124
        %1133 = vmatprep.subr.bf16.mxu0 0
        %1134 = vmatpush1.bf16.msra.mxu0 %v1125
        %1135 = vmatprep.subr.bf16.mxu0 0
        %1136 = vmatpush1.bf16.msra.mxu0 0
        %1137 = vmatprep.subr.bf16.mxu0 0
        %1138 = vmatpush1.bf16.msra.mxu0 0
        %1139 = vmatprep.subr.bf16.mxu0 0
        %1140 = vmatpush1.bf16.msra.mxu0 0
        %1141 = vmatprep.subr.bf16.mxu0 0
        %1142 = vmatpush1.bf16.msra.mxu0 0
        %1143 = vmatprep.subr.bf16.mxu0 0
        %1144 = vmatpush1.bf16.msra.mxu0 0
        %1145 = vmatprep.subr.bf16.mxu0 0
        %1146 = vmatpush1.bf16.msra.mxu0 0
        %1147 = vmatprep.subr.bf16.mxu0 0
        %1148 = vmatpush1.bf16.msra.mxu0 0
        %1149 = vmatprep.subr.bf16.mxu0 0
        %1150 = vmatpush1.bf16.msra.mxu0 0
        %1151 = vmatprep.subr.bf16.mxu0 0
        %1152 = vmatpush1.bf16.msra.mxu0 0
        %1153 = vmatprep.subr.bf16.mxu0 0
        %1154 = vmatpush1.bf16.msra.mxu0 0
        %1155 = vmatprep.subr.bf16.mxu0 0
        %1156 = vmatpush1.bf16.msra.mxu0 0
        %1157 = vmatprep.subr.bf16.mxu0 0
        %1158 = vmatpush1.bf16.msra.mxu0 0
        %1159 = vmatprep.subr.bf16.mxu0 0
        %1160 = vmatpush1.bf16.msra.mxu0 0
        %1161 = vmatprep.subr.bf16.mxu0 0
        %1162 = vmatpush1.bf16.msra.mxu0 0
        %1163 = vmatprep.mubr.bf16.mxu0 0
        %1164 = vmatmul.mubr.bf16.gmra.mrb[0].mxu0 %v1129
        %v1165 = vpop.f32.mrb[0].mxu0
        %v1166 = vadd.f32 %v1114, %v1165
        %v1167 = vpop.f32.mrb[0].mxu0
        %v1168 = vpop.f32.mrb[0].mxu0
        %v1169 = vadd.f32 %v1114, %v1168
        %v1170 = vpop.f32.mrb[0].mxu0
        %1171 = vdwg.mxu0
        %v1172 = vld [vmem:[%s907] sm:$0xf]
        %v1173 = vld [vmem:[%s907 + $0x4] sm:$0xf]
        %v1174 = vld [vmem:[%s907 + $0x8] sm:$0xf]
        %v1175 = vld [vmem:[%s907 + $0xc] sm:$0xf]
        %v1176 = vld [vmem:[%s910] sm:$0x1]
        %v1178 = vlaneseq
        %v1179 = vshrl.u32 %v1178, 7
        %v1180 = vsub.s32 0, %v1179
        %v1181 = vrot.slane %v1176, %v1180
        %v1187 = vunpack.c.l.b16 %v1172
        %v1188 = vunpack.c.l.b16 %v1173
        %v1189 = vunpack.c.l.b16 %v1174
        %v1190 = vunpack.c.l.b16 %v1175
        %v1191 = vpack.c.b16 %v1188, %v1187
        %v1192 = vpack.c.b16 %v1190, %v1189
        %1195 = vmatprep.subr.bf16.mxu0 0
        %1196 = vmatpush1.bf16.msra.mxu0 %v1191
        %1197 = vmatprep.subr.bf16.mxu0 0
        %1198 = vmatpush1.bf16.msra.mxu0 %v1192
        %1199 = vmatprep.subr.bf16.mxu0 0
        %1200 = vmatpush1.bf16.msra.mxu0 0
        %1201 = vmatprep.subr.bf16.mxu0 0
        %1202 = vmatpush1.bf16.msra.mxu0 0
        %1203 = vmatprep.subr.bf16.mxu0 0
        %1204 = vmatpush1.bf16.msra.mxu0 0
        %1205 = vmatprep.subr.bf16.mxu0 0
        %1206 = vmatpush1.bf16.msra.mxu0 0
        %1207 = vmatprep.subr.bf16.mxu0 0
        %1208 = vmatpush1.bf16.msra.mxu0 0
        %1209 = vmatprep.subr.bf16.mxu0 0
        %1210 = vmatpush1.bf16.msra.mxu0 0
        %1211 = vmatprep.subr.bf16.mxu0 0
        %1212 = vmatpush1.bf16.msra.mxu0 0
        %1213 = vmatprep.subr.bf16.mxu0 0
        %1214 = vmatpush1.bf16.msra.mxu0 0
        %1215 = vmatprep.subr.bf16.mxu0 0
        %1216 = vmatpush1.bf16.msra.mxu0 0
        %1217 = vmatprep.subr.bf16.mxu0 0
        %1218 = vmatpush1.bf16.msra.mxu0 0
        %1219 = vmatprep.subr.bf16.mxu0 0
        %1220 = vmatpush1.bf16.msra.mxu0 0
        %1221 = vmatprep.subr.bf16.mxu0 0
        %1222 = vmatpush1.bf16.msra.mxu0 0
        %1223 = vmatprep.subr.bf16.mxu0 0
        %1224 = vmatpush1.bf16.msra.mxu0 0
        %1225 = vmatprep.subr.bf16.mxu0 0
        %1226 = vmatpush1.bf16.msra.mxu0 0
        %1227 = vmatprep.mubr.bf16.mxu0 0
        %1228 = vmatmul.mubr.bf16.gmra.mrb[0].mxu0 %v987
        %v1229 = vpop.f32.mrb[0].mxu0
        %v1230 = vadd.f32 %v1181, %v1229
        %v1231 = vpop.f32.mrb[0].mxu0
        %v1232 = vpop.f32.mrb[0].mxu0
        %v1233 = vadd.f32 %v1181, %v1232
        %v1234 = vpop.f32.mrb[0].mxu0
        %1235 = vdwg.mxu0
        %v1236 = vld [vmem:[%s915] sm:$0xff]
        %v1237 = vld [vmem:[%s915 + $0x8] sm:$0xff]
        %v1238 = vld [vmem:[%s915 + $0x10] sm:$0xff]
        %v1239 = vld [vmem:[%s915 + $0x18] sm:$0xff]
        %v1240 = vpack.c.bf16 %v1166, %v1166
        %v1241 = vpack.c.bf16 %v1230, %v1230
        %1243 = vrot.lane.b32.xlu0 %v1240, 96
        %v1244 = vpop.permute.xlu0 %1243
        %vm1245 = vcmask 64512
        %v1247 = vsel %vm1245, %v1240, 0
        %v1250 = vsel %vm1245, %v1244, 0
        %1252 = vmatprep.subr.bf16.mxu0 0
        %1253 = vmatpush1.bf16.xpose.msra.mxu0 %v1250
        %1254 = vmatprep.subr.bf16.mxu0 0
        %1255 = vmatpush1.bf16.xpose.msra.mxu0 0
        %1256 = vmatprep.subr.bf16.mxu0 0
        %1257 = vmatpush1.bf16.xpose.msra.mxu0 0
        %1258 = vmatprep.subr.bf16.mxu0 0
        %1259 = vmatpush1.bf16.xpose.msra.mxu0 0
        %1260 = vmatprep.subr.bf16.mxu0 0
        %1261 = vmatpush1.bf16.xpose.msra.mxu0 0
        %1262 = vmatprep.subr.bf16.mxu0 0
        %1263 = vmatpush1.bf16.xpose.msra.mxu0 0
        %1264 = vmatprep.subr.bf16.mxu0 0
        %1265 = vmatpush1.bf16.xpose.msra.mxu0 0
        %1266 = vmatprep.subr.bf16.mxu0 0
        %1267 = vmatpush1.bf16.xpose.msra.mxu0 0
        %1268 = vmatprep.subr.bf16.mxu0 0
        %1269 = vmatpush1.bf16.xpose.msra.mxu0 0
        %1270 = vmatprep.subr.bf16.mxu0 0
        %1271 = vmatpush1.bf16.xpose.msra.mxu0 0
        %1272 = vmatprep.subr.bf16.mxu0 0
        %1273 = vmatpush1.bf16.xpose.msra.mxu0 0
        %1274 = vmatprep.subr.bf16.mxu0 0
        %1275 = vmatpush1.bf16.xpose.msra.mxu0 0
        %1276 = vmatprep.subr.bf16.mxu0 0
        %1277 = vmatpush1.bf16.xpose.msra.mxu0 0
        %1278 = vmatprep.subr.bf16.mxu0 0
        %1279 = vmatpush1.bf16.xpose.msra.mxu0 0
        %1280 = vmatprep.subr.bf16.mxu0 0
        %1281 = vmatpush1.bf16.xpose.msra.mxu0 0
        %1282 = vmatprep.subr.bf16.mxu0 0
        %1283 = vmatpush1.bf16.xpose.msra.mxu0 0
        %1284 = vmatprep.mubr.bf16.mxu0 0
        %1285 = vmatmul.mubr.bf16.gmra.mrb[0].mxu0 %v1247
        %v1286 = vpop.f32.mrb[0].mxu0
        %v1287 = vadd.f32 0.0, %v1286
        %v1288 = vpop.f32.mrb[0].mxu0
        %v1289 = vpop.f32.mrb[0].mxu0
        %v1290 = vpop.f32.mrb[0].mxu0
        %1291 = vdwg.mxu0
        %v1292 = vmul.f32 %v1287, 0.35355338
        %v1293 = vsel %vm1245, %v1292, -inf
        %1294 = vmax.xlane.f32.xlu0 %v1293
        %v1295 = vpop.xlane.xlu0 %1294
        %v1296 = vsub.f32 %v1292, %v1295
        %v1297 = vmul.f32 %v1296, 1.442695
        %v1298 = vpow.pop %v1297
        %v1299 = vsel %vm1245, %v1298, 0.0
        %1300 = vadd.xlane.f32.xlu0 %v1299
        %v1301 = vpop.xlane.xlu0 %1300
        %v1302 = vrcp.pop %v1301
        %v1303 = vmul.f32 %v1298, %v1302
        %v1304 = vpack.c.bf16 %v1303, %v1303
        %v1306 = vsel %vm1245, %v1304, 0
        %vm1308 = vcmask 1043456
        %v1310 = vsel %vm1308, %v1241, 0
        %1312 = vmatprep.subr.bf16.mxu0 0
        %1313 = vmatpush1.bf16.msra.mxu0 %v1310
        %1314 = vmatprep.subr.bf16.mxu0 0
        %1315 = vmatpush1.bf16.msra.mxu0 0
        %1316 = vmatprep.subr.bf16.mxu0 0
        %1317 = vmatpush1.bf16.msra.mxu0 0
        %1318 = vmatprep.subr.bf16.mxu0 0
        %1319 = vmatpush1.bf16.msra.mxu0 0
        %1320 = vmatprep.subr.bf16.mxu0 0
        %1321 = vmatpush1.bf16.msra.mxu0 0
        %1322 = vmatprep.subr.bf16.mxu0 0
        %1323 = vmatpush1.bf16.msra.mxu0 0
        %1324 = vmatprep.subr.bf16.mxu0 0
        %1325 = vmatpush1.bf16.msra.mxu0 0
        %1326 = vmatprep.subr.bf16.mxu0 0
        %1327 = vmatpush1.bf16.msra.mxu0 0
        %1328 = vmatprep.subr.bf16.mxu0 0
        %1329 = vmatpush1.bf16.msra.mxu0 0
        %1330 = vmatprep.subr.bf16.mxu0 0
        %1331 = vmatpush1.bf16.msra.mxu0 0
        %1332 = vmatprep.subr.bf16.mxu0 0
        %1333 = vmatpush1.bf16.msra.mxu0 0
        %1334 = vmatprep.subr.bf16.mxu0 0
        %1335 = vmatpush1.bf16.msra.mxu0 0
        %1336 = vmatprep.subr.bf16.mxu0 0
        %1337 = vmatpush1.bf16.msra.mxu0 0
        %1338 = vmatprep.subr.bf16.mxu0 0
        %1339 = vmatpush1.bf16.msra.mxu0 0
        %1340 = vmatprep.subr.bf16.mxu0 0
        %1341 = vmatpush1.bf16.msra.mxu0 0
        %1342 = vmatprep.subr.bf16.mxu0 0
        %1343 = vmatpush1.bf16.msra.mxu0 0
        %1344 = vmatprep.mubr.bf16.mxu0 0
        %1345 = vmatmul.mubr.bf16.gmra.mrb[0].mxu0 %v1306
        %v1346 = vpop.f32.mrb[0].mxu0
        %v1347 = vadd.f32 0.0, %v1346
        %v1348 = vpop.f32.mrb[0].mxu0
        %v1349 = vpop.f32.mrb[0].mxu0
        %v1350 = vpop.f32.mrb[0].mxu0
        %1351 = vdwg.mxu0
        %v1352 = vpack.c.bf16 %v1347, %v1347
        %v1353 = vpack.c.bf16 %v1236, %v1236
        %1354 = vrot.lane.b32.xlu0 %v1240, 120
        %v1355 = vpop.permute.xlu0 %1354
        %1356 = vrot.lane.b32.xlu0 %v1240, 88
        %v1357 = vpop.permute.xlu0 %1356
        %v1359 = vsel %vm1245, %v1355, 0
        %v1362 = vsel %vm1245, %v1357, 0
        %1364 = vmatprep.subr.bf16.mxu0 0
        %1365 = vmatpush1.bf16.xpose.msra.mxu0 %v1362
        %1366 = vmatprep.subr.bf16.mxu0 0
        %1367 = vmatpush1.bf16.xpose.msra.mxu0 0
        %1368 = vmatprep.subr.bf16.mxu0 0
        %1369 = vmatpush1.bf16.xpose.msra.mxu0 0
        %1370 = vmatprep.subr.bf16.mxu0 0
        %1371 = vmatpush1.bf16.xpose.msra.mxu0 0
        %1372 = vmatprep.subr.bf16.mxu0 0
        %1373 = vmatpush1.bf16.xpose.msra.mxu0 0
        %1374 = vmatprep.subr.bf16.mxu0 0
        %1375 = vmatpush1.bf16.xpose.msra.mxu0 0
        %1376 = vmatprep.subr.bf16.mxu0 0
        %1377 = vmatpush1.bf16.xpose.msra.mxu0 0
        %1378 = vmatprep.subr.bf16.mxu0 0
        %1379 = vmatpush1.bf16.xpose.msra.mxu0 0
        %1380 = vmatprep.subr.bf16.mxu0 0
        %1381 = vmatpush1.bf16.xpose.msra.mxu0 0
        %1382 = vmatprep.subr.bf16.mxu0 0
        %1383 = vmatpush1.bf16.xpose.msra.mxu0 0
        %1384 = vmatprep.subr.bf16.mxu0 0
        %1385 = vmatpush1.bf16.xpose.msra.mxu0 0
        %1386 = vmatprep.subr.bf16.mxu0 0
        %1387 = vmatpush1.bf16.xpose.msra.mxu0 0
        %1388 = vmatprep.subr.bf16.mxu0 0
        %1389 = vmatpush1.bf16.xpose.msra.mxu0 0
        %1390 = vmatprep.subr.bf16.mxu0 0
        %1391 = vmatpush1.bf16.xpose.msra.mxu0 0
        %1392 = vmatprep.subr.bf16.mxu0 0
        %1393 = vmatpush1.bf16.xpose.msra.mxu0 0
        %1394 = vmatprep.subr.bf16.mxu0 0
        %1395 = vmatpush1.bf16.xpose.msra.mxu0 0
        %1396 = vmatprep.mubr.bf16.mxu0 0
        %1397 = vmatmul.mubr.bf16.gmra.mrb[0].mxu0 %v1359
        %v1398 = vpop.f32.mrb[0].mxu0
        %v1399 = vadd.f32 0.0, %v1398
        %v1400 = vpop.f32.mrb[0].mxu0
        %v1401 = vpop.f32.mrb[0].mxu0
        %v1402 = vpop.f32.mrb[0].mxu0
        %1403 = vdwg.mxu0
        %v1404 = vmul.f32 %v1399, 0.35355338
        %v1405 = vsel %vm1245, %v1404, -inf
        %1406 = vmax.xlane.f32.xlu0 %v1405
        %v1407 = vpop.xlane.xlu0 %1406
        %v1408 = vsub.f32 %v1404, %v1407
        %v1409 = vmul.f32 %v1408, 1.442695
        %v1410 = vpow.pop %v1409
        %v1411 = vsel %vm1245, %v1410, 0.0
        %1412 = vadd.xlane.f32.xlu0 %v1411
        %v1413 = vpop.xlane.xlu0 %1412
        %v1414 = vrcp.pop %v1413
        %v1415 = vmul.f32 %v1410, %v1414
        %v1416 = vpack.c.bf16 %v1415, %v1415
        %1418 = vrot.lane.b32.xlu0 %v1241, 120
        %v1419 = vpop.permute.xlu0 %1418
        %v1421 = vsel %vm1245, %v1416, 0
        %v1424 = vsel %vm1308, %v1419, 0
        %1426 = vmatprep.subr.bf16.mxu0 0
        %1427 = vmatpush1.bf16.msra.mxu0 %v1424
        %1428 = vmatprep.subr.bf16.mxu0 0
        %1429 = vmatpush1.bf16.msra.mxu0 0
        %1430 = vmatprep.subr.bf16.mxu0 0
        %1431 = vmatpush1.bf16.msra.mxu0 0
        %1432 = vmatprep.subr.bf16.mxu0 0
        %1433 = vmatpush1.bf16.msra.mxu0 0
        %1434 = vmatprep.subr.bf16.mxu0 0
        %1435 = vmatpush1.bf16.msra.mxu0 0
        %1436 = vmatprep.subr.bf16.mxu0 0
        %1437 = vmatpush1.bf16.msra.mxu0 0
        %1438 = vmatprep.subr.bf16.mxu0 0
        %1439 = vmatpush1.bf16.msra.mxu0 0
        %1440 = vmatprep.subr.bf16.mxu0 0
        %1441 = vmatpush1.bf16.msra.mxu0 0
        %1442 = vmatprep.subr.bf16.mxu0 0
        %1443 = vmatpush1.bf16.msra.mxu0 0
        %1444 = vmatprep.subr.bf16.mxu0 0
        %1445 = vmatpush1.bf16.msra.mxu0 0
        %1446 = vmatprep.subr.bf16.mxu0 0
        %1447 = vmatpush1.bf16.msra.mxu0 0
        %1448 = vmatprep.subr.bf16.mxu0 0
        %1449 = vmatpush1.bf16.msra.mxu0 0
        %1450 = vmatprep.subr.bf16.mxu0 0
        %1451 = vmatpush1.bf16.msra.mxu0 0
        %1452 = vmatprep.subr.bf16.mxu0 0
        %1453 = vmatpush1.bf16.msra.mxu0 0
        %1454 = vmatprep.subr.bf16.mxu0 0
        %1455 = vmatpush1.bf16.msra.mxu0 0
        %1456 = vmatprep.subr.bf16.mxu0 0
        %1457 = vmatpush1.bf16.msra.mxu0 0
        %1458 = vmatprep.mubr.bf16.mxu0 0
        %1459 = vmatmul.mubr.bf16.gmra.mrb[0].mxu0 %v1421
        %v1460 = vpop.f32.mrb[0].mxu0
        %v1461 = vadd.f32 0.0, %v1460
        %v1462 = vpop.f32.mrb[0].mxu0
        %v1463 = vpop.f32.mrb[0].mxu0
        %v1464 = vpop.f32.mrb[0].mxu0
        %1465 = vdwg.mxu0
        %v1466 = vpack.c.bf16 %v1461, %v1461
        %v1467 = vpack.c.bf16 %v1237, %v1237
        %v1469 = vsel %vm1245, %v1466, 0
        %v1472 = vsel %vm1308, %v1467, 0
        %1474 = vmatprep.subr.bf16.mxu0 0
        %1475 = vmatpush1.bf16.msra.mxu0 %v1472
        %1476 = vmatprep.subr.bf16.mxu0 0
        %1477 = vmatpush1.bf16.msra.mxu0 0
        %1478 = vmatprep.subr.bf16.mxu0 0
        %1479 = vmatpush1.bf16.msra.mxu0 0
        %1480 = vmatprep.subr.bf16.mxu0 0
        %1481 = vmatpush1.bf16.msra.mxu0 0
        %1482 = vmatprep.subr.bf16.mxu0 0
        %1483 = vmatpush1.bf16.msra.mxu0 0
        %1484 = vmatprep.subr.bf16.mxu0 0
        %1485 = vmatpush1.bf16.msra.mxu0 0
        %1486 = vmatprep.subr.bf16.mxu0 0
        %1487 = vmatpush1.bf16.msra.mxu0 0
        %1488 = vmatprep.subr.bf16.mxu0 0
        %1489 = vmatpush1.bf16.msra.mxu0 0
        %1490 = vmatprep.subr.bf16.mxu0 0
        %1491 = vmatpush1.bf16.msra.mxu0 0
        %1492 = vmatprep.subr.bf16.mxu0 0
        %1493 = vmatpush1.bf16.msra.mxu0 0
        %1494 = vmatprep.subr.bf16.mxu0 0
        %1495 = vmatpush1.bf16.msra.mxu0 0
        %1496 = vmatprep.subr.bf16.mxu0 0
        %1497 = vmatpush1.bf16.msra.mxu0 0
        %1498 = vmatprep.subr.bf16.mxu0 0
        %1499 = vmatpush1.bf16.msra.mxu0 0
        %1500 = vmatprep.subr.bf16.mxu0 0
        %1501 = vmatpush1.bf16.msra.mxu0 0
        %1502 = vmatprep.subr.bf16.mxu0 0
        %1503 = vmatpush1.bf16.msra.mxu0 0
        %1504 = vmatprep.subr.bf16.mxu0 0
        %1505 = vmatpush1.bf16.msra.mxu0 0
        %1506 = vmatprep.mubr.bf16.mxu0 0
        %1507 = vmatmul.mubr.bf16.gmra.mrb[0].mxu0 %v1469
        %v1508 = vpop.f32.mrb[0].mxu0
        %v1509 = vadd.f32 0.0, %v1508
        %v1510 = vpop.f32.mrb[0].mxu0
        %v1511 = vpop.f32.mrb[0].mxu0
        %v1512 = vpop.f32.mrb[0].mxu0
        %1513 = vdwg.mxu0
        %v1515 = vsel %vm1245, %v1352, 0
        %v1518 = vsel %vm1308, %v1353, 0
        %1520 = vmatprep.subr.bf16.mxu0 0
        %1521 = vmatpush1.bf16.msra.mxu0 %v1518
        %1522 = vmatprep.subr.bf16.mxu0 0
        %1523 = vmatpush1.bf16.msra.mxu0 0
        %1524 = vmatprep.subr.bf16.mxu0 0
        %1525 = vmatpush1.bf16.msra.mxu0 0
        %1526 = vmatprep.subr.bf16.mxu0 0
        %1527 = vmatpush1.bf16.msra.mxu0 0
        %1528 = vmatprep.subr.bf16.mxu0 0
        %1529 = vmatpush1.bf16.msra.mxu0 0
        %1530 = vmatprep.subr.bf16.mxu0 0
        %1531 = vmatpush1.bf16.msra.mxu0 0
        %1532 = vmatprep.subr.bf16.mxu0 0
        %1533 = vmatpush1.bf16.msra.mxu0 0
        %1534 = vmatprep.subr.bf16.mxu0 0
        %1535 = vmatpush1.bf16.msra.mxu0 0
        %1536 = vmatprep.subr.bf16.mxu0 0
        %1537 = vmatpush1.bf16.msra.mxu0 0
        %1538 = vmatprep.subr.bf16.mxu0 0
        %1539 = vmatpush1.bf16.msra.mxu0 0
        %1540 = vmatprep.subr.bf16.mxu0 0
        %1541 = vmatpush1.bf16.msra.mxu0 0
        %1542 = vmatprep.subr.bf16.mxu0 0
        %1543 = vmatpush1.bf16.msra.mxu0 0
        %1544 = vmatprep.subr.bf16.mxu0 0
        %1545 = vmatpush1.bf16.msra.mxu0 0
        %1546 = vmatprep.subr.bf16.mxu0 0
        %1547 = vmatpush1.bf16.msra.mxu0 0
        %1548 = vmatprep.subr.bf16.mxu0 0
        %1549 = vmatpush1.bf16.msra.mxu0 0
        %1550 = vmatprep.subr.bf16.mxu0 0
        %1551 = vmatpush1.bf16.msra.mxu0 0
        %1552 = vmatprep.mubr.bf16.mxu0 0
        %1553 = vmatmul.mubr.bf16.gmra.mrb[0].mxu0 %v1515
        %v1554 = vpop.f32.mrb[0].mxu0
        %v1555 = vadd.f32 %v1509, %v1554
        %v1556 = vpop.f32.mrb[0].mxu0
        %v1557 = vpop.f32.mrb[0].mxu0
        %v1558 = vpop.f32.mrb[0].mxu0
        %1559 = vdwg.mxu0
        %1560 = vrot.lane.b32.xlu0 %v1240, 112
        %v1561 = vpop.permute.xlu0 %1560
        %1562 = vrot.lane.b32.xlu0 %v1240, 80
        %v1563 = vpop.permute.xlu0 %1562
        %v1565 = vsel %vm1245, %v1561, 0
        %v1568 = vsel %vm1245, %v1563, 0
        %1570 = vmatprep.subr.bf16.mxu0 0
        %1571 = vmatpush1.bf16.xpose.msra.mxu0 %v1568
        %1572 = vmatprep.subr.bf16.mxu0 0
        %1573 = vmatpush1.bf16.xpose.msra.mxu0 0
        %1574 = vmatprep.subr.bf16.mxu0 0
        %1575 = vmatpush1.bf16.xpose.msra.mxu0 0
        %1576 = vmatprep.subr.bf16.mxu0 0
        %1577 = vmatpush1.bf16.xpose.msra.mxu0 0
        %1578 = vmatprep.subr.bf16.mxu0 0
        %1579 = vmatpush1.bf16.xpose.msra.mxu0 0
        %1580 = vmatprep.subr.bf16.mxu0 0
        %1581 = vmatpush1.bf16.xpose.msra.mxu0 0
        %1582 = vmatprep.subr.bf16.mxu0 0
        %1583 = vmatpush1.bf16.xpose.msra.mxu0 0
        %1584 = vmatprep.subr.bf16.mxu0 0
        %1585 = vmatpush1.bf16.xpose.msra.mxu0 0
        %1586 = vmatprep.subr.bf16.mxu0 0
        %1587 = vmatpush1.bf16.xpose.msra.mxu0 0
        %1588 = vmatprep.subr.bf16.mxu0 0
        %1589 = vmatpush1.bf16.xpose.msra.mxu0 0
        %1590 = vmatprep.subr.bf16.mxu0 0
        %1591 = vmatpush1.bf16.xpose.msra.mxu0 0
        %1592 = vmatprep.subr.bf16.mxu0 0
        %1593 = vmatpush1.bf16.xpose.msra.mxu0 0
        %1594 = vmatprep.subr.bf16.mxu0 0
        %1595 = vmatpush1.bf16.xpose.msra.mxu0 0
        %1596 = vmatprep.subr.bf16.mxu0 0
        %1597 = vmatpush1.bf16.xpose.msra.mxu0 0
        %1598 = vmatprep.subr.bf16.mxu0 0
        %1599 = vmatpush1.bf16.xpose.msra.mxu0 0
        %1600 = vmatprep.subr.bf16.mxu0 0
        %1601 = vmatpush1.bf16.xpose.msra.mxu0 0
        %1602 = vmatprep.mubr.bf16.mxu0 0
        %1603 = vmatmul.mubr.bf16.gmra.mrb[0].mxu0 %v1565
        %v1604 = vpop.f32.mrb[0].mxu0
        %v1605 = vadd.f32 0.0, %v1604
        %v1606 = vpop.f32.mrb[0].mxu0
        %v1607 = vpop.f32.mrb[0].mxu0
        %v1608 = vpop.f32.mrb[0].mxu0
        %1609 = vdwg.mxu0
        %v1610 = vmul.f32 %v1605, 0.35355338
        %v1611 = vsel %vm1245, %v1610, -inf
        %1612 = vmax.xlane.f32.xlu0 %v1611
        %v1613 = vpop.xlane.xlu0 %1612
        %v1614 = vsub.f32 %v1610, %v1613
        %v1615 = vmul.f32 %v1614, 1.442695
        %v1616 = vpow.pop %v1615
        %v1617 = vsel %vm1245, %v1616, 0.0
        %1618 = vadd.xlane.f32.xlu0 %v1617
        %v1619 = vpop.xlane.xlu0 %1618
        %v1620 = vrcp.pop %v1619
        %v1621 = vmul.f32 %v1616, %v1620
        %v1622 = vpack.c.bf16 %v1621, %v1621
        %1623 = vrot.lane.b32.xlu0 %v1241, 112
        %v1624 = vpop.permute.xlu0 %1623
        %v1626 = vsel %vm1245, %v1622, 0
        %v1629 = vsel %vm1308, %v1624, 0
        %1631 = vmatprep.subr.bf16.mxu0 0
        %1632 = vmatpush1.bf16.msra.mxu0 %v1629
        %1633 = vmatprep.subr.bf16.mxu0 0
        %1634 = vmatpush1.bf16.msra.mxu0 0
        %1635 = vmatprep.subr.bf16.mxu0 0
        %1636 = vmatpush1.bf16.msra.mxu0 0
        %1637 = vmatprep.subr.bf16.mxu0 0
        %1638 = vmatpush1.bf16.msra.mxu0 0
        %1639 = vmatprep.subr.bf16.mxu0 0
        %1640 = vmatpush1.bf16.msra.mxu0 0
        %1641 = vmatprep.subr.bf16.mxu0 0
        %1642 = vmatpush1.bf16.msra.mxu0 0
        %1643 = vmatprep.subr.bf16.mxu0 0
        %1644 = vmatpush1.bf16.msra.mxu0 0
        %1645 = vmatprep.subr.bf16.mxu0 0
        %1646 = vmatpush1.bf16.msra.mxu0 0
        %1647 = vmatprep.subr.bf16.mxu0 0
        %1648 = vmatpush1.bf16.msra.mxu0 0
        %1649 = vmatprep.subr.bf16.mxu0 0
        %1650 = vmatpush1.bf16.msra.mxu0 0
        %1651 = vmatprep.subr.bf16.mxu0 0
        %1652 = vmatpush1.bf16.msra.mxu0 0
        %1653 = vmatprep.subr.bf16.mxu0 0
        %1654 = vmatpush1.bf16.msra.mxu0 0
        %1655 = vmatprep.subr.bf16.mxu0 0
        %1656 = vmatpush1.bf16.msra.mxu0 0
        %1657 = vmatprep.subr.bf16.mxu0 0
        %1658 = vmatpush1.bf16.msra.mxu0 0
        %1659 = vmatprep.subr.bf16.mxu0 0
        %1660 = vmatpush1.bf16.msra.mxu0 0
        %1661 = vmatprep.subr.bf16.mxu0 0
        %1662 = vmatpush1.bf16.msra.mxu0 0
        %1663 = vmatprep.mubr.bf16.mxu0 0
        %1664 = vmatmul.mubr.bf16.gmra.mrb[0].mxu0 %v1626
        %v1665 = vpop.f32.mrb[0].mxu0
        %v1666 = vadd.f32 0.0, %v1665
        %v1667 = vpop.f32.mrb[0].mxu0
        %v1668 = vpop.f32.mrb[0].mxu0
        %v1669 = vpop.f32.mrb[0].mxu0
        %1670 = vdwg.mxu0
        %v1671 = vpack.c.bf16 %v1666, %v1666
        %v1672 = vpack.c.bf16 %v1238, %v1238
        %v1674 = vsel %vm1245, %v1671, 0
        %v1677 = vsel %vm1308, %v1672, 0
        %1679 = vmatprep.subr.bf16.mxu0 0
        %1680 = vmatpush1.bf16.msra.mxu0 %v1677
        %1681 = vmatprep.subr.bf16.mxu0 0
        %1682 = vmatpush1.bf16.msra.mxu0 0
        %1683 = vmatprep.subr.bf16.mxu0 0
        %1684 = vmatpush1.bf16.msra.mxu0 0
        %1685 = vmatprep.subr.bf16.mxu0 0
        %1686 = vmatpush1.bf16.msra.mxu0 0
        %1687 = vmatprep.subr.bf16.mxu0 0
        %1688 = vmatpush1.bf16.msra.mxu0 0
        %1689 = vmatprep.subr.bf16.mxu0 0
        %1690 = vmatpush1.bf16.msra.mxu0 0
        %1691 = vmatprep.subr.bf16.mxu0 0
        %1692 = vmatpush1.bf16.msra.mxu0 0
        %1693 = vmatprep.subr.bf16.mxu0 0
        %1694 = vmatpush1.bf16.msra.mxu0 0
        %1695 = vmatprep.subr.bf16.mxu0 0
        %1696 = vmatpush1.bf16.msra.mxu0 0
        %1697 = vmatprep.subr.bf16.mxu0 0
        %1698 = vmatpush1.bf16.msra.mxu0 0
        %1699 = vmatprep.subr.bf16.mxu0 0
        %1700 = vmatpush1.bf16.msra.mxu0 0
        %1701 = vmatprep.subr.bf16.mxu0 0
        %1702 = vmatpush1.bf16.msra.mxu0 0
        %1703 = vmatprep.subr.bf16.mxu0 0
        %1704 = vmatpush1.bf16.msra.mxu0 0
        %1705 = vmatprep.subr.bf16.mxu0 0
        %1706 = vmatpush1.bf16.msra.mxu0 0
        %1707 = vmatprep.subr.bf16.mxu0 0
        %1708 = vmatpush1.bf16.msra.mxu0 0
        %1709 = vmatprep.subr.bf16.mxu0 0
        %1710 = vmatpush1.bf16.msra.mxu0 0
        %1711 = vmatprep.mubr.bf16.mxu0 0
        %1712 = vmatmul.mubr.bf16.gmra.mrb[0].mxu0 %v1674
        %v1713 = vpop.f32.mrb[0].mxu0
        %v1714 = vadd.f32 0.0, %v1713
        %v1715 = vpop.f32.mrb[0].mxu0
        %v1716 = vpop.f32.mrb[0].mxu0
        %v1717 = vpop.f32.mrb[0].mxu0
        %1718 = vdwg.mxu0
        %v1719 = vadd.f32 %v1555, %v1714
        %1720 = vrot.lane.b32.xlu0 %v1240, 104
        %v1721 = vpop.permute.xlu0 %1720
        %1722 = vrot.lane.b32.xlu0 %v1240, 72
        %v1723 = vpop.permute.xlu0 %1722
        %v1725 = vsel %vm1245, %v1721, 0
        %v1728 = vsel %vm1245, %v1723, 0
        %1730 = vmatprep.subr.bf16.mxu0 0
        %1731 = vmatpush1.bf16.xpose.msra.mxu0 %v1728
        %1732 = vmatprep.subr.bf16.mxu0 0
        %1733 = vmatpush1.bf16.xpose.msra.mxu0 0
        %1734 = vmatprep.subr.bf16.mxu0 0
        %1735 = vmatpush1.bf16.xpose.msra.mxu0 0
        %1736 = vmatprep.subr.bf16.mxu0 0
        %1737 = vmatpush1.bf16.xpose.msra.mxu0 0
        %1738 = vmatprep.subr.bf16.mxu0 0
        %1739 = vmatpush1.bf16.xpose.msra.mxu0 0
        %1740 = vmatprep.subr.bf16.mxu0 0
        %1741 = vmatpush1.bf16.xpose.msra.mxu0 0
        %1742 = vmatprep.subr.bf16.mxu0 0
        %1743 = vmatpush1.bf16.xpose.msra.mxu0 0
        %1744 = vmatprep.subr.bf16.mxu0 0
        %1745 = vmatpush1.bf16.xpose.msra.mxu0 0
        %1746 = vmatprep.subr.bf16.mxu0 0
        %1747 = vmatpush1.bf16.xpose.msra.mxu0 0
        %1748 = vmatprep.subr.bf16.mxu0 0
        %1749 = vmatpush1.bf16.xpose.msra.mxu0 0
        %1750 = vmatprep.subr.bf16.mxu0 0
        %1751 = vmatpush1.bf16.xpose.msra.mxu0 0
        %1752 = vmatprep.subr.bf16.mxu0 0
        %1753 = vmatpush1.bf16.xpose.msra.mxu0 0
        %1754 = vmatprep.subr.bf16.mxu0 0
        %1755 = vmatpush1.bf16.xpose.msra.mxu0 0
        %1756 = vmatprep.subr.bf16.mxu0 0
        %1757 = vmatpush1.bf16.xpose.msra.mxu0 0
        %1758 = vmatprep.subr.bf16.mxu0 0
        %1759 = vmatpush1.bf16.xpose.msra.mxu0 0
        %1760 = vmatprep.subr.bf16.mxu0 0
        %1761 = vmatpush1.bf16.xpose.msra.mxu0 0
        %1762 = vmatprep.mubr.bf16.mxu0 0
        %1763 = vmatmul.mubr.bf16.gmra.mrb[0].mxu0 %v1725
        %v1764 = vpop.f32.mrb[0].mxu0
        %v1765 = vadd.f32 0.0, %v1764
        %v1766 = vpop.f32.mrb[0].mxu0
        %v1767 = vpop.f32.mrb[0].mxu0
        %v1768 = vpop.f32.mrb[0].mxu0
        %1769 = vdwg.mxu0
        %v1770 = vmul.f32 %v1765, 0.35355338
        %v1771 = vsel %vm1245, %v1770, -inf
        %1772 = vmax.xlane.f32.xlu0 %v1771
        %v1773 = vpop.xlane.xlu0 %1772
        %v1774 = vsub.f32 %v1770, %v1773
        %v1775 = vmul.f32 %v1774, 1.442695
        %v1776 = vpow.pop %v1775
        %v1777 = vsel %vm1245, %v1776, 0.0
        %1778 = vadd.xlane.f32.xlu0 %v1777
        %v1779 = vpop.xlane.xlu0 %1778
        %v1780 = vrcp.pop %v1779
        %v1781 = vmul.f32 %v1776, %v1780
        %v1782 = vpack.c.bf16 %v1781, %v1781
        %1783 = vrot.lane.b32.xlu0 %v1241, 104
        %v1784 = vpop.permute.xlu0 %1783
        %v1786 = vsel %vm1245, %v1782, 0
        %v1789 = vsel %vm1308, %v1784, 0
        %1791 = vmatprep.subr.bf16.mxu0 0
        %1792 = vmatpush1.bf16.msra.mxu0 %v1789
        %1793 = vmatprep.subr.bf16.mxu0 0
        %1794 = vmatpush1.bf16.msra.mxu0 0
        %1795 = vmatprep.subr.bf16.mxu0 0
        %1796 = vmatpush1.bf16.msra.mxu0 0
        %1797 = vmatprep.subr.bf16.mxu0 0
        %1798 = vmatpush1.bf16.msra.mxu0 0
        %1799 = vmatprep.subr.bf16.mxu0 0
        %1800 = vmatpush1.bf16.msra.mxu0 0
        %1801 = vmatprep.subr.bf16.mxu0 0
        %1802 = vmatpush1.bf16.msra.mxu0 0
        %1803 = vmatprep.subr.bf16.mxu0 0
        %1804 = vmatpush1.bf16.msra.mxu0 0
        %1805 = vmatprep.subr.bf16.mxu0 0
        %1806 = vmatpush1.bf16.msra.mxu0 0
        %1807 = vmatprep.subr.bf16.mxu0 0
        %1808 = vmatpush1.bf16.msra.mxu0 0
        %1809 = vmatprep.subr.bf16.mxu0 0
        %1810 = vmatpush1.bf16.msra.mxu0 0
        %1811 = vmatprep.subr.bf16.mxu0 0
        %1812 = vmatpush1.bf16.msra.mxu0 0
        %1813 = vmatprep.subr.bf16.mxu0 0
        %1814 = vmatpush1.bf16.msra.mxu0 0
        %1815 = vmatprep.subr.bf16.mxu0 0
        %1816 = vmatpush1.bf16.msra.mxu0 0
        %1817 = vmatprep.subr.bf16.mxu0 0
        %1818 = vmatpush1.bf16.msra.mxu0 0
        %1819 = vmatprep.subr.bf16.mxu0 0
        %1820 = vmatpush1.bf16.msra.mxu0 0
        %1821 = vmatprep.subr.bf16.mxu0 0
        %1822 = vmatpush1.bf16.msra.mxu0 0
        %1823 = vmatprep.mubr.bf16.mxu0 0
        %1824 = vmatmul.mubr.bf16.gmra.mrb[0].mxu0 %v1786
        %v1825 = vpop.f32.mrb[0].mxu0
        %v1826 = vadd.f32 0.0, %v1825
        %v1827 = vpop.f32.mrb[0].mxu0
        %v1828 = vpop.f32.mrb[0].mxu0
        %v1829 = vpop.f32.mrb[0].mxu0
        %1830 = vdwg.mxu0
        %v1831 = vpack.c.bf16 %v1826, %v1826
        %v1832 = vpack.c.bf16 %v1239, %v1239
        %v1834 = vsel %vm1245, %v1831, 0
        %v1837 = vsel %vm1308, %v1832, 0
        %1839 = vmatprep.subr.bf16.mxu0 0
        %1840 = vmatpush1.bf16.msra.mxu0 %v1837
        %1841 = vmatprep.subr.bf16.mxu0 0
        %1842 = vmatpush1.bf16.msra.mxu0 0
        %1843 = vmatprep.subr.bf16.mxu0 0
        %1844 = vmatpush1.bf16.msra.mxu0 0
        %1845 = vmatprep.subr.bf16.mxu0 0
        %1846 = vmatpush1.bf16.msra.mxu0 0
        %1847 = vmatprep.subr.bf16.mxu0 0
        %1848 = vmatpush1.bf16.msra.mxu0 0
        %1849 = vmatprep.subr.bf16.mxu0 0
        %1850 = vmatpush1.bf16.msra.mxu0 0
        %1851 = vmatprep.subr.bf16.mxu0 0
        %1852 = vmatpush1.bf16.msra.mxu0 0
        %1853 = vmatprep.subr.bf16.mxu0 0
        %1854 = vmatpush1.bf16.msra.mxu0 0
        %1855 = vmatprep.subr.bf16.mxu0 0
        %1856 = vmatpush1.bf16.msra.mxu0 0
        %1857 = vmatprep.subr.bf16.mxu0 0
        %1858 = vmatpush1.bf16.msra.mxu0 0
        %1859 = vmatprep.subr.bf16.mxu0 0
        %1860 = vmatpush1.bf16.msra.mxu0 0
        %1861 = vmatprep.subr.bf16.mxu0 0
        %1862 = vmatpush1.bf16.msra.mxu0 0
        %1863 = vmatprep.subr.bf16.mxu0 0
        %1864 = vmatpush1.bf16.msra.mxu0 0
        %1865 = vmatprep.subr.bf16.mxu0 0
        %1866 = vmatpush1.bf16.msra.mxu0 0
        %1867 = vmatprep.subr.bf16.mxu0 0
        %1868 = vmatpush1.bf16.msra.mxu0 0
        %1869 = vmatprep.subr.bf16.mxu0 0
        %1870 = vmatpush1.bf16.msra.mxu0 0
        %1871 = vmatprep.mubr.bf16.mxu0 0
        %1872 = vmatmul.mubr.bf16.gmra.mrb[0].mxu0 %v1834
        %v1873 = vpop.f32.mrb[0].mxu0
        %v1874 = vadd.f32 0.0, %v1873
        %v1875 = vpop.f32.mrb[0].mxu0
        %v1876 = vpop.f32.mrb[0].mxu0
        %v1877 = vpop.f32.mrb[0].mxu0
        %1878 = vdwg.mxu0
        %v1879 = vadd.f32 %v1719, %v1874
        %v1880 = vpack.c.bf16 %v1169, %v1169
        %v1881 = vpack.c.bf16 %v1233, %v1233
        %1883 = vrot.lane.b32.xlu0 %v1880, 96
        %v1884 = vpop.permute.xlu0 %1883
        %v1886 = vsel %vm1245, %v1880, 0
        %v1889 = vsel %vm1245, %v1884, 0
        %1891 = vmatprep.subr.bf16.mxu0 0
        %1892 = vmatpush1.bf16.xpose.msra.mxu0 %v1889
        %1893 = vmatprep.subr.bf16.mxu0 0
        %1894 = vmatpush1.bf16.xpose.msra.mxu0 0
        %1895 = vmatprep.subr.bf16.mxu0 0
        %1896 = vmatpush1.bf16.xpose.msra.mxu0 0
        %1897 = vmatprep.subr.bf16.mxu0 0
        %1898 = vmatpush1.bf16.xpose.msra.mxu0 0
        %1899 = vmatprep.subr.bf16.mxu0 0
        %1900 = vmatpush1.bf16.xpose.msra.mxu0 0
        %1901 = vmatprep.subr.bf16.mxu0 0
        %1902 = vmatpush1.bf16.xpose.msra.mxu0 0
        %1903 = vmatprep.subr.bf16.mxu0 0
        %1904 = vmatpush1.bf16.xpose.msra.mxu0 0
        %1905 = vmatprep.subr.bf16.mxu0 0
        %1906 = vmatpush1.bf16.xpose.msra.mxu0 0
        %1907 = vmatprep.subr.bf16.mxu0 0
        %1908 = vmatpush1.bf16.xpose.msra.mxu0 0
        %1909 = vmatprep.subr.bf16.mxu0 0
        %1910 = vmatpush1.bf16.xpose.msra.mxu0 0
        %1911 = vmatprep.subr.bf16.mxu0 0
        %1912 = vmatpush1.bf16.xpose.msra.mxu0 0
        %1913 = vmatprep.subr.bf16.mxu0 0
        %1914 = vmatpush1.bf16.xpose.msra.mxu0 0
        %1915 = vmatprep.subr.bf16.mxu0 0
        %1916 = vmatpush1.bf16.xpose.msra.mxu0 0
        %1917 = vmatprep.subr.bf16.mxu0 0
        %1918 = vmatpush1.bf16.xpose.msra.mxu0 0
        %1919 = vmatprep.subr.bf16.mxu0 0
        %1920 = vmatpush1.bf16.xpose.msra.mxu0 0
        %1921 = vmatprep.subr.bf16.mxu0 0
        %1922 = vmatpush1.bf16.xpose.msra.mxu0 0
        %1923 = vmatprep.mubr.bf16.mxu0 0
        %1924 = vmatmul.mubr.bf16.gmra.mrb[0].mxu0 %v1886
        %v1925 = vpop.f32.mrb[0].mxu0
        %v1926 = vadd.f32 0.0, %v1925
        %v1927 = vpop.f32.mrb[0].mxu0
        %v1928 = vpop.f32.mrb[0].mxu0
        %v1929 = vpop.f32.mrb[0].mxu0
        %1930 = vdwg.mxu0
        %v1931 = vmul.f32 %v1926, 0.35355338
        %v1932 = vsel %vm1245, %v1931, -inf
        %1933 = vmax.xlane.f32.xlu0 %v1932
        %v1934 = vpop.xlane.xlu0 %1933
        %v1935 = vsub.f32 %v1931, %v1934
        %v1936 = vmul.f32 %v1935, 1.442695
        %v1937 = vpow.pop %v1936
        %v1938 = vsel %vm1245, %v1937, 0.0
        %1939 = vadd.xlane.f32.xlu0 %v1938
        %v1940 = vpop.xlane.xlu0 %1939
        %v1941 = vrcp.pop %v1940
        %v1942 = vmul.f32 %v1937, %v1941
        %v1943 = vpack.c.bf16 %v1942, %v1942
        %v1945 = vsel %vm1245, %v1943, 0
        %v1948 = vsel %vm1308, %v1881, 0
        %1950 = vmatprep.subr.bf16.mxu0 0
        %1951 = vmatpush1.bf16.msra.mxu0 %v1948
        %1952 = vmatprep.subr.bf16.mxu0 0
        %1953 = vmatpush1.bf16.msra.mxu0 0
        %1954 = vmatprep.subr.bf16.mxu0 0
        %1955 = vmatpush1.bf16.msra.mxu0 0
        %1956 = vmatprep.subr.bf16.mxu0 0
        %1957 = vmatpush1.bf16.msra.mxu0 0
        %1958 = vmatprep.subr.bf16.mxu0 0
        %1959 = vmatpush1.bf16.msra.mxu0 0
        %1960 = vmatprep.subr.bf16.mxu0 0
        %1961 = vmatpush1.bf16.msra.mxu0 0
        %1962 = vmatprep.subr.bf16.mxu0 0
        %1963 = vmatpush1.bf16.msra.mxu0 0
        %1964 = vmatprep.subr.bf16.mxu0 0
        %1965 = vmatpush1.bf16.msra.mxu0 0
        %1966 = vmatprep.subr.bf16.mxu0 0
        %1967 = vmatpush1.bf16.msra.mxu0 0
        %1968 = vmatprep.subr.bf16.mxu0 0
        %1969 = vmatpush1.bf16.msra.mxu0 0
        %1970 = vmatprep.subr.bf16.mxu0 0
        %1971 = vmatpush1.bf16.msra.mxu0 0
        %1972 = vmatprep.subr.bf16.mxu0 0
        %1973 = vmatpush1.bf16.msra.mxu0 0
        %1974 = vmatprep.subr.bf16.mxu0 0
        %1975 = vmatpush1.bf16.msra.mxu0 0
        %1976 = vmatprep.subr.bf16.mxu0 0
        %1977 = vmatpush1.bf16.msra.mxu0 0
        %1978 = vmatprep.subr.bf16.mxu0 0
        %1979 = vmatpush1.bf16.msra.mxu0 0
        %1980 = vmatprep.subr.bf16.mxu0 0
        %1981 = vmatpush1.bf16.msra.mxu0 0
        %1982 = vmatprep.mubr.bf16.mxu0 0
        %1983 = vmatmul.mubr.bf16.gmra.mrb[0].mxu0 %v1945
        %v1984 = vpop.f32.mrb[0].mxu0
        %v1985 = vadd.f32 0.0, %v1984
        %v1986 = vpop.f32.mrb[0].mxu0
        %v1987 = vpop.f32.mrb[0].mxu0
        %v1988 = vpop.f32.mrb[0].mxu0
        %1989 = vdwg.mxu0
        %v1990 = vpack.c.bf16 %v1985, %v1985
        %1991 = vrot.lane.b32.xlu0 %v1880, 120
        %v1992 = vpop.permute.xlu0 %1991
        %1993 = vrot.lane.b32.xlu0 %v1880, 88
        %v1994 = vpop.permute.xlu0 %1993
        %v1996 = vsel %vm1245, %v1992, 0
        %v1999 = vsel %vm1245, %v1994, 0
        %2001 = vmatprep.subr.bf16.mxu0 0
        %2002 = vmatpush1.bf16.xpose.msra.mxu0 %v1999
        %2003 = vmatprep.subr.bf16.mxu0 0
        %2004 = vmatpush1.bf16.xpose.msra.mxu0 0
        %2005 = vmatprep.subr.bf16.mxu0 0
        %2006 = vmatpush1.bf16.xpose.msra.mxu0 0
        %2007 = vmatprep.subr.bf16.mxu0 0
        %2008 = vmatpush1.bf16.xpose.msra.mxu0 0
        %2009 = vmatprep.subr.bf16.mxu0 0
        %2010 = vmatpush1.bf16.xpose.msra.mxu0 0
        %2011 = vmatprep.subr.bf16.mxu0 0
        %2012 = vmatpush1.bf16.xpose.msra.mxu0 0
        %2013 = vmatprep.subr.bf16.mxu0 0
        %2014 = vmatpush1.bf16.xpose.msra.mxu0 0
        %2015 = vmatprep.subr.bf16.mxu0 0
        %2016 = vmatpush1.bf16.xpose.msra.mxu0 0
        %2017 = vmatprep.subr.bf16.mxu0 0
        %2018 = vmatpush1.bf16.xpose.msra.mxu0 0
        %2019 = vmatprep.subr.bf16.mxu0 0
        %2020 = vmatpush1.bf16.xpose.msra.mxu0 0
        %2021 = vmatprep.subr.bf16.mxu0 0
        %2022 = vmatpush1.bf16.xpose.msra.mxu0 0
        %2023 = vmatprep.subr.bf16.mxu0 0
        %2024 = vmatpush1.bf16.xpose.msra.mxu0 0
        %2025 = vmatprep.subr.bf16.mxu0 0
        %2026 = vmatpush1.bf16.xpose.msra.mxu0 0
        %2027 = vmatprep.subr.bf16.mxu0 0
        %2028 = vmatpush1.bf16.xpose.msra.mxu0 0
        %2029 = vmatprep.subr.bf16.mxu0 0
        %2030 = vmatpush1.bf16.xpose.msra.mxu0 0
        %2031 = vmatprep.subr.bf16.mxu0 0
        %2032 = vmatpush1.bf16.xpose.msra.mxu0 0
        %2033 = vmatprep.mubr.bf16.mxu0 0
        %2034 = vmatmul.mubr.bf16.gmra.mrb[0].mxu0 %v1996
        %v2035 = vpop.f32.mrb[0].mxu0
        %v2036 = vadd.f32 0.0, %v2035
        %v2037 = vpop.f32.mrb[0].mxu0
        %v2038 = vpop.f32.mrb[0].mxu0
        %v2039 = vpop.f32.mrb[0].mxu0
        %2040 = vdwg.mxu0
        %v2041 = vmul.f32 %v2036, 0.35355338
        %v2042 = vsel %vm1245, %v2041, -inf
        %2043 = vmax.xlane.f32.xlu0 %v2042
        %v2044 = vpop.xlane.xlu0 %2043
        %v2045 = vsub.f32 %v2041, %v2044
        %v2046 = vmul.f32 %v2045, 1.442695
        %v2047 = vpow.pop %v2046
        %v2048 = vsel %vm1245, %v2047, 0.0
        %2049 = vadd.xlane.f32.xlu0 %v2048
        %v2050 = vpop.xlane.xlu0 %2049
        %v2051 = vrcp.pop %v2050
        %v2052 = vmul.f32 %v2047, %v2051
        %v2053 = vpack.c.bf16 %v2052, %v2052
        %2055 = vrot.lane.b32.xlu0 %v1881, 120
        %v2056 = vpop.permute.xlu0 %2055
        %v2058 = vsel %vm1245, %v2053, 0
        %v2061 = vsel %vm1308, %v2056, 0
        %2063 = vmatprep.subr.bf16.mxu0 0
        %2064 = vmatpush1.bf16.msra.mxu0 %v2061
        %2065 = vmatprep.subr.bf16.mxu0 0
        %2066 = vmatpush1.bf16.msra.mxu0 0
        %2067 = vmatprep.subr.bf16.mxu0 0
        %2068 = vmatpush1.bf16.msra.mxu0 0
        %2069 = vmatprep.subr.bf16.mxu0 0
        %2070 = vmatpush1.bf16.msra.mxu0 0
        %2071 = vmatprep.subr.bf16.mxu0 0
        %2072 = vmatpush1.bf16.msra.mxu0 0
        %2073 = vmatprep.subr.bf16.mxu0 0
        %2074 = vmatpush1.bf16.msra.mxu0 0
        %2075 = vmatprep.subr.bf16.mxu0 0
        %2076 = vmatpush1.bf16.msra.mxu0 0
        %2077 = vmatprep.subr.bf16.mxu0 0
        %2078 = vmatpush1.bf16.msra.mxu0 0
        %2079 = vmatprep.subr.bf16.mxu0 0
        %2080 = vmatpush1.bf16.msra.mxu0 0
        %2081 = vmatprep.subr.bf16.mxu0 0
        %2082 = vmatpush1.bf16.msra.mxu0 0
        %2083 = vmatprep.subr.bf16.mxu0 0
        %2084 = vmatpush1.bf16.msra.mxu0 0
        %2085 = vmatprep.subr.bf16.mxu0 0
        %2086 = vmatpush1.bf16.msra.mxu0 0
        %2087 = vmatprep.subr.bf16.mxu0 0
        %2088 = vmatpush1.bf16.msra.mxu0 0
        %2089 = vmatprep.subr.bf16.mxu0 0
        %2090 = vmatpush1.bf16.msra.mxu0 0
        %2091 = vmatprep.subr.bf16.mxu0 0
        %2092 = vmatpush1.bf16.msra.mxu0 0
        %2093 = vmatprep.subr.bf16.mxu0 0
        %2094 = vmatpush1.bf16.msra.mxu0 0
        %2095 = vmatprep.mubr.bf16.mxu0 0
        %2096 = vmatmul.mubr.bf16.gmra.mrb[0].mxu0 %v2058
        %v2097 = vpop.f32.mrb[0].mxu0
        %v2098 = vadd.f32 0.0, %v2097
        %v2099 = vpop.f32.mrb[0].mxu0
        %v2100 = vpop.f32.mrb[0].mxu0
        %v2101 = vpop.f32.mrb[0].mxu0
        %2102 = vdwg.mxu0
        %v2103 = vpack.c.bf16 %v2098, %v2098
        %v2105 = vsel %vm1245, %v2103, 0
        %2107 = vmatprep.subr.bf16.mxu0 0
        %2108 = vmatpush1.bf16.msra.mxu0 %v1472
        %2109 = vmatprep.subr.bf16.mxu0 0
        %2110 = vmatpush1.bf16.msra.mxu0 0
        %2111 = vmatprep.subr.bf16.mxu0 0
        %2112 = vmatpush1.bf16.msra.mxu0 0
        %2113 = vmatprep.subr.bf16.mxu0 0
        %2114 = vmatpush1.bf16.msra.mxu0 0
        %2115 = vmatprep.subr.bf16.mxu0 0
        %2116 = vmatpush1.bf16.msra.mxu0 0
        %2117 = vmatprep.subr.bf16.mxu0 0
        %2118 = vmatpush1.bf16.msra.mxu0 0
        %2119 = vmatprep.subr.bf16.mxu0 0
        %2120 = vmatpush1.bf16.msra.mxu0 0
        %2121 = vmatprep.subr.bf16.mxu0 0
        %2122 = vmatpush1.bf16.msra.mxu0 0
        %2123 = vmatprep.subr.bf16.mxu0 0
        %2124 = vmatpush1.bf16.msra.mxu0 0
        %2125 = vmatprep.subr.bf16.mxu0 0
        %2126 = vmatpush1.bf16.msra.mxu0 0
        %2127 = vmatprep.subr.bf16.mxu0 0
        %2128 = vmatpush1.bf16.msra.mxu0 0
        %2129 = vmatprep.subr.bf16.mxu0 0
        %2130 = vmatpush1.bf16.msra.mxu0 0
        %2131 = vmatprep.subr.bf16.mxu0 0
        %2132 = vmatpush1.bf16.msra.mxu0 0
        %2133 = vmatprep.subr.bf16.mxu0 0
        %2134 = vmatpush1.bf16.msra.mxu0 0
        %2135 = vmatprep.subr.bf16.mxu0 0
        %2136 = vmatpush1.bf16.msra.mxu0 0
        %2137 = vmatprep.subr.bf16.mxu0 0
        %2138 = vmatpush1.bf16.msra.mxu0 0
        %2139 = vmatprep.mubr.bf16.mxu0 0
        %2140 = vmatmul.mubr.bf16.gmra.mrb[0].mxu0 %v2105
        %v2141 = vpop.f32.mrb[0].mxu0
        %v2142 = vadd.f32 0.0, %v2141
        %v2143 = vpop.f32.mrb[0].mxu0
        %v2144 = vpop.f32.mrb[0].mxu0
        %v2145 = vpop.f32.mrb[0].mxu0
        %2146 = vdwg.mxu0
        %v2148 = vsel %vm1245, %v1990, 0
        %2150 = vmatprep.subr.bf16.mxu0 0
        %2151 = vmatpush1.bf16.msra.mxu0 %v1518
        %2152 = vmatprep.subr.bf16.mxu0 0
        %2153 = vmatpush1.bf16.msra.mxu0 0
        %2154 = vmatprep.subr.bf16.mxu0 0
        %2155 = vmatpush1.bf16.msra.mxu0 0
        %2156 = vmatprep.subr.bf16.mxu0 0
        %2157 = vmatpush1.bf16.msra.mxu0 0
        %2158 = vmatprep.subr.bf16.mxu0 0
        %2159 = vmatpush1.bf16.msra.mxu0 0
        %2160 = vmatprep.subr.bf16.mxu0 0
        %2161 = vmatpush1.bf16.msra.mxu0 0
        %2162 = vmatprep.subr.bf16.mxu0 0
        %2163 = vmatpush1.bf16.msra.mxu0 0
        %2164 = vmatprep.subr.bf16.mxu0 0
        %2165 = vmatpush1.bf16.msra.mxu0 0
        %2166 = vmatprep.subr.bf16.mxu0 0
        %2167 = vmatpush1.bf16.msra.mxu0 0
        %2168 = vmatprep.subr.bf16.mxu0 0
        %2169 = vmatpush1.bf16.msra.mxu0 0
        %2170 = vmatprep.subr.bf16.mxu0 0
        %2171 = vmatpush1.bf16.msra.mxu0 0
        %2172 = vmatprep.subr.bf16.mxu0 0
        %2173 = vmatpush1.bf16.msra.mxu0 0
        %2174 = vmatprep.subr.bf16.mxu0 0
        %2175 = vmatpush1.bf16.msra.mxu0 0
        %2176 = vmatprep.subr.bf16.mxu0 0
        %2177 = vmatpush1.bf16.msra.mxu0 0
        %2178 = vmatprep.subr.bf16.mxu0 0
        %2179 = vmatpush1.bf16.msra.mxu0 0
        %2180 = vmatprep.subr.bf16.mxu0 0
        %2181 = vmatpush1.bf16.msra.mxu0 0
        %2182 = vmatprep.mubr.bf16.mxu0 0
        %2183 = vmatmul.mubr.bf16.gmra.mrb[0].mxu0 %v2148
        %v2184 = vpop.f32.mrb[0].mxu0
        %v2185 = vadd.f32 %v2142, %v2184
        %v2186 = vpop.f32.mrb[0].mxu0
        %v2187 = vpop.f32.mrb[0].mxu0
        %v2188 = vpop.f32.mrb[0].mxu0
        %2189 = vdwg.mxu0
        %2190 = vrot.lane.b32.xlu0 %v1880, 112
        %v2191 = vpop.permute.xlu0 %2190
        %2192 = vrot.lane.b32.xlu0 %v1880, 80
        %v2193 = vpop.permute.xlu0 %2192
        %v2195 = vsel %vm1245, %v2191, 0
        %v2198 = vsel %vm1245, %v2193, 0
        %2200 = vmatprep.subr.bf16.mxu0 0
        %2201 = vmatpush1.bf16.xpose.msra.mxu0 %v2198
        %2202 = vmatprep.subr.bf16.mxu0 0
        %2203 = vmatpush1.bf16.xpose.msra.mxu0 0
        %2204 = vmatprep.subr.bf16.mxu0 0
        %2205 = vmatpush1.bf16.xpose.msra.mxu0 0
        %2206 = vmatprep.subr.bf16.mxu0 0
        %2207 = vmatpush1.bf16.xpose.msra.mxu0 0
        %2208 = vmatprep.subr.bf16.mxu0 0
        %2209 = vmatpush1.bf16.xpose.msra.mxu0 0
        %2210 = vmatprep.subr.bf16.mxu0 0
        %2211 = vmatpush1.bf16.xpose.msra.mxu0 0
        %2212 = vmatprep.subr.bf16.mxu0 0
        %2213 = vmatpush1.bf16.xpose.msra.mxu0 0
        %2214 = vmatprep.subr.bf16.mxu0 0
        %2215 = vmatpush1.bf16.xpose.msra.mxu0 0
        %2216 = vmatprep.subr.bf16.mxu0 0
        %2217 = vmatpush1.bf16.xpose.msra.mxu0 0
        %2218 = vmatprep.subr.bf16.mxu0 0
        %2219 = vmatpush1.bf16.xpose.msra.mxu0 0
        %2220 = vmatprep.subr.bf16.mxu0 0
        %2221 = vmatpush1.bf16.xpose.msra.mxu0 0
        %2222 = vmatprep.subr.bf16.mxu0 0
        %2223 = vmatpush1.bf16.xpose.msra.mxu0 0
        %2224 = vmatprep.subr.bf16.mxu0 0
        %2225 = vmatpush1.bf16.xpose.msra.mxu0 0
        %2226 = vmatprep.subr.bf16.mxu0 0
        %2227 = vmatpush1.bf16.xpose.msra.mxu0 0
        %2228 = vmatprep.subr.bf16.mxu0 0
        %2229 = vmatpush1.bf16.xpose.msra.mxu0 0
        %2230 = vmatprep.subr.bf16.mxu0 0
        %2231 = vmatpush1.bf16.xpose.msra.mxu0 0
        %2232 = vmatprep.mubr.bf16.mxu0 0
        %2233 = vmatmul.mubr.bf16.gmra.mrb[0].mxu0 %v2195
        %v2234 = vpop.f32.mrb[0].mxu0
        %v2235 = vadd.f32 0.0, %v2234
        %v2236 = vpop.f32.mrb[0].mxu0
        %v2237 = vpop.f32.mrb[0].mxu0
        %v2238 = vpop.f32.mrb[0].mxu0
        %2239 = vdwg.mxu0
        %v2240 = vmul.f32 %v2235, 0.35355338
        %v2241 = vsel %vm1245, %v2240, -inf
        %2242 = vmax.xlane.f32.xlu0 %v2241
        %v2243 = vpop.xlane.xlu0 %2242
        %v2244 = vsub.f32 %v2240, %v2243
        %v2245 = vmul.f32 %v2244, 1.442695
        %v2246 = vpow.pop %v2245
        %v2247 = vsel %vm1245, %v2246, 0.0
        %2248 = vadd.xlane.f32.xlu0 %v2247
        %v2249 = vpop.xlane.xlu0 %2248
        %v2250 = vrcp.pop %v2249
        %v2251 = vmul.f32 %v2246, %v2250
        %v2252 = vpack.c.bf16 %v2251, %v2251
        %2253 = vrot.lane.b32.xlu0 %v1881, 112
        %v2254 = vpop.permute.xlu0 %2253
        %v2256 = vsel %vm1245, %v2252, 0
        %v2259 = vsel %vm1308, %v2254, 0
        %2261 = vmatprep.subr.bf16.mxu0 0
        %2262 = vmatpush1.bf16.msra.mxu0 %v2259
        %2263 = vmatprep.subr.bf16.mxu0 0
        %2264 = vmatpush1.bf16.msra.mxu0 0
        %2265 = vmatprep.subr.bf16.mxu0 0
        %2266 = vmatpush1.bf16.msra.mxu0 0
        %2267 = vmatprep.subr.bf16.mxu0 0
        %2268 = vmatpush1.bf16.msra.mxu0 0
        %2269 = vmatprep.subr.bf16.mxu0 0
        %2270 = vmatpush1.bf16.msra.mxu0 0
        %2271 = vmatprep.subr.bf16.mxu0 0
        %2272 = vmatpush1.bf16.msra.mxu0 0
        %2273 = vmatprep.subr.bf16.mxu0 0
        %2274 = vmatpush1.bf16.msra.mxu0 0
        %2275 = vmatprep.subr.bf16.mxu0 0
        %2276 = vmatpush1.bf16.msra.mxu0 0
        %2277 = vmatprep.subr.bf16.mxu0 0
        %2278 = vmatpush1.bf16.msra.mxu0 0
        %2279 = vmatprep.subr.bf16.mxu0 0
        %2280 = vmatpush1.bf16.msra.mxu0 0
        %2281 = vmatprep.subr.bf16.mxu0 0
        %2282 = vmatpush1.bf16.msra.mxu0 0
        %2283 = vmatprep.subr.bf16.mxu0 0
        %2284 = vmatpush1.bf16.msra.mxu0 0
        %2285 = vmatprep.subr.bf16.mxu0 0
        %2286 = vmatpush1.bf16.msra.mxu0 0
        %2287 = vmatprep.subr.bf16.mxu0 0
        %2288 = vmatpush1.bf16.msra.mxu0 0
        %2289 = vmatprep.subr.bf16.mxu0 0
        %2290 = vmatpush1.bf16.msra.mxu0 0
        %2291 = vmatprep.subr.bf16.mxu0 0
        %2292 = vmatpush1.bf16.msra.mxu0 0
        %2293 = vmatprep.mubr.bf16.mxu0 0
        %2294 = vmatmul.mubr.bf16.gmra.mrb[0].mxu0 %v2256
        %v2295 = vpop.f32.mrb[0].mxu0
        %v2296 = vadd.f32 0.0, %v2295
        %v2297 = vpop.f32.mrb[0].mxu0
        %v2298 = vpop.f32.mrb[0].mxu0
        %v2299 = vpop.f32.mrb[0].mxu0
        %2300 = vdwg.mxu0
        %v2301 = vpack.c.bf16 %v2296, %v2296
        %v2303 = vsel %vm1245, %v2301, 0
        %2305 = vmatprep.subr.bf16.mxu0 0
        %2306 = vmatpush1.bf16.msra.mxu0 %v1677
        %2307 = vmatprep.subr.bf16.mxu0 0
        %2308 = vmatpush1.bf16.msra.mxu0 0
        %2309 = vmatprep.subr.bf16.mxu0 0
        %2310 = vmatpush1.bf16.msra.mxu0 0
        %2311 = vmatprep.subr.bf16.mxu0 0
        %2312 = vmatpush1.bf16.msra.mxu0 0
        %2313 = vmatprep.subr.bf16.mxu0 0
        %2314 = vmatpush1.bf16.msra.mxu0 0
        %2315 = vmatprep.subr.bf16.mxu0 0
        %2316 = vmatpush1.bf16.msra.mxu0 0
        %2317 = vmatprep.subr.bf16.mxu0 0
        %2318 = vmatpush1.bf16.msra.mxu0 0
        %2319 = vmatprep.subr.bf16.mxu0 0
        %2320 = vmatpush1.bf16.msra.mxu0 0
        %2321 = vmatprep.subr.bf16.mxu0 0
        %2322 = vmatpush1.bf16.msra.mxu0 0
        %2323 = vmatprep.subr.bf16.mxu0 0
        %2324 = vmatpush1.bf16.msra.mxu0 0
        %2325 = vmatprep.subr.bf16.mxu0 0
        %2326 = vmatpush1.bf16.msra.mxu0 0
        %2327 = vmatprep.subr.bf16.mxu0 0
        %2328 = vmatpush1.bf16.msra.mxu0 0
        %2329 = vmatprep.subr.bf16.mxu0 0
        %2330 = vmatpush1.bf16.msra.mxu0 0
        %2331 = vmatprep.subr.bf16.mxu0 0
        %2332 = vmatpush1.bf16.msra.mxu0 0
        %2333 = vmatprep.subr.bf16.mxu0 0
        %2334 = vmatpush1.bf16.msra.mxu0 0
        %2335 = vmatprep.subr.bf16.mxu0 0
        %2336 = vmatpush1.bf16.msra.mxu0 0
        %2337 = vmatprep.mubr.bf16.mxu0 0
        %2338 = vmatmul.mubr.bf16.gmra.mrb[0].mxu0 %v2303
        %v2339 = vpop.f32.mrb[0].mxu0
        %v2340 = vadd.f32 0.0, %v2339
        %v2341 = vpop.f32.mrb[0].mxu0
        %v2342 = vpop.f32.mrb[0].mxu0
        %v2343 = vpop.f32.mrb[0].mxu0
        %2344 = vdwg.mxu0
        %v2345 = vadd.f32 %v2185, %v2340
        %2346 = vrot.lane.b32.xlu0 %v1880, 104
        %v2347 = vpop.permute.xlu0 %2346
        %2348 = vrot.lane.b32.xlu0 %v1880, 72
        %v2349 = vpop.permute.xlu0 %2348
        %v2351 = vsel %vm1245, %v2347, 0
        %v2354 = vsel %vm1245, %v2349, 0
        %2356 = vmatprep.subr.bf16.mxu0 0
        %2357 = vmatpush1.bf16.xpose.msra.mxu0 %v2354
        %2358 = vmatprep.subr.bf16.mxu0 0
        %2359 = vmatpush1.bf16.xpose.msra.mxu0 0
        %2360 = vmatprep.subr.bf16.mxu0 0
        %2361 = vmatpush1.bf16.xpose.msra.mxu0 0
        %2362 = vmatprep.subr.bf16.mxu0 0
        %2363 = vmatpush1.bf16.xpose.msra.mxu0 0
        %2364 = vmatprep.subr.bf16.mxu0 0
        %2365 = vmatpush1.bf16.xpose.msra.mxu0 0
        %2366 = vmatprep.subr.bf16.mxu0 0
        %2367 = vmatpush1.bf16.xpose.msra.mxu0 0
        %2368 = vmatprep.subr.bf16.mxu0 0
        %2369 = vmatpush1.bf16.xpose.msra.mxu0 0
        %2370 = vmatprep.subr.bf16.mxu0 0
        %2371 = vmatpush1.bf16.xpose.msra.mxu0 0
        %2372 = vmatprep.subr.bf16.mxu0 0
        %2373 = vmatpush1.bf16.xpose.msra.mxu0 0
        %2374 = vmatprep.subr.bf16.mxu0 0
        %2375 = vmatpush1.bf16.xpose.msra.mxu0 0
        %2376 = vmatprep.subr.bf16.mxu0 0
        %2377 = vmatpush1.bf16.xpose.msra.mxu0 0
        %2378 = vmatprep.subr.bf16.mxu0 0
        %2379 = vmatpush1.bf16.xpose.msra.mxu0 0
        %2380 = vmatprep.subr.bf16.mxu0 0
        %2381 = vmatpush1.bf16.xpose.msra.mxu0 0
        %2382 = vmatprep.subr.bf16.mxu0 0
        %2383 = vmatpush1.bf16.xpose.msra.mxu0 0
        %2384 = vmatprep.subr.bf16.mxu0 0
        %2385 = vmatpush1.bf16.xpose.msra.mxu0 0
        %2386 = vmatprep.subr.bf16.mxu0 0
        %2387 = vmatpush1.bf16.xpose.msra.mxu0 0
        %2388 = vmatprep.mubr.bf16.mxu0 0
        %2389 = vmatmul.mubr.bf16.gmra.mrb[0].mxu0 %v2351
        %v2390 = vpop.f32.mrb[0].mxu0
        %v2391 = vadd.f32 0.0, %v2390
        %v2392 = vpop.f32.mrb[0].mxu0
        %v2393 = vpop.f32.mrb[0].mxu0
        %v2394 = vpop.f32.mrb[0].mxu0
        %2395 = vdwg.mxu0
        %v2396 = vmul.f32 %v2391, 0.35355338
        %v2397 = vsel %vm1245, %v2396, -inf
        %2398 = vmax.xlane.f32.xlu0 %v2397
        %v2399 = vpop.xlane.xlu0 %2398
        %v2400 = vsub.f32 %v2396, %v2399
        %v2401 = vmul.f32 %v2400, 1.442695
        %v2402 = vpow.pop %v2401
        %v2403 = vsel %vm1245, %v2402, 0.0
        %2404 = vadd.xlane.f32.xlu0 %v2403
        %v2405 = vpop.xlane.xlu0 %2404
        %v2406 = vrcp.pop %v2405
        %v2407 = vmul.f32 %v2402, %v2406
        %v2408 = vpack.c.bf16 %v2407, %v2407
        %2409 = vrot.lane.b32.xlu0 %v1881, 104
        %v2410 = vpop.permute.xlu0 %2409
        %v2412 = vsel %vm1245, %v2408, 0
        %v2415 = vsel %vm1308, %v2410, 0
        %2417 = vmatprep.subr.bf16.mxu0 0
        %2418 = vmatpush1.bf16.msra.mxu0 %v2415
        %2419 = vmatprep.subr.bf16.mxu0 0
        %2420 = vmatpush1.bf16.msra.mxu0 0
        %2421 = vmatprep.subr.bf16.mxu0 0
        %2422 = vmatpush1.bf16.msra.mxu0 0
        %2423 = vmatprep.subr.bf16.mxu0 0
        %2424 = vmatpush1.bf16.msra.mxu0 0
        %2425 = vmatprep.subr.bf16.mxu0 0
        %2426 = vmatpush1.bf16.msra.mxu0 0
        %2427 = vmatprep.subr.bf16.mxu0 0
        %2428 = vmatpush1.bf16.msra.mxu0 0
        %2429 = vmatprep.subr.bf16.mxu0 0
        %2430 = vmatpush1.bf16.msra.mxu0 0
        %2431 = vmatprep.subr.bf16.mxu0 0
        %2432 = vmatpush1.bf16.msra.mxu0 0
        %2433 = vmatprep.subr.bf16.mxu0 0
        %2434 = vmatpush1.bf16.msra.mxu0 0
        %2435 = vmatprep.subr.bf16.mxu0 0
        %2436 = vmatpush1.bf16.msra.mxu0 0
        %2437 = vmatprep.subr.bf16.mxu0 0
        %2438 = vmatpush1.bf16.msra.mxu0 0
        %2439 = vmatprep.subr.bf16.mxu0 0
        %2440 = vmatpush1.bf16.msra.mxu0 0
        %2441 = vmatprep.subr.bf16.mxu0 0
        %2442 = vmatpush1.bf16.msra.mxu0 0
        %2443 = vmatprep.subr.bf16.mxu0 0
        %2444 = vmatpush1.bf16.msra.mxu0 0
        %2445 = vmatprep.subr.bf16.mxu0 0
        %2446 = vmatpush1.bf16.msra.mxu0 0
        %2447 = vmatprep.subr.bf16.mxu0 0
        %2448 = vmatpush1.bf16.msra.mxu0 0
        %2449 = vmatprep.mubr.bf16.mxu0 0
        %2450 = vmatmul.mubr.bf16.gmra.mrb[0].mxu0 %v2412
        %v2451 = vpop.f32.mrb[0].mxu0
        %v2452 = vadd.f32 0.0, %v2451
        %v2453 = vpop.f32.mrb[0].mxu0
        %v2454 = vpop.f32.mrb[0].mxu0
        %v2455 = vpop.f32.mrb[0].mxu0
        %2456 = vdwg.mxu0
        %v2457 = vpack.c.bf16 %v2452, %v2452
        %v2459 = vsel %vm1245, %v2457, 0
        %2461 = vmatprep.subr.bf16.mxu0 0
        %2462 = vmatpush1.bf16.msra.mxu0 %v1837
        %2463 = vmatprep.subr.bf16.mxu0 0
        %2464 = vmatpush1.bf16.msra.mxu0 0
        %2465 = vmatprep.subr.bf16.mxu0 0
        %2466 = vmatpush1.bf16.msra.mxu0 0
        %2467 = vmatprep.subr.bf16.mxu0 0
        %2468 = vmatpush1.bf16.msra.mxu0 0
        %2469 = vmatprep.subr.bf16.mxu0 0
        %2470 = vmatpush1.bf16.msra.mxu0 0
        %2471 = vmatprep.subr.bf16.mxu0 0
        %2472 = vmatpush1.bf16.msra.mxu0 0
        %2473 = vmatprep.subr.bf16.mxu0 0
        %2474 = vmatpush1.bf16.msra.mxu0 0
        %2475 = vmatprep.subr.bf16.mxu0 0
        %2476 = vmatpush1.bf16.msra.mxu0 0
        %2477 = vmatprep.subr.bf16.mxu0 0
        %2478 = vmatpush1.bf16.msra.mxu0 0
        %2479 = vmatprep.subr.bf16.mxu0 0
        %2480 = vmatpush1.bf16.msra.mxu0 0
        %2481 = vmatprep.subr.bf16.mxu0 0
        %2482 = vmatpush1.bf16.msra.mxu0 0
        %2483 = vmatprep.subr.bf16.mxu0 0
        %2484 = vmatpush1.bf16.msra.mxu0 0
        %2485 = vmatprep.subr.bf16.mxu0 0
        %2486 = vmatpush1.bf16.msra.mxu0 0
        %2487 = vmatprep.subr.bf16.mxu0 0
        %2488 = vmatpush1.bf16.msra.mxu0 0
        %2489 = vmatprep.subr.bf16.mxu0 0
        %2490 = vmatpush1.bf16.msra.mxu0 0
        %2491 = vmatprep.subr.bf16.mxu0 0
        %2492 = vmatpush1.bf16.msra.mxu0 0
        %2493 = vmatprep.mubr.bf16.mxu0 0
        %2494 = vmatmul.mubr.bf16.gmra.mrb[0].mxu0 %v2459
        %v2495 = vpop.f32.mrb[0].mxu0
        %v2496 = vadd.f32 0.0, %v2495
        %v2497 = vpop.f32.mrb[0].mxu0
        %v2498 = vpop.f32.mrb[0].mxu0
        %v2499 = vpop.f32.mrb[0].mxu0
        %2500 = vdwg.mxu0
        %v2501 = vadd.f32 %v2345, %v2496
        %v2502 = vld [vmem:[%s918] sm:$0x1]
        %v2504 = vlaneseq
        %v2505 = vshrl.u32 %v2504, 7
        %v2506 = vsub.s32 0, %v2505
        %v2507 = vrot.slane %v2502, %v2506
        %v2509 = vadd.f32 %v1879, %v2507
        %v2510 = vadd.f32 %v2501, %v2507
        %v2511 = vadd.f32 %v957, %v2509
        %v2512 = vadd.f32 %v958, %v2510
        %v2513 = vld [vmem:[%s921] sm:$0x1]
        %v2514 = vld [vmem:[%s924] sm:$0x1]
        %v2515 = vsel %vm985, %v2511, 0.0
        %2516 = vadd.xlane.f32.xlu0 %v2515
        %v2517 = vpop.xlane.xlu0 %2516
        %v2518 = vsel %vm985, %v2512, 0.0
        %2519 = vadd.xlane.f32.xlu0 %v2518
        %v2520 = vpop.xlane.xlu0 %2519
        %v2521 = vrcp.pop 32.0
        %v2522 = vmul.f32 %v2517, %v2521
        %v2523 = vmul.f32 %v2520, %v2521
        %v2524 = vsub.f32 %v2511, %v2522
        %v2525 = vsub.f32 %v2512, %v2523
        %v2526 = vmul.f32 %v2524, %v2524
        %v2527 = vmul.f32 %v2525, %v2525
        %v2528 = vsel %vm985, %v2526, 0.0
        %2529 = vadd.xlane.f32.xlu0 %v2528
        %v2530 = vpop.xlane.xlu0 %2529
        %v2531 = vsel %vm985, %v2527, 0.0
        %2532 = vadd.xlane.f32.xlu0 %v2531
        %v2533 = vpop.xlane.xlu0 %2532
        %v2534 = vmul.f32 %v2530, %v2521
        %v2535 = vmul.f32 %v2533, %v2521
        %v2536 = vadd.f32 %v2534, 1e-05
        %v2537 = vadd.f32 %v2535, 1e-05
        %v2538 = vrsqrt.pop %v2536
        %v2539 = vrsqrt.pop %v2537
        %v2540 = vmul.f32 %v2524, %v2538
        %v2541 = vmul.f32 %v2525, %v2539
        %v2543 = vlaneseq
        %v2544 = vshrl.u32 %v2543, 7
        %v2545 = vsub.s32 0, %v2544
        %v2546 = vrot.slane %v2513, %v2545
        %v2548 = vmul.f32 %v2540, %v2546
        %v2549 = vmul.f32 %v2541, %v2546
        %v2551 = vlaneseq
        %v2552 = vshrl.u32 %v2551, 7
        %v2553 = vsub.s32 0, %v2552
        %v2554 = vrot.slane %v2514, %v2553
        %v2556 = vadd.f32 %v2548, %v2554
        %v2557 = vadd.f32 %v2549, %v2554
        %v2558 = vpack.c.bf16 %v2557, %v2556
        %v2559 = vld [vmem:[%s929] sm:$0xf]
        %v2560 = vld [vmem:[%s929 + $0x4] sm:$0xf]
        %v2561 = vld [vmem:[%s929 + $0x8] sm:$0xf]
        %v2562 = vld [vmem:[%s929 + $0xc] sm:$0xf]
        %v2563 = vld [vmem:[%s932] sm:$0x1]
        %v2565 = vlaneseq
        %v2566 = vshrl.u32 %v2565, 7
        %v2567 = vsub.s32 0, %v2566
        %v2568 = vrot.slane %v2563, %v2567
        %v2574 = vunpack.c.l.b16 %v2559
        %v2575 = vunpack.c.l.b16 %v2560
        %v2576 = vunpack.c.l.b16 %v2561
        %v2577 = vunpack.c.l.b16 %v2562
        %v2578 = vpack.c.b16 %v2575, %v2574
        %v2579 = vpack.c.b16 %v2577, %v2576
        %v2583 = vsel %vm985, %v2558, 0
        %2585 = vmatprep.subr.bf16.mxu0 0
        %2586 = vmatpush1.bf16.msra.mxu0 %v2578
        %2587 = vmatprep.subr.bf16.mxu0 0
        %2588 = vmatpush1.bf16.msra.mxu0 %v2579
        %2589 = vmatprep.subr.bf16.mxu0 0
        %2590 = vmatpush1.bf16.msra.mxu0 0
        %2591 = vmatprep.subr.bf16.mxu0 0
        %2592 = vmatpush1.bf16.msra.mxu0 0
        %2593 = vmatprep.subr.bf16.mxu0 0
        %2594 = vmatpush1.bf16.msra.mxu0 0
        %2595 = vmatprep.subr.bf16.mxu0 0
        %2596 = vmatpush1.bf16.msra.mxu0 0
        %2597 = vmatprep.subr.bf16.mxu0 0
        %2598 = vmatpush1.bf16.msra.mxu0 0
        %2599 = vmatprep.subr.bf16.mxu0 0
        %2600 = vmatpush1.bf16.msra.mxu0 0
        %2601 = vmatprep.subr.bf16.mxu0 0
        %2602 = vmatpush1.bf16.msra.mxu0 0
        %2603 = vmatprep.subr.bf16.mxu0 0
        %2604 = vmatpush1.bf16.msra.mxu0 0
        %2605 = vmatprep.subr.bf16.mxu0 0
        %2606 = vmatpush1.bf16.msra.mxu0 0
        %2607 = vmatprep.subr.bf16.mxu0 0
        %2608 = vmatpush1.bf16.msra.mxu0 0
        %2609 = vmatprep.subr.bf16.mxu0 0
        %2610 = vmatpush1.bf16.msra.mxu0 0
        %2611 = vmatprep.subr.bf16.mxu0 0
        %2612 = vmatpush1.bf16.msra.mxu0 0
        %2613 = vmatprep.subr.bf16.mxu0 0
        %2614 = vmatpush1.bf16.msra.mxu0 0
        %2615 = vmatprep.subr.bf16.mxu0 0
        %2616 = vmatpush1.bf16.msra.mxu0 0
        %2617 = vmatprep.mubr.bf16.mxu0 0
        %2618 = vmatmul.mubr.bf16.gmra.mrb[0].mxu0 %v2583
        %v2619 = vpop.f32.mrb[0].mxu0
        %v2620 = vadd.f32 %v2568, %v2619
        %v2621 = vpop.f32.mrb[0].mxu0
        %v2622 = vpop.f32.mrb[0].mxu0
        %v2623 = vadd.f32 %v2568, %v2622
        %v2624 = vpop.f32.mrb[0].mxu0
        %2625 = vdwg.mxu0
        %s2626 = sld [smem:[#allocation14 + %s38]]
        %vm2627 = vcmp.ge.f32.partialorder %v2620, 0.0
        %vm2628 = vcmp.ge.f32.partialorder %v2623, 0.0
        %v2629 = vstv %s2626
        %v2630 = vmul.f32 %v2629, %v2620
        %v2631 = vmul.f32 %v2629, %v2623
        %v2632 = vsel %vm2627, %v2620, %v2630
        %v2633 = vsel %vm2628, %v2623, %v2631
        %v2634 = vpack.c.bf16 %v2633, %v2632
        %v2635 = vld [vmem:[%s937] sm:$0xf]
        %v2636 = vld [vmem:[%s937 + $0x4] sm:$0xf]
        %v2637 = vld [vmem:[%s937 + $0x8] sm:$0xf]
        %v2638 = vld [vmem:[%s937 + $0xc] sm:$0xf]
        %v2639 = vld [vmem:[%s937 + $0x10] sm:$0xf]
        %v2640 = vld [vmem:[%s937 + $0x14] sm:$0xf]
        %v2641 = vld [vmem:[%s937 + $0x18] sm:$0xf]
        %v2642 = vld [vmem:[%s937 + $0x1c] sm:$0xf]
        %v2643 = vld [vmem:[%s937 + $0x20] sm:$0xf]
        %v2644 = vld [vmem:[%s937 + $0x24] sm:$0xf]
        %v2645 = vld [vmem:[%s937 + $0x28] sm:$0xf]
        %v2646 = vld [vmem:[%s937 + $0x2c] sm:$0xf]
        %v2647 = vld [vmem:[%s937 + $0x30] sm:$0xf]
        %v2648 = vld [vmem:[%s937 + $0x34] sm:$0xf]
        %v2649 = vld [vmem:[%s937 + $0x38] sm:$0xf]
        %v2650 = vld [vmem:[%s937 + $0x3c] sm:$0xf]
        %v2651 = vld [vmem:[%s940] sm:$0x1]
        %v2653 = vlaneseq
        %v2654 = vshrl.u32 %v2653, 7
        %v2655 = vsub.s32 0, %v2654
        %v2656 = vrot.slane %v2651, %v2655
        %v2674 = vunpack.c.l.b16 %v2635
        %v2675 = vunpack.c.l.b16 %v2636
        %v2676 = vunpack.c.l.b16 %v2637
        %v2677 = vunpack.c.l.b16 %v2638
        %v2678 = vunpack.c.l.b16 %v2639
        %v2679 = vunpack.c.l.b16 %v2640
        %v2680 = vunpack.c.l.b16 %v2641
        %v2681 = vunpack.c.l.b16 %v2642
        %v2682 = vunpack.c.l.b16 %v2643
        %v2683 = vunpack.c.l.b16 %v2644
        %v2684 = vunpack.c.l.b16 %v2645
        %v2685 = vunpack.c.l.b16 %v2646
        %v2686 = vunpack.c.l.b16 %v2647
        %v2687 = vunpack.c.l.b16 %v2648
        %v2688 = vunpack.c.l.b16 %v2649
        %v2689 = vunpack.c.l.b16 %v2650
        %v2690 = vpack.c.b16 %v2675, %v2674
        %v2691 = vpack.c.b16 %v2677, %v2676
        %v2692 = vpack.c.b16 %v2679, %v2678
        %v2693 = vpack.c.b16 %v2681, %v2680
        %v2694 = vpack.c.b16 %v2683, %v2682
        %v2695 = vpack.c.b16 %v2685, %v2684
        %v2696 = vpack.c.b16 %v2687, %v2686
        %v2697 = vpack.c.b16 %v2689, %v2688
        %2706 = vmatprep.subr.bf16.mxu0 0
        %2707 = vmatpush1.bf16.msra.mxu0 %v2690
        %2708 = vmatprep.subr.bf16.mxu0 0
        %2709 = vmatpush1.bf16.msra.mxu0 %v2691
        %2710 = vmatprep.subr.bf16.mxu0 0
        %2711 = vmatpush1.bf16.msra.mxu0 %v2692
        %2712 = vmatprep.subr.bf16.mxu0 0
        %2713 = vmatpush1.bf16.msra.mxu0 %v2693
        %2714 = vmatprep.subr.bf16.mxu0 0
        %2715 = vmatpush1.bf16.msra.mxu0 %v2694
        %2716 = vmatprep.subr.bf16.mxu0 0
        %2717 = vmatpush1.bf16.msra.mxu0 %v2695
        %2718 = vmatprep.subr.bf16.mxu0 0
        %2719 = vmatpush1.bf16.msra.mxu0 %v2696
        %2720 = vmatprep.subr.bf16.mxu0 0
        %2721 = vmatpush1.bf16.msra.mxu0 %v2697
        %2722 = vmatprep.subr.bf16.mxu0 0
        %2723 = vmatpush1.bf16.msra.mxu0 0
        %2724 = vmatprep.subr.bf16.mxu0 0
        %2725 = vmatpush1.bf16.msra.mxu0 0
        %2726 = vmatprep.subr.bf16.mxu0 0
        %2727 = vmatpush1.bf16.msra.mxu0 0
        %2728 = vmatprep.subr.bf16.mxu0 0
        %2729 = vmatpush1.bf16.msra.mxu0 0
        %2730 = vmatprep.subr.bf16.mxu0 0
        %2731 = vmatpush1.bf16.msra.mxu0 0
        %2732 = vmatprep.subr.bf16.mxu0 0
        %2733 = vmatpush1.bf16.msra.mxu0 0
        %2734 = vmatprep.subr.bf16.mxu0 0
        %2735 = vmatpush1.bf16.msra.mxu0 0
        %2736 = vmatprep.subr.bf16.mxu0 0
        %2737 = vmatpush1.bf16.msra.mxu0 0
        %2738 = vmatprep.mubr.bf16.mxu0 0
        %2739 = vmatmul.mubr.bf16.gmra.mrb[0].mxu0 %v2634
        %v2740 = vpop.f32.mrb[0].mxu0
        %v2741 = vadd.f32 %v2656, %v2740
        %v2742 = vpop.f32.mrb[0].mxu0
        %v2743 = vpop.f32.mrb[0].mxu0
        %v2744 = vadd.f32 %v2656, %v2743
        %v2745 = vpop.f32.mrb[0].mxu0
        %2746 = vdwg.mxu0
        %v2747 = vadd.f32 %v2556, %v2741
        %v2748 = vadd.f32 %v2557, %v2744
        %v2749 = vld [vmem:[%s943] sm:$0x1]
        %v2750 = vld [vmem:[%s946] sm:$0x1]
        %v2751 = vsel %vm985, %v2747, 0.0
        %2752 = vadd.xlane.f32.xlu0 %v2751
        %v2753 = vpop.xlane.xlu0 %2752
        %v2754 = vsel %vm985, %v2748, 0.0
        %2755 = vadd.xlane.f32.xlu0 %v2754
        %v2756 = vpop.xlane.xlu0 %2755
        %v2757 = vmul.f32 %v2753, %v2521
        %v2758 = vmul.f32 %v2756, %v2521
        %v2759 = vsub.f32 %v2747, %v2757
        %v2760 = vsub.f32 %v2748, %v2758
        %v2761 = vmul.f32 %v2759, %v2759
        %v2762 = vmul.f32 %v2760, %v2760
        %v2763 = vsel %vm985, %v2761, 0.0
        %2764 = vadd.xlane.f32.xlu0 %v2763
        %v2765 = vpop.xlane.xlu0 %2764
        %v2766 = vsel %vm985, %v2762, 0.0
        %2767 = vadd.xlane.f32.xlu0 %v2766
        %v2768 = vpop.xlane.xlu0 %2767
        %v2769 = vmul.f32 %v2765, %v2521
        %v2770 = vmul.f32 %v2768, %v2521
        %v2771 = vadd.f32 %v2769, 1e-05
        %v2772 = vadd.f32 %v2770, 1e-05
        %v2773 = vrsqrt.pop %v2771
        %v2774 = vrsqrt.pop %v2772
        %v2775 = vmul.f32 %v2759, %v2773
        %v2776 = vmul.f32 %v2760, %v2774
        %v2778 = vlaneseq
        %v2779 = vshrl.u32 %v2778, 7
        %v2780 = vsub.s32 0, %v2779
        %v2781 = vrot.slane %v2749, %v2780
        %v2783 = vmul.f32 %v2775, %v2781
        %v2784 = vmul.f32 %v2776, %v2781
        %v2786 = vlaneseq
        %v2787 = vshrl.u32 %v2786, 7
        %v2788 = vsub.s32 0, %v2787
        %v2789 = vrot.slane %v2750, %v2788
        %v2791 = vadd.f32 %v2783, %v2789
        %v2792 = vadd.f32 %v2784, %v2789
        %2793 = vst.msk [vmem:[#allocation15] sm:$0xff] %vm985, %v2791
        %2794 = vst.msk [vmem:[#allocation15 + $0x8] sm:$0xff] %vm985, %v2792
        // Predicated region
        $region137: #{tpu_custom_call.1} parent=103 // pred_check
          %p2795 = pneg %p562
        $region138: #{tpu_custom_call.1} parent=103 // pred_check_branch
          %2797 = sbr.rel (%p2795) target = $region140
        $region139: #{tpu_custom_call.1} parent=103 // pred_region
          %s2799 = ssub.s32 256, 256
          %2800 = vsyncadd [#allocation4], %s2799
          %s2801 = sshll.u32 [#allocation15], 4
          %s2802 = int_to_ptr.vmem [resolvable:$true] %s2801
          %2807 = dma.vmem_to_hbm [thread:$0]  %s2802, 256, %s21, [#allocation4], 128, 128, 8
        $region140: #{tpu_custom_call.1} parent=103 // pred_fallthru
          _
        // Predicated region
        $region141: #{tpu_custom_call.1} parent=103 // pred_check
          %p2808 = pneg %p562
        $region142: #{tpu_custom_call.1} parent=103 // pred_check_branch
          %2810 = sbr.rel (%p2808) target = $region144
        $region143: #{tpu_custom_call.1} parent=103 // pred_region
          %2811 = dma.done [#allocation4], 256
        $region144: #{tpu_custom_call.1} parent=103 // pred_fallthru
          _
      $region104: #{tpu_custom_call.1} parent=5 // pred_fallthru
        _
      %p2812 = scmp.le.s32.totalorder 2, %s33
      // Predicated region
      $region145: #{tpu_custom_call.1} parent=5 // pred_check
        %p2813 = pneg %p2812
      $region146: #{tpu_custom_call.1} parent=5 // pred_check_branch
        %2815 = sbr.rel (%p2813) target = $region148
      $region147: #{tpu_custom_call.1} parent=5 // pred_region
        %s2816 = ssub.s32 %s33, 2
      $region148: #{tpu_custom_call.1} parent=5 // pred_fallthru
        _
    $region6: #{tpu_custom_call.1} parent=1 // loop_footer
      %s37 = sadd.s32 1, %s33
    $region7: #{tpu_custom_call.1} parent=1 // loop_footer_branch
      %32 = sbr.rel target = $region3
    $region8: #{tpu_custom_call.1} parent=1 // loop_exit
      _
    %2817 = vsyncpa [#allocation3], 1
    %s2818 = scalar_lea.sflag [#allocation3], 1
    %2819 = vsyncpa %s2818, 1
    %2820 = vsyncpa [#allocation7], 1
    %2821 = vsyncpa [#allocation10], 1
    %2822 = vsyncpa [#allocation13], 1
    %2823 = vsyncpa [#allocation4], 1
    %s2824 = scalar_lea.sflag [#allocation4], 1
    %2825 = vsyncpa %s2824, 1
    %2826 = vsyncpa [#allocation5], 1
    %s2827 = scalar_lea.sflag [#allocation5], 1
    %2828 = vsyncpa %s2827, 1

</llo_original>
